<compile_context>
chip_gen: v5e
topology: v5e:2x2
jax: 0.10.0
libtpu: 0.0.40
codegen_flags: <defaults>
</compile_context>

<pallas_src>
import jax
import jax.numpy as jnp
from jax.experimental import pallas as pl
from jax.experimental.pallas import tpu as pltpu


def _conv3x3_kernel(x_ref, w_ref, o_ref):
    """One (batch, cout-tile, row-tile) step of the 3x3 / stride-1 conv.

    x_ref: (1, H+2, W+2, Cin)  zero-padded NHWC image of this batch element
                               (resident across the inner grid axes)
    w_ref: (9, Cin, TCout)     conv taps, tap index t = 3*dy + dx
    o_ref: (1, TH, W, TCout)   conv output tile
    """
    TH = o_ref.shape[1]
    W = o_ref.shape[2]
    TCout = o_ref.shape[3]
    Cin = x_ref.shape[3]

    ht = pl.program_id(2)
    row0 = pl.multiple_of(ht * TH, TH)

    acc = jnp.zeros((TH * W, TCout), jnp.float32)
    for dy in range(3):                      # 9 static taps -> fully unrolled
        for dx in range(3):
            # Direct halo'd load from the ref (no value-slice relayout):
            # rows [row0+dy, row0+dy+TH), cols [dx, dx+W).
            xt = x_ref[0, pl.ds(row0 + dy, TH), pl.ds(dx, W), :]
            acc = acc + jnp.dot(
                xt.reshape(TH * W, Cin),      # free merge when W % 8 == 0
                w_ref[3 * dy + dx],
                preferred_element_type=jnp.float32)

    o_ref[0] = acc.reshape(TH, W, TCout).astype(o_ref.dtype)


def _pick_tile_h(H, W, max_rows):
    """Largest divisor TH of H with TH*W <= max_rows (falls back to 1)."""
    th = 1
    for cand in range(1, H + 1):
        if H % cand == 0 and cand * W <= max_rows:
            th = cand
    return th


def _pick_tile_cout(Cout):
    if Cout <= 256:
        return Cout
    for c in (256, 128):
        if Cout % c == 0:
            return c
    return Cout


def upsample_forward(x, weight, *, compute_dtype=jnp.bfloat16, max_rows=1024):
    """Forward of the PyTorch Upsample module.

    x:      (N, C, H, W)    NCHW, as in the PyTorch module
    weight: (2*C, C, 3, 3)  Conv2d weight, OIHW layout (bias=False)
    returns (N, C // 2, 2*H, 2*W)  in x.dtype

    compute_dtype: MXU operand dtype (bf16 by default; fp32 accumulation).
    """
    N, C, H, W = x.shape
    Cout = weight.shape[0]
    assert weight.shape == (Cout, C, 3, 3)
    assert Cout == 2 * C and Cout % 4 == 0
    Cps = Cout // 4                                 # channels after shuffle
    out_dtype = x.dtype
    cdt = compute_dtype if compute_dtype is not None else x.dtype

    # NHWC + 1-px zero halo (conv padding=1); single cast to the MXU dtype.
    x_nhwc = jnp.transpose(x, (0, 2, 3, 1)).astype(cdt)          # (N,H,W,C)
    x_pad = jnp.pad(x_nhwc, ((0, 0), (1, 1), (1, 1), (0, 0)))    # (N,H+2,W+2,C)

    # OIHW -> (tap, Cin, Cout); cast/repack hoisted out of the kernel.
    w9 = jnp.transpose(weight, (2, 3, 1, 0)).reshape(9, C, Cout).astype(cdt)

    TCout = _pick_tile_cout(Cout)
    TH = _pick_tile_h(H, W, max_rows)
    n_ht = H // TH
    n_co = Cout // TCout

    # VMEM budget: resident padded image + double-buffered weights/output tile
    # + fp32 accumulator.  Keep the explicit limit <= 48 MiB so the same
    # request is valid on v5e/v6e (128 MiB) and v7x (64 MiB physical).
    isz = jnp.dtype(cdt).itemsize
    osz = jnp.dtype(out_dtype).itemsize
    est = ((H + 2) * (W + 2) * C * isz * 2
           + 9 * C * TCout * isz * 2
           + TH * W * TCout * osz * 2
           + TH * W * TCout * 4)
    vmem_limit = int(min(max(32 * 2 ** 20, 2 * est), 48 * 2 ** 20))

    flops = 2 * 9 * N * H * W * C * Cout
    bytes_accessed = (x_pad.size * isz + w9.size * isz
                      + N * H * W * Cout * osz)

    conv_nhwc = pl.pallas_call(
        _conv3x3_kernel,
        out_shape=jax.ShapeDtypeStruct((N, H, W, Cout), out_dtype),
        grid_spec=pltpu.PrefetchScalarGridSpec(
            num_scalar_prefetch=0,
            grid=(N, n_co, n_ht),
            in_specs=[
                # Full padded image per batch element; constant over the inner
                # grid axes -> DMA'd once per n, resident while the row/Cout
                # tiles iterate.
                # TODO(synk): halo'd per-row-tile input blocks (pl.Element /
                # manual DMA) to drop the per-batch resident image entirely.
                pl.BlockSpec((1, H + 2, W + 2, C),
                             lambda n, co, ht: (n, 0, 0, 0)),
                pl.BlockSpec((9, C, TCout),
                             lambda n, co, ht: (0, 0, co)),
            ],
            out_specs=pl.BlockSpec((1, TH, W, TCout),
                                   lambda n, co, ht: (n, ht, 0, co)),
        ),
        compiler_params=pltpu.CompilerParams(
            dimension_semantics=("parallel", "parallel", "parallel"),
            vmem_limit_bytes=vmem_limit,
        ),
        cost_estimate=pl.CostEstimate(flops=flops, transcendentals=0,
                                      bytes_accessed=bytes_accessed),
    )(x_pad, w9)

    # PixelShuffle(2): conv channel 4*c + 2*i + j -> output pixel (2h+i, 2w+j, c).
    # Pure layout permutation, wrapper-side.
    # TODO(synk): fuse into the kernel store path and/or return NHWC directly
    # if the consumer accepts channels-last, saving an HBM read+write pass.
    y = conv_nhwc.reshape(N, H, W, Cps, 2, 2)
    y = jnp.transpose(y, (0, 1, 4, 2, 5, 3))          # (N, H, 2, W, 2, Cps)
    y = y.reshape(N, 2 * H, 2 * W, Cps)
    return jnp.transpose(y, (0, 3, 1, 2))             # back to NCHW


def _reference(x, weight):
    """Pure-JAX reference: XLA conv + PixelShuffle(2)."""
    y = jax.lax.conv_general_dilated(
        x, weight, window_strides=(1, 1), padding=((1, 1), (1, 1)),
        dimension_numbers=("NCHW", "OIHW", "NCHW"),
        precision=jax.lax.Precision.HIGHEST)
    N, C4, H, W = y.shape
    r = 2
    Cps = C4 // (r * r)
    y = y.reshape(N, Cps, r, r, H, W)
    y = jnp.transpose(y, (0, 1, 4, 2, 5, 3))
    return y.reshape(N, Cps, H * r, W * r)


def _check(N, C, H, W, *, max_rows):
    kx, kw = jax.random.split(jax.random.PRNGKey(0))
    x = jax.random.normal(kx, (N, C, H, W), dtype=jnp.float32)
    weight = 0.1 * jax.random.normal(kw, (2 * C, C, 3, 3), dtype=jnp.float32)

    y = upsample_forward(x, weight, max_rows=max_rows)
    jax.block_until_ready(y)

    # Kernel feeds the MXU bf16 operands (fp32 accumulation); compare against
    # the HIGHEST-precision reference on the same bf16-rounded operands.
    x_r = x.astype(jnp.bfloat16).astype(jnp.float32)
    w_r = weight.astype(jnp.bfloat16).astype(jnp.float32)
    y_ref = _reference(x_r, w_r)

    assert y.shape == (N, C // 2, 2 * H, 2 * W), y.shape
    err = float(jnp.max(jnp.abs(y - y_ref)))
    assert jnp.allclose(y, y_ref, atol=2e-3, rtol=2e-3), err


if __name__ == "__main__":
    # Small shape from the spec (single row-tile, batch grid).
    _check(2, 4, 16, 16, max_rows=1024)
    # N=1 with forced spatial tiling (4 row-tiles) to exercise the tiled grid.
    _check(1, 8, 32, 32, max_rows=256)
    print("KERNEL_OK")
</pallas_src>

<mosaic_0001>
module attributes {stable_mosaic.version = 11 : i64} {
  func.func @_conv3x3_kernel(%arg0: i32, %arg1: i32, %arg2: i32, %arg3: memref<1x18x18x4xbf16, #tpu.memory_space<vmem>>, %arg4: memref<9x4x8xbf16, #tpu.memory_space<vmem>>, %arg5: memref<1x16x16x8xf32, #tpu.memory_space<vmem>>) attributes {dimension_semantics = [#tpu.dimension_semantics<parallel>, #tpu.dimension_semantics<parallel>, #tpu.dimension_semantics<parallel>], iteration_bounds = array<i64: 2, 1, 1>, scalar_prefetch = 0 : i64, scratch_operands = 0 : i64, tpu.core_type = #tpu.core_type<tc>, window_params = [{transform_indices = @transform_0, window_bounds = array<i64: 1, 18, 18, 4>}, {transform_indices = @transform_1, window_bounds = array<i64: 9, 4, 8>}, {transform_indices = @transform_2, window_bounds = array<i64: 1, 16, 16, 8>}]} {
    %c16_i32 = arith.constant 16 : i32
    %0 = arith.muli %arg2, %c16_i32 : i32
    %1 = tpu.assume_multiple %0, 16 : i32
    %cst = arith.constant 0.000000e+00 : f32
    %2 = vector.broadcast %cst : f32 to vector<256x8xf32>
    %c0_i32 = arith.constant 0 : i32
    %3 = arith.addi %1, %c0_i32 : i32
    %c0 = arith.constant 0 : index
    %4 = arith.index_cast %3 : i32 to index
    %c0_0 = arith.constant 0 : index
    %c0_1 = arith.constant 0 : index
    %5 = vector.load %arg3[%c0, %4, %c0_0, %c0_1] : memref<1x18x18x4xbf16, #tpu.memory_space<vmem>>, vector<1x16x16x4xbf16>
    %6 = vector.shape_cast %5 : vector<1x16x16x4xbf16> to vector<16x16x4xbf16>
    %7 = vector.shape_cast %6 : vector<16x16x4xbf16> to vector<256x4xbf16>
    %c0_2 = arith.constant 0 : index
    %c0_3 = arith.constant 0 : index
    %c0_4 = arith.constant 0 : index
    %8 = vector.load %arg4[%c0_2, %c0_3, %c0_4] : memref<9x4x8xbf16, #tpu.memory_space<vmem>>, vector<1x4x8xbf16>
    %9 = vector.shape_cast %8 : vector<1x4x8xbf16> to vector<4x8xbf16>
    %cst_5 = arith.constant dense<0.000000e+00> : vector<256x8xf32>
    %10 = tpu.matmul %7, %9, %cst_5 {dimension_numbers = #tpu.dot_dimension_numbers<[1], [0], [0], [1], [0, 0, 1, 1], [], []>} : vector<256x4xbf16>, vector<4x8xbf16>, vector<256x8xf32> -> vector<256x8xf32>
    %11 = arith.addf %2, %10 : vector<256x8xf32>
    %c0_i32_6 = arith.constant 0 : i32
    %12 = arith.addi %1, %c0_i32_6 : i32
    %c0_7 = arith.constant 0 : index
    %13 = arith.index_cast %12 : i32 to index
    %c1 = arith.constant 1 : index
    %c0_8 = arith.constant 0 : index
    %14 = vector.load %arg3[%c0_7, %13, %c1, %c0_8] : memref<1x18x18x4xbf16, #tpu.memory_space<vmem>>, vector<1x16x16x4xbf16>
    %15 = vector.shape_cast %14 : vector<1x16x16x4xbf16> to vector<16x16x4xbf16>
    %16 = vector.shape_cast %15 : vector<16x16x4xbf16> to vector<256x4xbf16>
    %c1_9 = arith.constant 1 : index
    %c0_10 = arith.constant 0 : index
    %c0_11 = arith.constant 0 : index
    %17 = vector.load %arg4[%c1_9, %c0_10, %c0_11] : memref<9x4x8xbf16, #tpu.memory_space<vmem>>, vector<1x4x8xbf16>
    %18 = vector.shape_cast %17 : vector<1x4x8xbf16> to vector<4x8xbf16>
    %cst_12 = arith.constant dense<0.000000e+00> : vector<256x8xf32>
    %19 = tpu.matmul %16, %18, %cst_12 {dimension_numbers = #tpu.dot_dimension_numbers<[1], [0], [0], [1], [0, 0, 1, 1], [], []>} : vector<256x4xbf16>, vector<4x8xbf16>, vector<256x8xf32> -> vector<256x8xf32>
    %20 = arith.addf %11, %19 : vector<256x8xf32>
    %c0_i32_13 = arith.constant 0 : i32
    %21 = arith.addi %1, %c0_i32_13 : i32
    %c0_14 = arith.constant 0 : index
    %22 = arith.index_cast %21 : i32 to index
    %c2 = arith.constant 2 : index
    %c0_15 = arith.constant 0 : index
    %23 = vector.load %arg3[%c0_14, %22, %c2, %c0_15] : memref<1x18x18x4xbf16, #tpu.memory_space<vmem>>, vector<1x16x16x4xbf16>
    %24 = vector.shape_cast %23 : vector<1x16x16x4xbf16> to vector<16x16x4xbf16>
    %25 = vector.shape_cast %24 : vector<16x16x4xbf16> to vector<256x4xbf16>
    %c2_16 = arith.constant 2 : index
    %c0_17 = arith.constant 0 : index
    %c0_18 = arith.constant 0 : index
    %26 = vector.load %arg4[%c2_16, %c0_17, %c0_18] : memref<9x4x8xbf16, #tpu.memory_space<vmem>>, vector<1x4x8xbf16>
    %27 = vector.shape_cast %26 : vector<1x4x8xbf16> to vector<4x8xbf16>
    %cst_19 = arith.constant dense<0.000000e+00> : vector<256x8xf32>
    %28 = tpu.matmul %25, %27, %cst_19 {dimension_numbers = #tpu.dot_dimension_numbers<[1], [0], [0], [1], [0, 0, 1, 1], [], []>} : vector<256x4xbf16>, vector<4x8xbf16>, vector<256x8xf32> -> vector<256x8xf32>
    %29 = arith.addf %20, %28 : vector<256x8xf32>
    %c1_i32 = arith.constant 1 : i32
    %30 = arith.addi %1, %c1_i32 : i32
    %c0_20 = arith.constant 0 : index
    %31 = arith.index_cast %30 : i32 to index
    %c0_21 = arith.constant 0 : index
    %c0_22 = arith.constant 0 : index
    %32 = vector.load %arg3[%c0_20, %31, %c0_21, %c0_22] : memref<1x18x18x4xbf16, #tpu.memory_space<vmem>>, vector<1x16x16x4xbf16>
    %33 = vector.shape_cast %32 : vector<1x16x16x4xbf16> to vector<16x16x4xbf16>
    %34 = vector.shape_cast %33 : vector<16x16x4xbf16> to vector<256x4xbf16>
    %c3 = arith.constant 3 : index
    %c0_23 = arith.constant 0 : index
    %c0_24 = arith.constant 0 : index
    %35 = vector.load %arg4[%c3, %c0_23, %c0_24] : memref<9x4x8xbf16, #tpu.memory_space<vmem>>, vector<1x4x8xbf16>
    %36 = vector.shape_cast %35 : vector<1x4x8xbf16> to vector<4x8xbf16>
    %cst_25 = arith.constant dense<0.000000e+00> : vector<256x8xf32>
    %37 = tpu.matmul %34, %36, %cst_25 {dimension_numbers = #tpu.dot_dimension_numbers<[1], [0], [0], [1], [0, 0, 1, 1], [], []>} : vector<256x4xbf16>, vector<4x8xbf16>, vector<256x8xf32> -> vector<256x8xf32>
    %38 = arith.addf %29, %37 : vector<256x8xf32>
    %c1_i32_26 = arith.constant 1 : i32
    %39 = arith.addi %1, %c1_i32_26 : i32
    %c0_27 = arith.constant 0 : index
    %40 = arith.index_cast %39 : i32 to index
    %c1_28 = arith.constant 1 : index
    %c0_29 = arith.constant 0 : index
    %41 = vector.load %arg3[%c0_27, %40, %c1_28, %c0_29] : memref<1x18x18x4xbf16, #tpu.memory_space<vmem>>, vector<1x16x16x4xbf16>
    %42 = vector.shape_cast %41 : vector<1x16x16x4xbf16> to vector<16x16x4xbf16>
    %43 = vector.shape_cast %42 : vector<16x16x4xbf16> to vector<256x4xbf16>
    %c4 = arith.constant 4 : index
    %c0_30 = arith.constant 0 : index
    %c0_31 = arith.constant 0 : index
    %44 = vector.load %arg4[%c4, %c0_30, %c0_31] : memref<9x4x8xbf16, #tpu.memory_space<vmem>>, vector<1x4x8xbf16>
    %45 = vector.shape_cast %44 : vector<1x4x8xbf16> to vector<4x8xbf16>
    %cst_32 = arith.constant dense<0.000000e+00> : vector<256x8xf32>
    %46 = tpu.matmul %43, %45, %cst_32 {dimension_numbers = #tpu.dot_dimension_numbers<[1], [0], [0], [1], [0, 0, 1, 1], [], []>} : vector<256x4xbf16>, vector<4x8xbf16>, vector<256x8xf32> -> vector<256x8xf32>
    %47 = arith.addf %38, %46 : vector<256x8xf32>
    %c1_i32_33 = arith.constant 1 : i32
    %48 = arith.addi %1, %c1_i32_33 : i32
    %c0_34 = arith.constant 0 : index
    %49 = arith.index_cast %48 : i32 to index
    %c2_35 = arith.constant 2 : index
    %c0_36 = arith.constant 0 : index
    %50 = vector.load %arg3[%c0_34, %49, %c2_35, %c0_36] : memref<1x18x18x4xbf16, #tpu.memory_space<vmem>>, vector<1x16x16x4xbf16>
    %51 = vector.shape_cast %50 : vector<1x16x16x4xbf16> to vector<16x16x4xbf16>
    %52 = vector.shape_cast %51 : vector<16x16x4xbf16> to vector<256x4xbf16>
    %c5 = arith.constant 5 : index
    %c0_37 = arith.constant 0 : index
    %c0_38 = arith.constant 0 : index
    %53 = vector.load %arg4[%c5, %c0_37, %c0_38] : memref<9x4x8xbf16, #tpu.memory_space<vmem>>, vector<1x4x8xbf16>
    %54 = vector.shape_cast %53 : vector<1x4x8xbf16> to vector<4x8xbf16>
    %cst_39 = arith.constant dense<0.000000e+00> : vector<256x8xf32>
    %55 = tpu.matmul %52, %54, %cst_39 {dimension_numbers = #tpu.dot_dimension_numbers<[1], [0], [0], [1], [0, 0, 1, 1], [], []>} : vector<256x4xbf16>, vector<4x8xbf16>, vector<256x8xf32> -> vector<256x8xf32>
    %56 = arith.addf %47, %55 : vector<256x8xf32>
    %c2_i32 = arith.constant 2 : i32
    %57 = arith.addi %1, %c2_i32 : i32
    %c0_40 = arith.constant 0 : index
    %58 = arith.index_cast %57 : i32 to index
    %c0_41 = arith.constant 0 : index
    %c0_42 = arith.constant 0 : index
    %59 = vector.load %arg3[%c0_40, %58, %c0_41, %c0_42] : memref<1x18x18x4xbf16, #tpu.memory_space<vmem>>, vector<1x16x16x4xbf16>
    %60 = vector.shape_cast %59 : vector<1x16x16x4xbf16> to vector<16x16x4xbf16>
    %61 = vector.shape_cast %60 : vector<16x16x4xbf16> to vector<256x4xbf16>
    %c6 = arith.constant 6 : index
    %c0_43 = arith.constant 0 : index
    %c0_44 = arith.constant 0 : index
    %62 = vector.load %arg4[%c6, %c0_43, %c0_44] : memref<9x4x8xbf16, #tpu.memory_space<vmem>>, vector<1x4x8xbf16>
    %63 = vector.shape_cast %62 : vector<1x4x8xbf16> to vector<4x8xbf16>
    %cst_45 = arith.constant dense<0.000000e+00> : vector<256x8xf32>
    %64 = tpu.matmul %61, %63, %cst_45 {dimension_numbers = #tpu.dot_dimension_numbers<[1], [0], [0], [1], [0, 0, 1, 1], [], []>} : vector<256x4xbf16>, vector<4x8xbf16>, vector<256x8xf32> -> vector<256x8xf32>
    %65 = arith.addf %56, %64 : vector<256x8xf32>
    %c2_i32_46 = arith.constant 2 : i32
    %66 = arith.addi %1, %c2_i32_46 : i32
    %c0_47 = arith.constant 0 : index
    %67 = arith.index_cast %66 : i32 to index
    %c1_48 = arith.constant 1 : index
    %c0_49 = arith.constant 0 : index
    %68 = vector.load %arg3[%c0_47, %67, %c1_48, %c0_49] : memref<1x18x18x4xbf16, #tpu.memory_space<vmem>>, vector<1x16x16x4xbf16>
    %69 = vector.shape_cast %68 : vector<1x16x16x4xbf16> to vector<16x16x4xbf16>
    %70 = vector.shape_cast %69 : vector<16x16x4xbf16> to vector<256x4xbf16>
    %c7 = arith.constant 7 : index
    %c0_50 = arith.constant 0 : index
    %c0_51 = arith.constant 0 : index
    %71 = vector.load %arg4[%c7, %c0_50, %c0_51] : memref<9x4x8xbf16, #tpu.memory_space<vmem>>, vector<1x4x8xbf16>
    %72 = vector.shape_cast %71 : vector<1x4x8xbf16> to vector<4x8xbf16>
    %cst_52 = arith.constant dense<0.000000e+00> : vector<256x8xf32>
    %73 = tpu.matmul %70, %72, %cst_52 {dimension_numbers = #tpu.dot_dimension_numbers<[1], [0], [0], [1], [0, 0, 1, 1], [], []>} : vector<256x4xbf16>, vector<4x8xbf16>, vector<256x8xf32> -> vector<256x8xf32>
    %74 = arith.addf %65, %73 : vector<256x8xf32>
    %c2_i32_53 = arith.constant 2 : i32
    %75 = arith.addi %1, %c2_i32_53 : i32
    %c0_54 = arith.constant 0 : index
    %76 = arith.index_cast %75 : i32 to index
    %c2_55 = arith.constant 2 : index
    %c0_56 = arith.constant 0 : index
    %77 = vector.load %arg3[%c0_54, %76, %c2_55, %c0_56] : memref<1x18x18x4xbf16, #tpu.memory_space<vmem>>, vector<1x16x16x4xbf16>
    %78 = vector.shape_cast %77 : vector<1x16x16x4xbf16> to vector<16x16x4xbf16>
    %79 = vector.shape_cast %78 : vector<16x16x4xbf16> to vector<256x4xbf16>
    %c8 = arith.constant 8 : index
    %c0_57 = arith.constant 0 : index
    %c0_58 = arith.constant 0 : index
    %80 = vector.load %arg4[%c8, %c0_57, %c0_58] : memref<9x4x8xbf16, #tpu.memory_space<vmem>>, vector<1x4x8xbf16>
    %81 = vector.shape_cast %80 : vector<1x4x8xbf16> to vector<4x8xbf16>
    %cst_59 = arith.constant dense<0.000000e+00> : vector<256x8xf32>
    %82 = tpu.matmul %79, %81, %cst_59 {dimension_numbers = #tpu.dot_dimension_numbers<[1], [0], [0], [1], [0, 0, 1, 1], [], []>} : vector<256x4xbf16>, vector<4x8xbf16>, vector<256x8xf32> -> vector<256x8xf32>
    %83 = arith.addf %74, %82 : vector<256x8xf32>
    %84 = vector.shape_cast %83 : vector<256x8xf32> to vector<16x16x8xf32>
    %c0_60 = arith.constant 0 : index
    %c0_61 = arith.constant 0 : index
    %c0_62 = arith.constant 0 : index
    %c0_63 = arith.constant 0 : index
    %85 = vector.load %arg5[%c0_60, %c0_61, %c0_62, %c0_63] : memref<1x16x16x8xf32, #tpu.memory_space<vmem>>, vector<1x16x16x8xf32>
    %86 = vector.shape_cast %85 : vector<1x16x16x8xf32> to vector<16x16x8xf32>
    %87 = vector.shape_cast %84 : vector<16x16x8xf32> to vector<1x16x16x8xf32>
    tpu.vector_store %arg5[%c0_60, %c0_61, %c0_62, %c0_63], %87 {strides = array<i32>} : memref<1x16x16x8xf32, #tpu.memory_space<vmem>>, vector<1x16x16x8xf32>,
    return
  }
  func.func @transform_0(%arg0: i32, %arg1: i32, %arg2: i32) -> (i32, i32, i32, i32) {
    %c0_i32 = arith.constant 0 : i32
    %c0_i32_0 = arith.constant 0 : i32
    %c0_i32_1 = arith.constant 0 : i32
    %c0_i32_2 = arith.constant 0 : i32
    return %arg0, %c0_i32, %c0_i32_0, %c0_i32_1 : i32, i32, i32, i32
  }
  func.func @transform_1(%arg0: i32, %arg1: i32, %arg2: i32) -> (i32, i32, i32) {
    %c0_i32 = arith.constant 0 : i32
    %c0_i32_0 = arith.constant 0 : i32
    %c0_i32_1 = arith.constant 0 : i32
    return %c0_i32, %c0_i32_0, %arg1 : i32, i32, i32
  }
  func.func @transform_2(%arg0: i32, %arg1: i32, %arg2: i32) -> (i32, i32, i32, i32) {
    %c0_i32 = arith.constant 0 : i32
    %c0_i32_0 = arith.constant 0 : i32
    return %arg0, %arg2, %c0_i32, %arg1 : i32, i32, i32, i32
  }
}

</mosaic_0001>

<llo_original>
// kernel: tpu_custom_call.1
$region0: #{tpu_custom_call.1}
  #allocation0 [shape = 'u32[]', space=smem, size = 0x4, offset = 0x4, fixed_abs, tag = 'smem constant byte address 0x4 - core index']
  #allocation1 [shape = 'u32[72,128]{1,0:T(1,128)}', space=vmem, size = 0x9000, scoped, tag = 'internal scratch']
  %s0 = inlined_call_operand.vmem [shape: bf16[2,18,18,4], index: 0, kind: input, shape index: {}]
  %s1 = inlined_call_operand.vmem [shape: bf16[9,4,8], index: 1, kind: input, shape index: {}]
  %s2 = inlined_call_operand.vmem [shape: f32[2,16,16,8], index: 2, kind: output, shape index: {}]
  %s3 = sld [smem:[#allocation0]]
  $region41: #{tpu_custom_call.1} parent=0
    _
  %s5 = ssub.s32 1, %s3
  %s6 = scalar_select 0, %s5, %s3
  loop: start=0, step=1, limit=4
  $region2: #{tpu_custom_call.1} parent=0 // loop_pre_header
    _
  $region3: #{tpu_custom_call.1} parent=0 // loop_header
    %s8 = sphi 0, %s12
    %p9 = scmp.ge.s32.totalorder %s8, 4
    %s15 = sphi 0, %s34
    %s16 = sphi 0, %s30
    %s17 = sphi 0, %s26
    %s18 = sphi 0, %s15
    %s19 = sphi 0, %s16
    %s20 = sphi 0, %s17
    %s21 = sphi 0, %s18
    %s22 = sphi 0, %s19
    %s23 = sphi 0, %s20
    %s37 = sphi 0, %s39
    %s40 = sphi 0, %s37
    %s41 = sphi 0, %s40
    %s57 = sphi 0, %s41
    %s63 = sphi 0, %s65
    %s66 = sphi 0, %s63
    %s67 = sphi 0, %s66
    %s83 = sphi 0, %s67
    %s93 = sphi 0, %s95
    %s96 = sphi 0, %s93
    %s97 = sphi 0, %s96
    %s113 = sphi 0, %s97
  $region4: #{tpu_custom_call.1} parent=0 // loop_header_branch
    %11 = sbr.rel (%p9) target = $region8
  $region5: #{tpu_custom_call.1} parent=0 // loop_body
    %s13 = ssub.s32 %s8, 1
    %s14 = ssub.s32 %s8, 2
    %s24 = sadd.s32 1, %s17
    %p25 = scmp.ge.s32.totalorder %s24, 1
    %s26 = scalar_select %p25, 0, %s24
    %s27 = sadd.s32 1, %s16
    %s28 = scalar_select %p25, %s27, %s16
    %p29 = scmp.ge.s32.totalorder %s28, 1
    %s30 = scalar_select %p29, 0, %s28
    %s31 = sadd.s32 1, %s15
    %s32 = scalar_select %p29, %s31, %s15
    %p33 = scmp.ge.s32.totalorder %s32, 2
    %s34 = scalar_select %p33, 0, %s32
    %s35 = ssub.s32 %s15, %s34
    %p36 = scmp.eq.s32.totalorder %s35, 0
    %s38 = sadd.s32 %s37, 1
    %s39 = scalar_select %p36, %s37, %s38
    %p42 = pneg %p36
    %p43 = scmp.eq.s32.totalorder %s8, 1
    %p44 = por %p42, %p43
    %p45 = scmp.ne.s32.totalorder %s37, %s40
    %p46 = scmp.eq.s32.totalorder %s8, 0
    %p47 = por %p45, %p46
    %p48 = scmp.ne.s32.totalorder %s37, %s40
    %p49 = scmp.eq.s32.totalorder %s13, 1
    %p50 = por %p48, %p49
    %p51 = scmp.ne.s32.totalorder %s40, %s41
    %p52 = scmp.eq.s32.totalorder %s13, 0
    %p53 = por %p51, %p52
    %p54 = scmp.ne.s32.totalorder %s40, %s41
    %p55 = scmp.eq.s32.totalorder %s14, 1
    %p56 = por %p54, %p55
    %p58 = scmp.ne.s32.totalorder %s41, %s57
    %p59 = scmp.eq.s32.totalorder %s14, 0
    %p60 = por %p58, %p59
    %s61 = ssub.s32 %s16, %s30
    %p62 = scmp.eq.s32.totalorder %s61, 0
    %s64 = sadd.s32 %s63, 1
    %s65 = scalar_select %p62, %s63, %s64
    %p68 = pneg %p62
    %p69 = scmp.eq.s32.totalorder %s8, 1
    %p70 = por %p68, %p69
    %p71 = scmp.ne.s32.totalorder %s63, %s66
    %p72 = scmp.eq.s32.totalorder %s8, 0
    %p73 = por %p71, %p72
    %p74 = scmp.ne.s32.totalorder %s63, %s66
    %p75 = scmp.eq.s32.totalorder %s13, 1
    %p76 = por %p74, %p75
    %p77 = scmp.ne.s32.totalorder %s66, %s67
    %p78 = scmp.eq.s32.totalorder %s13, 0
    %p79 = por %p77, %p78
    %p80 = scmp.ne.s32.totalorder %s66, %s67
    %p81 = scmp.eq.s32.totalorder %s14, 1
    %p82 = por %p80, %p81
    %p84 = scmp.ne.s32.totalorder %s67, %s83
    %p85 = scmp.eq.s32.totalorder %s14, 0
    %p86 = por %p84, %p85
    %s87 = ssub.s32 %s15, %s34
    %s88 = ssub.s32 %s17, %s26
    %s89 = sor.u32 %s87, %s88
    %s90 = ssub.s32 %s16, %s30
    %s91 = sor.u32 %s89, %s90
    %p92 = scmp.eq.s32.totalorder %s91, 0
    %s94 = sadd.s32 %s93, 1
    %s95 = scalar_select %p92, %s93, %s94
    %p98 = pneg %p92
    %p99 = scmp.eq.s32.totalorder %s8, 1
    %p100 = por %p98, %p99
    %p101 = scmp.ne.s32.totalorder %s93, %s96
    %p102 = scmp.eq.s32.totalorder %s8, 0
    %p103 = por %p101, %p102
    %p104 = scmp.ne.s32.totalorder %s93, %s96
    %p105 = scmp.eq.s32.totalorder %s13, 1
    %p106 = por %p104, %p105
    %p107 = scmp.ne.s32.totalorder %s96, %s97
    %p108 = scmp.eq.s32.totalorder %s13, 0
    %p109 = por %p107, %p108
    %p110 = scmp.ne.s32.totalorder %s96, %s97
    %p111 = scmp.eq.s32.totalorder %s14, 1
    %p112 = por %p110, %p111
    %p114 = scmp.ne.s32.totalorder %s97, %s113
    %p115 = scmp.eq.s32.totalorder %s14, 0
    %p116 = por %p114, %p115
    %p117 = scmp.le.s32.totalorder 1, %s8
    %p118 = scmp.lt.s32.totalorder %s8, 3
    %p119 = pnand %p117, %p118
    %p120 = pneg %p119
    // Predicated region
    $region9: #{tpu_custom_call.1} parent=5 // pred_check
      _
    $region10: #{tpu_custom_call.1} parent=5 // pred_check_branch
      %122 = sbr.rel (%p119) target = $region12
    $region11: #{tpu_custom_call.1} parent=5 // pred_region
      %s123 = ssub.s32 %s8, 1
      // Predicated region
      $region13: #{tpu_custom_call.1} parent=11 // pred_check
        %p124 = pneg %p79
      $region14: #{tpu_custom_call.1} parent=11 // pred_check_branch
        %126 = sbr.rel (%p124) target = $region16
      $region15: #{tpu_custom_call.1} parent=11 // pred_region
        %p127 = scmp.lt.s32.totalorder %s19, 0
        %s128 = scalar_select %p127, %s19, 0
        %s129 = smul.addr %s128, 2
        %s130 = scalar_lea.vmem %s1, %s129
      $region16: #{tpu_custom_call.1} parent=11 // pred_fallthru
        _
    $region12: #{tpu_custom_call.1} parent=5 // pred_fallthru
      _
    %p131 = scmp.lt.s32.totalorder %s8, 2
    // Predicated region
    $region17: #{tpu_custom_call.1} parent=5 // pred_check
      %p132 = pneg %p131
    $region18: #{tpu_custom_call.1} parent=5 // pred_check_branch
      %134 = sbr.rel (%p132) target = $region20
    $region19: #{tpu_custom_call.1} parent=5 // pred_region
      // Predicated region
      $region21: #{tpu_custom_call.1} parent=19 // pred_check
        %p135 = pneg %p47
      $region22: #{tpu_custom_call.1} parent=19 // pred_check_branch
        %137 = sbr.rel (%p135) target = $region24
      $region23: #{tpu_custom_call.1} parent=19 // pred_region
        %p138 = scmp.lt.s32.totalorder %s15, 1
        %s139 = scalar_select %p138, %s15, 1
        %s140 = smul.addr %s139, 54
        %s141 = smul.addr %s140, 4
        %s142 = scalar_lea.vmem %s0, %s141
      $region24: #{tpu_custom_call.1} parent=19 // pred_fallthru
        _
    $region20: #{tpu_custom_call.1} parent=5 // pred_fallthru
      _
    %p143 = scmp.le.s32.totalorder 1, %s8
    %p144 = scmp.lt.s32.totalorder %s8, 3
    %p145 = pnand %p143, %p144
    %p146 = pneg %p145
    // Predicated region
    $region25: #{tpu_custom_call.1} parent=5 // pred_check
      _
    $region26: #{tpu_custom_call.1} parent=5 // pred_check_branch
      %148 = sbr.rel (%p145) target = $region28
    $region27: #{tpu_custom_call.1} parent=5 // pred_region
      %s149 = ssub.s32 %s8, 1
      %p150 = scmp.lt.s32.totalorder %s18, 1
      %s151 = scalar_select %p150, %s18, 1
      %s152 = smul.addr %s151, 54
      %s153 = smul.addr %s152, 4
      %s154 = scalar_lea.vmem %s0, %s153
      %p155 = pneg %p53
      %p156 = pneg %p50
      %p157 = scmp.lt.s32.totalorder %s19, 0
      %s158 = scalar_select %p157, %s19, 0
      %s159 = smul.addr %s158, 2
      %s160 = scalar_lea.vmem %s1, %s159
      %p161 = pneg %p79
      %p162 = pneg %p76
      %p163 = pneg %p109
      %p164 = pneg %p106
      %s165 = smul.u32 16, %s20
      %p166 = scmp.lt.s32.totalorder %s18, 1
      %s167 = scalar_select %p166, %s18, 1
      %p168 = scmp.lt.s32.totalorder %s165, 15
      %s169 = scalar_select %p168, %s165, 15
      %p170 = scmp.lt.s32.totalorder %s19, 0
      %s171 = scalar_select %p170, %s19, 0
      %s172 = smul.addr %s169, 2
      %s173 = sadd.s32 %s171, %s172
      %s174 = smul.addr %s167, 32
      %s175 = sadd.s32 %s173, %s174
      %s176 = smul.addr %s175, 8
      %s177 = scalar_lea.vmem %s2, %s176
      %p178 = scmp.lt.s32.totalorder %s18, 1
      %s179 = scalar_select %p178, %s18, 1
      %s180 = smul.addr %s179, 54
      %s181 = smul.addr %s180, 4
      %s182 = scalar_lea.vmem %s0, %s181
      %p183 = scmp.lt.s32.totalorder %s19, 0
      %s184 = scalar_select %p183, %s19, 0
      %s185 = smul.addr %s184, 2
      %s186 = scalar_lea.vmem %s1, %s185
      %s187 = smul.u32 16, %s20
      %p188 = scmp.lt.s32.totalorder %s18, 1
      %s189 = scalar_select %p188, %s18, 1
      %p190 = scmp.lt.s32.totalorder %s187, 15
      %s191 = scalar_select %p190, %s187, 15
      %p192 = scmp.lt.s32.totalorder %s19, 0
      %s193 = scalar_select %p192, %s19, 0
      %s194 = smul.addr %s191, 2
      %s195 = sadd.s32 %s193, %s194
      %s196 = smul.addr %s189, 32
      %s197 = sadd.s32 %s195, %s196
      %s198 = smul.addr %s197, 8
      %s199 = scalar_lea.vmem %s2, %s198
      %s200 = smul.u32 16, %s20
      %s202 = smul.u32 %s20, 16
      %s203 = smul.u32 %s202, 3
      %s204 = smul.addr %s203, 4
      %s205 = scalar_lea.vmem %s182, %s204
      %v206 = vld [vmem:[%s205] sm:$0xf]
      %v207 = vld [vmem:[%s205 + $0x4] sm:$0xf]
      %v208 = vld [vmem:[%s205 + $0xc] sm:$0xf]
      %v209 = vld [vmem:[%s205 + $0x10] sm:$0xf]
      %v210 = vld [vmem:[%s205 + $0x18] sm:$0xf]
      %v211 = vld [vmem:[%s205 + $0x1c] sm:$0xf]
      %v212 = vld [vmem:[%s205 + $0x24] sm:$0xf]
      %v213 = vld [vmem:[%s205 + $0x28] sm:$0xf]
      %v214 = vld [vmem:[%s205 + $0x30] sm:$0xf]
      %v215 = vld [vmem:[%s205 + $0x34] sm:$0xf]
      %v216 = vld [vmem:[%s205 + $0x3c] sm:$0xf]
      %v217 = vld [vmem:[%s205 + $0x40] sm:$0xf]
      %v218 = vld [vmem:[%s205 + $0x48] sm:$0xf]
      %v219 = vld [vmem:[%s205 + $0x4c] sm:$0xf]
      %v220 = vld [vmem:[%s205 + $0x54] sm:$0xf]
      %v221 = vld [vmem:[%s205 + $0x58] sm:$0xf]
      %v222 = vld [vmem:[%s205 + $0x60] sm:$0xf]
      %v223 = vld [vmem:[%s205 + $0x64] sm:$0xf]
      %v224 = vld [vmem:[%s205 + $0x6c] sm:$0xf]
      %v225 = vld [vmem:[%s205 + $0x70] sm:$0xf]
      %v226 = vld [vmem:[%s205 + $0x78] sm:$0xf]
      %v227 = vld [vmem:[%s205 + $0x7c] sm:$0xf]
      %v228 = vld [vmem:[%s205 + $0x84] sm:$0xf]
      %v229 = vld [vmem:[%s205 + $0x88] sm:$0xf]
      %v230 = vld [vmem:[%s205 + $0x90] sm:$0xf]
      %v231 = vld [vmem:[%s205 + $0x94] sm:$0xf]
      %v232 = vld [vmem:[%s205 + $0x9c] sm:$0xf]
      %v233 = vld [vmem:[%s205 + $0xa0] sm:$0xf]
      %v234 = vld [vmem:[%s205 + $0xa8] sm:$0xf]
      %v235 = vld [vmem:[%s205 + $0xac] sm:$0xf]
      %v236 = vld [vmem:[%s205 + $0xb4] sm:$0xf]
      %v237 = vld [vmem:[%s205 + $0xb8] sm:$0xf]
      %v238 = vld [vmem:[%s186] sm:$0x3]
      %v239 = vld [vmem:[%s205 + $0x8] sm:$0x1]
      %v240 = vld [vmem:[%s205 + $0x14] sm:$0x1]
      %v241 = vld [vmem:[%s205 + $0x20] sm:$0x1]
      %v242 = vld [vmem:[%s205 + $0x2c] sm:$0x1]
      %v243 = vld [vmem:[%s205 + $0x38] sm:$0x1]
      %v244 = vld [vmem:[%s205 + $0x44] sm:$0x1]
      %v245 = vld [vmem:[%s205 + $0x50] sm:$0x1]
      %v246 = vld [vmem:[%s205 + $0x5c] sm:$0x1]
      %v247 = vld [vmem:[%s205 + $0x68] sm:$0x1]
      %v248 = vld [vmem:[%s205 + $0x74] sm:$0x1]
      %v249 = vld [vmem:[%s205 + $0x80] sm:$0x1]
      %v250 = vld [vmem:[%s205 + $0x8c] sm:$0x1]
      %v251 = vld [vmem:[%s205 + $0x98] sm:$0x1]
      %v252 = vld [vmem:[%s205 + $0xa4] sm:$0x1]
      %v253 = vld [vmem:[%s205 + $0xb0] sm:$0x1]
      %v254 = vld [vmem:[%s205 + $0xbc] sm:$0x1]
      %vm255 = vsmask.f32 3328
      %vm256 = vsmask.f32 7440
      %vm257 = vmor %vm255, %vm256
      %v259 = vshrl.u32 %v206, 16
      %v261 = vrot.slane %v259, 4
      %v262 = vshll.u32 %v206, 16
      %v264 = vrot.slane %v262, 5
      %v265 = vor.u32 %v261, %v264
      %v266 = vrot.slane %v265, 4
      %v268 = vshll.u32 %v207, 16
      %v270 = vrot.slane %v268, 5
      %v271 = vsel %vm257, %v266, %v270
      %v272 = vshrl.u32 %v207, 16
      %v274 = vrot.slane %v272, 4
      %v275 = vor.u32 %v274, %v270
      %v276 = vrot.slane %v275, 4
      %v278 = vshll.u32 %v239, 16
      %v280 = vrot.slane %v278, 5
      %v281 = vsel %vm257, %v276, %v280
      %v283 = vshrl.u32 %v208, 16
      %v285 = vrot.slane %v283, 4
      %v286 = vshll.u32 %v208, 16
      %v288 = vrot.slane %v286, 5
      %v289 = vor.u32 %v285, %v288
      %v290 = vrot.slane %v289, 4
      %v292 = vshll.u32 %v209, 16
      %v294 = vrot.slane %v292, 5
      %v295 = vsel %vm257, %v290, %v294
      %v296 = vshrl.u32 %v209, 16
      %v298 = vrot.slane %v296, 4
      %v299 = vor.u32 %v298, %v294
      %v300 = vrot.slane %v299, 4
      %v302 = vshll.u32 %v240, 16
      %v304 = vrot.slane %v302, 5
      %v305 = vsel %vm257, %v300, %v304
      %v307 = vshrl.u32 %v210, 16
      %v309 = vrot.slane %v307, 4
      %v310 = vshll.u32 %v210, 16
      %v312 = vrot.slane %v310, 5
      %v313 = vor.u32 %v309, %v312
      %v314 = vrot.slane %v313, 4
      %v316 = vshll.u32 %v211, 16
      %v318 = vrot.slane %v316, 5
      %v319 = vsel %vm257, %v314, %v318
      %v320 = vshrl.u32 %v211, 16
      %v322 = vrot.slane %v320, 4
      %v323 = vor.u32 %v322, %v318
      %v324 = vrot.slane %v323, 4
      %v326 = vshll.u32 %v241, 16
      %v328 = vrot.slane %v326, 5
      %v329 = vsel %vm257, %v324, %v328
      %v331 = vshrl.u32 %v212, 16
      %v333 = vrot.slane %v331, 4
      %v334 = vshll.u32 %v212, 16
      %v336 = vrot.slane %v334, 5
      %v337 = vor.u32 %v333, %v336
      %v338 = vrot.slane %v337, 4
      %v340 = vshll.u32 %v213, 16
      %v342 = vrot.slane %v340, 5
      %v343 = vsel %vm257, %v338, %v342
      %v344 = vshrl.u32 %v213, 16
      %v346 = vrot.slane %v344, 4
      %v347 = vor.u32 %v346, %v342
      %v348 = vrot.slane %v347, 4
      %v350 = vshll.u32 %v242, 16
      %v352 = vrot.slane %v350, 5
      %v353 = vsel %vm257, %v348, %v352
      %v355 = vshrl.u32 %v214, 16
      %v357 = vrot.slane %v355, 4
      %v358 = vshll.u32 %v214, 16
      %v360 = vrot.slane %v358, 5
      %v361 = vor.u32 %v357, %v360
      %v362 = vrot.slane %v361, 4
      %v364 = vshll.u32 %v215, 16
      %v366 = vrot.slane %v364, 5
      %v367 = vsel %vm257, %v362, %v366
      %v368 = vshrl.u32 %v215, 16
      %v370 = vrot.slane %v368, 4
      %v371 = vor.u32 %v370, %v366
      %v372 = vrot.slane %v371, 4
      %v374 = vshll.u32 %v243, 16
      %v376 = vrot.slane %v374, 5
      %v377 = vsel %vm257, %v372, %v376
      %v379 = vshrl.u32 %v216, 16
      %v381 = vrot.slane %v379, 4
      %v382 = vshll.u32 %v216, 16
      %v384 = vrot.slane %v382, 5
      %v385 = vor.u32 %v381, %v384
      %v386 = vrot.slane %v385, 4
      %v388 = vshll.u32 %v217, 16
      %v390 = vrot.slane %v388, 5
      %v391 = vsel %vm257, %v386, %v390
      %v392 = vshrl.u32 %v217, 16
      %v394 = vrot.slane %v392, 4
      %v395 = vor.u32 %v394, %v390
      %v396 = vrot.slane %v395, 4
      %v398 = vshll.u32 %v244, 16
      %v400 = vrot.slane %v398, 5
      %v401 = vsel %vm257, %v396, %v400
      %v403 = vshrl.u32 %v218, 16
      %v405 = vrot.slane %v403, 4
      %v406 = vshll.u32 %v218, 16
      %v408 = vrot.slane %v406, 5
      %v409 = vor.u32 %v405, %v408
      %v410 = vrot.slane %v409, 4
      %v412 = vshll.u32 %v219, 16
      %v414 = vrot.slane %v412, 5
      %v415 = vsel %vm257, %v410, %v414
      %v416 = vshrl.u32 %v219, 16
      %v418 = vrot.slane %v416, 4
      %v419 = vor.u32 %v418, %v414
      %v420 = vrot.slane %v419, 4
      %v422 = vshll.u32 %v245, 16
      %v424 = vrot.slane %v422, 5
      %v425 = vsel %vm257, %v420, %v424
      %v427 = vshrl.u32 %v220, 16
      %v429 = vrot.slane %v427, 4
      %v430 = vshll.u32 %v220, 16
      %v432 = vrot.slane %v430, 5
      %v433 = vor.u32 %v429, %v432
      %v434 = vrot.slane %v433, 4
      %v436 = vshll.u32 %v221, 16
      %v438 = vrot.slane %v436, 5
      %v439 = vsel %vm257, %v434, %v438
      %v440 = vshrl.u32 %v221, 16
      %v442 = vrot.slane %v440, 4
      %v443 = vor.u32 %v442, %v438
      %v444 = vrot.slane %v443, 4
      %v446 = vshll.u32 %v246, 16
      %v448 = vrot.slane %v446, 5
      %v449 = vsel %vm257, %v444, %v448
      %v451 = vshrl.u32 %v222, 16
      %v453 = vrot.slane %v451, 4
      %v454 = vshll.u32 %v222, 16
      %v456 = vrot.slane %v454, 5
      %v457 = vor.u32 %v453, %v456
      %v458 = vrot.slane %v457, 4
      %v460 = vshll.u32 %v223, 16
      %v462 = vrot.slane %v460, 5
      %v463 = vsel %vm257, %v458, %v462
      %v464 = vshrl.u32 %v223, 16
      %v466 = vrot.slane %v464, 4
      %v467 = vor.u32 %v466, %v462
      %v468 = vrot.slane %v467, 4
      %v470 = vshll.u32 %v247, 16
      %v472 = vrot.slane %v470, 5
      %v473 = vsel %vm257, %v468, %v472
      %v475 = vshrl.u32 %v224, 16
      %v477 = vrot.slane %v475, 4
      %v478 = vshll.u32 %v224, 16
      %v480 = vrot.slane %v478, 5
      %v481 = vor.u32 %v477, %v480
      %v482 = vrot.slane %v481, 4
      %v484 = vshll.u32 %v225, 16
      %v486 = vrot.slane %v484, 5
      %v487 = vsel %vm257, %v482, %v486
      %v488 = vshrl.u32 %v225, 16
      %v490 = vrot.slane %v488, 4
      %v491 = vor.u32 %v490, %v486
      %v492 = vrot.slane %v491, 4
      %v494 = vshll.u32 %v248, 16
      %v496 = vrot.slane %v494, 5
      %v497 = vsel %vm257, %v492, %v496
      %v499 = vshrl.u32 %v226, 16
      %v501 = vrot.slane %v499, 4
      %v502 = vshll.u32 %v226, 16
      %v504 = vrot.slane %v502, 5
      %v505 = vor.u32 %v501, %v504
      %v506 = vrot.slane %v505, 4
      %v508 = vshll.u32 %v227, 16
      %v510 = vrot.slane %v508, 5
      %v511 = vsel %vm257, %v506, %v510
      %v512 = vshrl.u32 %v227, 16
      %v514 = vrot.slane %v512, 4
      %v515 = vor.u32 %v514, %v510
      %v516 = vrot.slane %v515, 4
      %v518 = vshll.u32 %v249, 16
      %v520 = vrot.slane %v518, 5
      %v521 = vsel %vm257, %v516, %v520
      %v523 = vshrl.u32 %v228, 16
      %v525 = vrot.slane %v523, 4
      %v526 = vshll.u32 %v228, 16
      %v528 = vrot.slane %v526, 5
      %v529 = vor.u32 %v525, %v528
      %v530 = vrot.slane %v529, 4
      %v532 = vshll.u32 %v229, 16
      %v534 = vrot.slane %v532, 5
      %v535 = vsel %vm257, %v530, %v534
      %v536 = vshrl.u32 %v229, 16
      %v538 = vrot.slane %v536, 4
      %v539 = vor.u32 %v538, %v534
      %v540 = vrot.slane %v539, 4
      %v542 = vshll.u32 %v250, 16
      %v544 = vrot.slane %v542, 5
      %v545 = vsel %vm257, %v540, %v544
      %v547 = vshrl.u32 %v230, 16
      %v549 = vrot.slane %v547, 4
      %v550 = vshll.u32 %v230, 16
      %v552 = vrot.slane %v550, 5
      %v553 = vor.u32 %v549, %v552
      %v554 = vrot.slane %v553, 4
      %v556 = vshll.u32 %v231, 16
      %v558 = vrot.slane %v556, 5
      %v559 = vsel %vm257, %v554, %v558
      %v560 = vshrl.u32 %v231, 16
      %v562 = vrot.slane %v560, 4
      %v563 = vor.u32 %v562, %v558
      %v564 = vrot.slane %v563, 4
      %v566 = vshll.u32 %v251, 16
      %v568 = vrot.slane %v566, 5
      %v569 = vsel %vm257, %v564, %v568
      %v571 = vshrl.u32 %v232, 16
      %v573 = vrot.slane %v571, 4
      %v574 = vshll.u32 %v232, 16
      %v576 = vrot.slane %v574, 5
      %v577 = vor.u32 %v573, %v576
      %v578 = vrot.slane %v577, 4
      %v580 = vshll.u32 %v233, 16
      %v582 = vrot.slane %v580, 5
      %v583 = vsel %vm257, %v578, %v582
      %v584 = vshrl.u32 %v233, 16
      %v586 = vrot.slane %v584, 4
      %v587 = vor.u32 %v586, %v582
      %v588 = vrot.slane %v587, 4
      %v590 = vshll.u32 %v252, 16
      %v592 = vrot.slane %v590, 5
      %v593 = vsel %vm257, %v588, %v592
      %v595 = vshrl.u32 %v234, 16
      %v597 = vrot.slane %v595, 4
      %v598 = vshll.u32 %v234, 16
      %v600 = vrot.slane %v598, 5
      %v601 = vor.u32 %v597, %v600
      %v602 = vrot.slane %v601, 4
      %v604 = vshll.u32 %v235, 16
      %v606 = vrot.slane %v604, 5
      %v607 = vsel %vm257, %v602, %v606
      %v608 = vshrl.u32 %v235, 16
      %v610 = vrot.slane %v608, 4
      %v611 = vor.u32 %v610, %v606
      %v612 = vrot.slane %v611, 4
      %v614 = vshll.u32 %v253, 16
      %v616 = vrot.slane %v614, 5
      %v617 = vsel %vm257, %v612, %v616
      %v619 = vshrl.u32 %v236, 16
      %v621 = vrot.slane %v619, 4
      %v622 = vshll.u32 %v236, 16
      %v624 = vrot.slane %v622, 5
      %v625 = vor.u32 %v621, %v624
      %v626 = vrot.slane %v625, 4
      %v628 = vshll.u32 %v237, 16
      %v630 = vrot.slane %v628, 5
      %v631 = vsel %vm257, %v626, %v630
      %v632 = vshrl.u32 %v237, 16
      %v634 = vrot.slane %v632, 4
      %v635 = vor.u32 %v634, %v630
      %v636 = vrot.slane %v635, 4
      %v638 = vshll.u32 %v254, 16
      %v640 = vrot.slane %v638, 5
      %v641 = vsel %vm257, %v636, %v640
      %s642 = scalar_lea.vmem %s186, 2
      %v643 = vld [vmem:[%s642] sm:$0x3]
      %v644 = vunpack.c.l.b16 %v271
      %v645 = vunpack.c.l.b16 %v281
      %v646 = vunpack.c.l.b16 %v295
      %v647 = vunpack.c.l.b16 %v305
      %v648 = vunpack.c.l.b16 %v319
      %v649 = vunpack.c.l.b16 %v329
      %v650 = vunpack.c.l.b16 %v343
      %v651 = vunpack.c.l.b16 %v353
      %v652 = vunpack.c.l.b16 %v367
      %v653 = vunpack.c.l.b16 %v377
      %v654 = vunpack.c.l.b16 %v391
      %v655 = vunpack.c.l.b16 %v401
      %v656 = vunpack.c.l.b16 %v415
      %v657 = vunpack.c.l.b16 %v425
      %v658 = vunpack.c.l.b16 %v439
      %v659 = vunpack.c.l.b16 %v449
      %v660 = vunpack.c.l.b16 %v463
      %v661 = vunpack.c.l.b16 %v473
      %v662 = vunpack.c.l.b16 %v487
      %v663 = vunpack.c.l.b16 %v497
      %v664 = vunpack.c.l.b16 %v511
      %v665 = vunpack.c.l.b16 %v521
      %v666 = vunpack.c.l.b16 %v535
      %v667 = vunpack.c.l.b16 %v545
      %v668 = vunpack.c.l.b16 %v559
      %v669 = vunpack.c.l.b16 %v569
      %v670 = vunpack.c.l.b16 %v583
      %v671 = vunpack.c.l.b16 %v593
      %v672 = vunpack.c.l.b16 %v607
      %v673 = vunpack.c.l.b16 %v617
      %v674 = vunpack.c.l.b16 %v631
      %v675 = vunpack.c.l.b16 %v641
      %v676 = vpack.c.b16 %v645, %v644
      %v677 = vpack.c.b16 %v647, %v646
      %v678 = vpack.c.b16 %v649, %v648
      %v679 = vpack.c.b16 %v651, %v650
      %v680 = vpack.c.b16 %v653, %v652
      %v681 = vpack.c.b16 %v655, %v654
      %v682 = vpack.c.b16 %v657, %v656
      %v683 = vpack.c.b16 %v659, %v658
      %v684 = vpack.c.b16 %v661, %v660
      %v685 = vpack.c.b16 %v663, %v662
      %v686 = vpack.c.b16 %v665, %v664
      %v687 = vpack.c.b16 %v667, %v666
      %v688 = vpack.c.b16 %v669, %v668
      %v689 = vpack.c.b16 %v671, %v670
      %v690 = vpack.c.b16 %v673, %v672
      %v691 = vpack.c.b16 %v675, %v674
      %vm692 = vcmask 31744
      %v694 = vsel %vm692, %v676, 0
      %v697 = vsel %vm692, %v677, 0
      %v700 = vsel %vm692, %v678, 0
      %v703 = vsel %vm692, %v679, 0
      %v706 = vsel %vm692, %v680, 0
      %v709 = vsel %vm692, %v681, 0
      %v712 = vsel %vm692, %v682, 0
      %v715 = vsel %vm692, %v683, 0
      %v718 = vsel %vm692, %v684, 0
      %v721 = vsel %vm692, %v685, 0
      %v724 = vsel %vm692, %v686, 0
      %v727 = vsel %vm692, %v687, 0
      %v730 = vsel %vm692, %v688, 0
      %v733 = vsel %vm692, %v689, 0
      %v736 = vsel %vm692, %v690, 0
      %v739 = vsel %vm692, %v691, 0
      %vm741 = vcmask 1041408
      %v743 = vsel %vm741, %v643, 0
      %745 = vmatpush.bf16.msra.mxu0 0
      %746 = vmatpush.bf16.msra.mxu0 0
      %747 = vmatpush.bf16.msra.mxu0 0
      %748 = vmatpush.bf16.msra.mxu0 0
      %749 = vmatpush.bf16.msra.mxu0 0
      %750 = vmatpush.bf16.msra.mxu0 0
      %751 = vmatpush.bf16.msra.mxu0 0
      %752 = vmatpush.bf16.msra.mxu0 %v743
      %753 = vmatmul.bf16.gmra.mxu0 %v694
      %v754 = vpop.f32.mrf.mxu0
      %v755 = vadd.f32 0.0, %v754
      %v756 = vpop.f32.mrf.mxu0
      %v757 = vadd.f32 0.0, %v756
      %758 = vmatmul.bf16.gmra.mxu0 %v697
      %v759 = vpop.f32.mrf.mxu0
      %v760 = vadd.f32 0.0, %v759
      %v761 = vpop.f32.mrf.mxu0
      %v762 = vadd.f32 0.0, %v761
      %763 = vmatmul.bf16.gmra.mxu0 %v700
      %v764 = vpop.f32.mrf.mxu0
      %v765 = vadd.f32 0.0, %v764
      %v766 = vpop.f32.mrf.mxu0
      %v767 = vadd.f32 0.0, %v766
      %768 = vmatmul.bf16.gmra.mxu0 %v703
      %v769 = vpop.f32.mrf.mxu0
      %v770 = vadd.f32 0.0, %v769
      %v771 = vpop.f32.mrf.mxu0
      %v772 = vadd.f32 0.0, %v771
      %773 = vmatmul.bf16.gmra.mxu0 %v706
      %v774 = vpop.f32.mrf.mxu0
      %v775 = vadd.f32 0.0, %v774
      %v776 = vpop.f32.mrf.mxu0
      %v777 = vadd.f32 0.0, %v776
      %778 = vmatmul.bf16.gmra.mxu0 %v709
      %v779 = vpop.f32.mrf.mxu0
      %v780 = vadd.f32 0.0, %v779
      %v781 = vpop.f32.mrf.mxu0
      %v782 = vadd.f32 0.0, %v781
      %783 = vmatmul.bf16.gmra.mxu0 %v712
      %v784 = vpop.f32.mrf.mxu0
      %v785 = vadd.f32 0.0, %v784
      %v786 = vpop.f32.mrf.mxu0
      %v787 = vadd.f32 0.0, %v786
      %788 = vmatmul.bf16.gmra.mxu0 %v715
      %v789 = vpop.f32.mrf.mxu0
      %v790 = vadd.f32 0.0, %v789
      %v791 = vpop.f32.mrf.mxu0
      %v792 = vadd.f32 0.0, %v791
      %793 = vmatmul.bf16.gmra.mxu0 %v718
      %v794 = vpop.f32.mrf.mxu0
      %v795 = vadd.f32 0.0, %v794
      %v796 = vpop.f32.mrf.mxu0
      %v797 = vadd.f32 0.0, %v796
      %798 = vmatmul.bf16.gmra.mxu0 %v721
      %v799 = vpop.f32.mrf.mxu0
      %v800 = vadd.f32 0.0, %v799
      %v801 = vpop.f32.mrf.mxu0
      %v802 = vadd.f32 0.0, %v801
      %803 = vmatmul.bf16.gmra.mxu0 %v724
      %v804 = vpop.f32.mrf.mxu0
      %v805 = vadd.f32 0.0, %v804
      %v806 = vpop.f32.mrf.mxu0
      %v807 = vadd.f32 0.0, %v806
      %808 = vmatmul.bf16.gmra.mxu0 %v727
      %v809 = vpop.f32.mrf.mxu0
      %v810 = vadd.f32 0.0, %v809
      %v811 = vpop.f32.mrf.mxu0
      %v812 = vadd.f32 0.0, %v811
      %813 = vmatmul.bf16.gmra.mxu0 %v730
      %v814 = vpop.f32.mrf.mxu0
      %v815 = vadd.f32 0.0, %v814
      %v816 = vpop.f32.mrf.mxu0
      %v817 = vadd.f32 0.0, %v816
      %818 = vmatmul.bf16.gmra.mxu0 %v733
      %v819 = vpop.f32.mrf.mxu0
      %v820 = vadd.f32 0.0, %v819
      %v821 = vpop.f32.mrf.mxu0
      %v822 = vadd.f32 0.0, %v821
      %823 = vmatmul.bf16.gmra.mxu0 %v736
      %v824 = vpop.f32.mrf.mxu0
      %v825 = vadd.f32 0.0, %v824
      %v826 = vpop.f32.mrf.mxu0
      %v827 = vadd.f32 0.0, %v826
      %828 = vmatmul.bf16.gmra.mxu0 %v739
      %v829 = vpop.f32.mrf.mxu0
      %v830 = vadd.f32 0.0, %v829
      %v831 = vpop.f32.mrf.mxu0
      %v832 = vadd.f32 0.0, %v831
      %833 = vdwg.mxu0
      %v866 = vunpack.c.l.b16 %v206
      %v867 = vunpack.c.l.b16 %v207
      %v868 = vunpack.c.l.b16 %v208
      %v869 = vunpack.c.l.b16 %v209
      %v870 = vunpack.c.l.b16 %v210
      %v871 = vunpack.c.l.b16 %v211
      %v872 = vunpack.c.l.b16 %v212
      %v873 = vunpack.c.l.b16 %v213
      %v874 = vunpack.c.l.b16 %v214
      %v875 = vunpack.c.l.b16 %v215
      %v876 = vunpack.c.l.b16 %v216
      %v877 = vunpack.c.l.b16 %v217
      %v878 = vunpack.c.l.b16 %v218
      %v879 = vunpack.c.l.b16 %v219
      %v880 = vunpack.c.l.b16 %v220
      %v881 = vunpack.c.l.b16 %v221
      %v882 = vunpack.c.l.b16 %v222
      %v883 = vunpack.c.l.b16 %v223
      %v884 = vunpack.c.l.b16 %v224
      %v885 = vunpack.c.l.b16 %v225
      %v886 = vunpack.c.l.b16 %v226
      %v887 = vunpack.c.l.b16 %v227
      %v888 = vunpack.c.l.b16 %v228
      %v889 = vunpack.c.l.b16 %v229
      %v890 = vunpack.c.l.b16 %v230
      %v891 = vunpack.c.l.b16 %v231
      %v892 = vunpack.c.l.b16 %v232
      %v893 = vunpack.c.l.b16 %v233
      %v894 = vunpack.c.l.b16 %v234
      %v895 = vunpack.c.l.b16 %v235
      %v896 = vunpack.c.l.b16 %v236
      %v897 = vunpack.c.l.b16 %v237
      %v898 = vpack.c.b16 %v867, %v866
      %v899 = vpack.c.b16 %v869, %v868
      %v900 = vpack.c.b16 %v871, %v870
      %v901 = vpack.c.b16 %v873, %v872
      %v902 = vpack.c.b16 %v875, %v874
      %v903 = vpack.c.b16 %v877, %v876
      %v904 = vpack.c.b16 %v879, %v878
      %v905 = vpack.c.b16 %v881, %v880
      %v906 = vpack.c.b16 %v883, %v882
      %v907 = vpack.c.b16 %v885, %v884
      %v908 = vpack.c.b16 %v887, %v886
      %v909 = vpack.c.b16 %v889, %v888
      %v910 = vpack.c.b16 %v891, %v890
      %v911 = vpack.c.b16 %v893, %v892
      %v912 = vpack.c.b16 %v895, %v894
      %v913 = vpack.c.b16 %v897, %v896
      %v915 = vsel %vm692, %v898, 0
      %v918 = vsel %vm692, %v899, 0
      %v921 = vsel %vm692, %v900, 0
      %v924 = vsel %vm692, %v901, 0
      %v927 = vsel %vm692, %v902, 0
      %v930 = vsel %vm692, %v903, 0
      %v933 = vsel %vm692, %v904, 0
      %v936 = vsel %vm692, %v905, 0
      %v939 = vsel %vm692, %v906, 0
      %v942 = vsel %vm692, %v907, 0
      %v945 = vsel %vm692, %v908, 0
      %v948 = vsel %vm692, %v909, 0
      %v951 = vsel %vm692, %v910, 0
      %v954 = vsel %vm692, %v911, 0
      %v957 = vsel %vm692, %v912, 0
      %v960 = vsel %vm692, %v913, 0
      %v963 = vsel %vm741, %v238, 0
      %965 = vmatpush.bf16.msra.mxu0 0
      %966 = vmatpush.bf16.msra.mxu0 0
      %967 = vmatpush.bf16.msra.mxu0 0
      %968 = vmatpush.bf16.msra.mxu0 0
      %969 = vmatpush.bf16.msra.mxu0 0
      %970 = vmatpush.bf16.msra.mxu0 0
      %971 = vmatpush.bf16.msra.mxu0 0
      %972 = vmatpush.bf16.msra.mxu0 %v963
      %973 = vmatmul.bf16.gmra.mxu0 %v915
      %v974 = vpop.f32.mrf.mxu0
      %v975 = vadd.f32 %v755, %v974
      %v976 = vpop.f32.mrf.mxu0
      %v977 = vadd.f32 %v757, %v976
      %978 = vmatmul.bf16.gmra.mxu0 %v918
      %v979 = vpop.f32.mrf.mxu0
      %v980 = vadd.f32 %v760, %v979
      %v981 = vpop.f32.mrf.mxu0
      %v982 = vadd.f32 %v762, %v981
      %983 = vmatmul.bf16.gmra.mxu0 %v921
      %v984 = vpop.f32.mrf.mxu0
      %v985 = vadd.f32 %v765, %v984
      %v986 = vpop.f32.mrf.mxu0
      %v987 = vadd.f32 %v767, %v986
      %988 = vmatmul.bf16.gmra.mxu0 %v924
      %v989 = vpop.f32.mrf.mxu0
      %v990 = vadd.f32 %v770, %v989
      %v991 = vpop.f32.mrf.mxu0
      %v992 = vadd.f32 %v772, %v991
      %993 = vmatmul.bf16.gmra.mxu0 %v927
      %v994 = vpop.f32.mrf.mxu0
      %v995 = vadd.f32 %v775, %v994
      %v996 = vpop.f32.mrf.mxu0
      %v997 = vadd.f32 %v777, %v996
      %998 = vmatmul.bf16.gmra.mxu0 %v930
      %v999 = vpop.f32.mrf.mxu0
      %v1000 = vadd.f32 %v780, %v999
      %v1001 = vpop.f32.mrf.mxu0
      %v1002 = vadd.f32 %v782, %v1001
      %1003 = vmatmul.bf16.gmra.mxu0 %v933
      %v1004 = vpop.f32.mrf.mxu0
      %v1005 = vadd.f32 %v785, %v1004
      %v1006 = vpop.f32.mrf.mxu0
      %v1007 = vadd.f32 %v787, %v1006
      %1008 = vmatmul.bf16.gmra.mxu0 %v936
      %v1009 = vpop.f32.mrf.mxu0
      %v1010 = vadd.f32 %v790, %v1009
      %v1011 = vpop.f32.mrf.mxu0
      %v1012 = vadd.f32 %v792, %v1011
      %1013 = vmatmul.bf16.gmra.mxu0 %v939
      %v1014 = vpop.f32.mrf.mxu0
      %v1015 = vadd.f32 %v795, %v1014
      %v1016 = vpop.f32.mrf.mxu0
      %v1017 = vadd.f32 %v797, %v1016
      %1018 = vmatmul.bf16.gmra.mxu0 %v942
      %v1019 = vpop.f32.mrf.mxu0
      %v1020 = vadd.f32 %v800, %v1019
      %v1021 = vpop.f32.mrf.mxu0
      %v1022 = vadd.f32 %v802, %v1021
      %1023 = vmatmul.bf16.gmra.mxu0 %v945
      %v1024 = vpop.f32.mrf.mxu0
      %v1025 = vadd.f32 %v805, %v1024
      %v1026 = vpop.f32.mrf.mxu0
      %v1027 = vadd.f32 %v807, %v1026
      %1028 = vmatmul.bf16.gmra.mxu0 %v948
      %v1029 = vpop.f32.mrf.mxu0
      %v1030 = vadd.f32 %v810, %v1029
      %v1031 = vpop.f32.mrf.mxu0
      %v1032 = vadd.f32 %v812, %v1031
      %1033 = vmatmul.bf16.gmra.mxu0 %v951
      %v1034 = vpop.f32.mrf.mxu0
      %v1035 = vadd.f32 %v815, %v1034
      %v1036 = vpop.f32.mrf.mxu0
      %v1037 = vadd.f32 %v817, %v1036
      %1038 = vmatmul.bf16.gmra.mxu0 %v954
      %v1039 = vpop.f32.mrf.mxu0
      %v1040 = vadd.f32 %v820, %v1039
      %v1041 = vpop.f32.mrf.mxu0
      %v1042 = vadd.f32 %v822, %v1041
      %1043 = vmatmul.bf16.gmra.mxu0 %v957
      %v1044 = vpop.f32.mrf.mxu0
      %v1045 = vadd.f32 %v825, %v1044
      %v1046 = vpop.f32.mrf.mxu0
      %v1047 = vadd.f32 %v827, %v1046
      %1048 = vmatmul.bf16.gmra.mxu0 %v960
      %v1049 = vpop.f32.mrf.mxu0
      %v1050 = vadd.f32 %v830, %v1049
      %v1051 = vpop.f32.mrf.mxu0
      %v1052 = vadd.f32 %v832, %v1051
      %1053 = vdwg.mxu0
      %v1054 = vld [vmem:[%s205] sm:$0xe]
      %v1055 = vld [vmem:[%s205 + $0xc] sm:$0xe]
      %v1056 = vld [vmem:[%s205 + $0x18] sm:$0xe]
      %v1057 = vld [vmem:[%s205 + $0x24] sm:$0xe]
      %v1058 = vld [vmem:[%s205 + $0x30] sm:$0xe]
      %v1059 = vld [vmem:[%s205 + $0x3c] sm:$0xe]
      %v1060 = vld [vmem:[%s205 + $0x48] sm:$0xe]
      %v1061 = vld [vmem:[%s205 + $0x54] sm:$0xe]
      %v1062 = vld [vmem:[%s205 + $0x60] sm:$0xe]
      %v1063 = vld [vmem:[%s205 + $0x6c] sm:$0xe]
      %v1064 = vld [vmem:[%s205 + $0x78] sm:$0xe]
      %v1065 = vld [vmem:[%s205 + $0x84] sm:$0xe]
      %v1066 = vld [vmem:[%s205 + $0x90] sm:$0xe]
      %v1067 = vld [vmem:[%s205 + $0x9c] sm:$0xe]
      %v1068 = vld [vmem:[%s205 + $0xa8] sm:$0xe]
      %v1069 = vld [vmem:[%s205 + $0xb4] sm:$0xe]
      %vm1102 = vcmask 1042432
      %vm1103 = vcmask 1046532
      %vm1104 = vmor %vm1102, %vm1103
      %v1105 = vrot.slane %v1054, 5
      %v1106 = vrot.slane %v1105, 4
      %v1107 = vrot.slane %v207, 5
      %v1108 = vsel %vm1104, %v1106, %v1107
      %v1109 = vrot.slane %v1107, 4
      %v1110 = vrot.slane %v239, 5
      %v1111 = vsel %vm1104, %v1109, %v1110
      %v1112 = vrot.slane %v1055, 5
      %v1113 = vrot.slane %v1112, 4
      %v1114 = vrot.slane %v209, 5
      %v1115 = vsel %vm1104, %v1113, %v1114
      %v1116 = vrot.slane %v1114, 4
      %v1117 = vrot.slane %v240, 5
      %v1118 = vsel %vm1104, %v1116, %v1117
      %v1119 = vrot.slane %v1056, 5
      %v1120 = vrot.slane %v1119, 4
      %v1121 = vrot.slane %v211, 5
      %v1122 = vsel %vm1104, %v1120, %v1121
      %v1123 = vrot.slane %v1121, 4
      %v1124 = vrot.slane %v241, 5
      %v1125 = vsel %vm1104, %v1123, %v1124
      %v1126 = vrot.slane %v1057, 5
      %v1127 = vrot.slane %v1126, 4
      %v1128 = vrot.slane %v213, 5
      %v1129 = vsel %vm1104, %v1127, %v1128
      %v1130 = vrot.slane %v1128, 4
      %v1131 = vrot.slane %v242, 5
      %v1132 = vsel %vm1104, %v1130, %v1131
      %v1133 = vrot.slane %v1058, 5
      %v1134 = vrot.slane %v1133, 4
      %v1135 = vrot.slane %v215, 5
      %v1136 = vsel %vm1104, %v1134, %v1135
      %v1137 = vrot.slane %v1135, 4
      %v1138 = vrot.slane %v243, 5
      %v1139 = vsel %vm1104, %v1137, %v1138
      %v1140 = vrot.slane %v1059, 5
      %v1141 = vrot.slane %v1140, 4
      %v1142 = vrot.slane %v217, 5
      %v1143 = vsel %vm1104, %v1141, %v1142
      %v1144 = vrot.slane %v1142, 4
      %v1145 = vrot.slane %v244, 5
      %v1146 = vsel %vm1104, %v1144, %v1145
      %v1147 = vrot.slane %v1060, 5
      %v1148 = vrot.slane %v1147, 4
      %v1149 = vrot.slane %v219, 5
      %v1150 = vsel %vm1104, %v1148, %v1149
      %v1151 = vrot.slane %v1149, 4
      %v1152 = vrot.slane %v245, 5
      %v1153 = vsel %vm1104, %v1151, %v1152
      %v1154 = vrot.slane %v1061, 5
      %v1155 = vrot.slane %v1154, 4
      %v1156 = vrot.slane %v221, 5
      %v1157 = vsel %vm1104, %v1155, %v1156
      %v1158 = vrot.slane %v1156, 4
      %v1159 = vrot.slane %v246, 5
      %v1160 = vsel %vm1104, %v1158, %v1159
      %v1161 = vrot.slane %v1062, 5
      %v1162 = vrot.slane %v1161, 4
      %v1163 = vrot.slane %v223, 5
      %v1164 = vsel %vm1104, %v1162, %v1163
      %v1165 = vrot.slane %v1163, 4
      %v1166 = vrot.slane %v247, 5
      %v1167 = vsel %vm1104, %v1165, %v1166
      %v1168 = vrot.slane %v1063, 5
      %v1169 = vrot.slane %v1168, 4
      %v1170 = vrot.slane %v225, 5
      %v1171 = vsel %vm1104, %v1169, %v1170
      %v1172 = vrot.slane %v1170, 4
      %v1173 = vrot.slane %v248, 5
      %v1174 = vsel %vm1104, %v1172, %v1173
      %v1175 = vrot.slane %v1064, 5
      %v1176 = vrot.slane %v1175, 4
      %v1177 = vrot.slane %v227, 5
      %v1178 = vsel %vm1104, %v1176, %v1177
      %v1179 = vrot.slane %v1177, 4
      %v1180 = vrot.slane %v249, 5
      %v1181 = vsel %vm1104, %v1179, %v1180
      %v1182 = vrot.slane %v1065, 5
      %v1183 = vrot.slane %v1182, 4
      %v1184 = vrot.slane %v229, 5
      %v1185 = vsel %vm1104, %v1183, %v1184
      %v1186 = vrot.slane %v1184, 4
      %v1187 = vrot.slane %v250, 5
      %v1188 = vsel %vm1104, %v1186, %v1187
      %v1189 = vrot.slane %v1066, 5
      %v1190 = vrot.slane %v1189, 4
      %v1191 = vrot.slane %v231, 5
      %v1192 = vsel %vm1104, %v1190, %v1191
      %v1193 = vrot.slane %v1191, 4
      %v1194 = vrot.slane %v251, 5
      %v1195 = vsel %vm1104, %v1193, %v1194
      %v1196 = vrot.slane %v1067, 5
      %v1197 = vrot.slane %v1196, 4
      %v1198 = vrot.slane %v233, 5
      %v1199 = vsel %vm1104, %v1197, %v1198
      %v1200 = vrot.slane %v1198, 4
      %v1201 = vrot.slane %v252, 5
      %v1202 = vsel %vm1104, %v1200, %v1201
      %v1203 = vrot.slane %v1068, 5
      %v1204 = vrot.slane %v1203, 4
      %v1205 = vrot.slane %v235, 5
      %v1206 = vsel %vm1104, %v1204, %v1205
      %v1207 = vrot.slane %v1205, 4
      %v1208 = vrot.slane %v253, 5
      %v1209 = vsel %vm1104, %v1207, %v1208
      %v1210 = vrot.slane %v1069, 5
      %v1211 = vrot.slane %v1210, 4
      %v1212 = vrot.slane %v237, 5
      %v1213 = vsel %vm1104, %v1211, %v1212
      %v1214 = vrot.slane %v1212, 4
      %v1215 = vrot.slane %v254, 5
      %v1216 = vsel %vm1104, %v1214, %v1215
      %s1217 = scalar_lea.vmem %s186, 4
      %v1218 = vld [vmem:[%s1217] sm:$0x3]
      %v1219 = vunpack.c.l.b16 %v1108
      %v1220 = vunpack.c.l.b16 %v1111
      %v1221 = vunpack.c.l.b16 %v1115
      %v1222 = vunpack.c.l.b16 %v1118
      %v1223 = vunpack.c.l.b16 %v1122
      %v1224 = vunpack.c.l.b16 %v1125
      %v1225 = vunpack.c.l.b16 %v1129
      %v1226 = vunpack.c.l.b16 %v1132
      %v1227 = vunpack.c.l.b16 %v1136
      %v1228 = vunpack.c.l.b16 %v1139
      %v1229 = vunpack.c.l.b16 %v1143
      %v1230 = vunpack.c.l.b16 %v1146
      %v1231 = vunpack.c.l.b16 %v1150
      %v1232 = vunpack.c.l.b16 %v1153
      %v1233 = vunpack.c.l.b16 %v1157
      %v1234 = vunpack.c.l.b16 %v1160
      %v1235 = vunpack.c.l.b16 %v1164
      %v1236 = vunpack.c.l.b16 %v1167
      %v1237 = vunpack.c.l.b16 %v1171
      %v1238 = vunpack.c.l.b16 %v1174
      %v1239 = vunpack.c.l.b16 %v1178
      %v1240 = vunpack.c.l.b16 %v1181
      %v1241 = vunpack.c.l.b16 %v1185
      %v1242 = vunpack.c.l.b16 %v1188
      %v1243 = vunpack.c.l.b16 %v1192
      %v1244 = vunpack.c.l.b16 %v1195
      %v1245 = vunpack.c.l.b16 %v1199
      %v1246 = vunpack.c.l.b16 %v1202
      %v1247 = vunpack.c.l.b16 %v1206
      %v1248 = vunpack.c.l.b16 %v1209
      %v1249 = vunpack.c.l.b16 %v1213
      %v1250 = vunpack.c.l.b16 %v1216
      %v1251 = vpack.c.b16 %v1220, %v1219
      %v1252 = vpack.c.b16 %v1222, %v1221
      %v1253 = vpack.c.b16 %v1224, %v1223
      %v1254 = vpack.c.b16 %v1226, %v1225
      %v1255 = vpack.c.b16 %v1228, %v1227
      %v1256 = vpack.c.b16 %v1230, %v1229
      %v1257 = vpack.c.b16 %v1232, %v1231
      %v1258 = vpack.c.b16 %v1234, %v1233
      %v1259 = vpack.c.b16 %v1236, %v1235
      %v1260 = vpack.c.b16 %v1238, %v1237
      %v1261 = vpack.c.b16 %v1240, %v1239
      %v1262 = vpack.c.b16 %v1242, %v1241
      %v1263 = vpack.c.b16 %v1244, %v1243
      %v1264 = vpack.c.b16 %v1246, %v1245
      %v1265 = vpack.c.b16 %v1248, %v1247
      %v1266 = vpack.c.b16 %v1250, %v1249
      %v1268 = vsel %vm692, %v1251, 0
      %v1271 = vsel %vm692, %v1252, 0
      %v1274 = vsel %vm692, %v1253, 0
      %v1277 = vsel %vm692, %v1254, 0
      %v1280 = vsel %vm692, %v1255, 0
      %v1283 = vsel %vm692, %v1256, 0
      %v1286 = vsel %vm692, %v1257, 0
      %v1289 = vsel %vm692, %v1258, 0
      %v1292 = vsel %vm692, %v1259, 0
      %v1295 = vsel %vm692, %v1260, 0
      %v1298 = vsel %vm692, %v1261, 0
      %v1301 = vsel %vm692, %v1262, 0
      %v1304 = vsel %vm692, %v1263, 0
      %v1307 = vsel %vm692, %v1264, 0
      %v1310 = vsel %vm692, %v1265, 0
      %v1313 = vsel %vm692, %v1266, 0
      %v1316 = vsel %vm741, %v1218, 0
      %1318 = vmatpush.bf16.msra.mxu0 0
      %1319 = vmatpush.bf16.msra.mxu0 0
      %1320 = vmatpush.bf16.msra.mxu0 0
      %1321 = vmatpush.bf16.msra.mxu0 0
      %1322 = vmatpush.bf16.msra.mxu0 0
      %1323 = vmatpush.bf16.msra.mxu0 0
      %1324 = vmatpush.bf16.msra.mxu0 0
      %1325 = vmatpush.bf16.msra.mxu0 %v1316
      %1326 = vmatmul.bf16.gmra.mxu0 %v1268
      %v1327 = vpop.f32.mrf.mxu0
      %v1328 = vadd.f32 0.0, %v1327
      %v1329 = vpop.f32.mrf.mxu0
      %v1330 = vadd.f32 0.0, %v1329
      %1331 = vmatmul.bf16.gmra.mxu0 %v1271
      %v1332 = vpop.f32.mrf.mxu0
      %v1333 = vadd.f32 0.0, %v1332
      %v1334 = vpop.f32.mrf.mxu0
      %v1335 = vadd.f32 0.0, %v1334
      %1336 = vmatmul.bf16.gmra.mxu0 %v1274
      %v1337 = vpop.f32.mrf.mxu0
      %v1338 = vadd.f32 0.0, %v1337
      %v1339 = vpop.f32.mrf.mxu0
      %v1340 = vadd.f32 0.0, %v1339
      %1341 = vmatmul.bf16.gmra.mxu0 %v1277
      %v1342 = vpop.f32.mrf.mxu0
      %v1343 = vadd.f32 0.0, %v1342
      %v1344 = vpop.f32.mrf.mxu0
      %v1345 = vadd.f32 0.0, %v1344
      %1346 = vmatmul.bf16.gmra.mxu0 %v1280
      %v1347 = vpop.f32.mrf.mxu0
      %v1348 = vadd.f32 0.0, %v1347
      %v1349 = vpop.f32.mrf.mxu0
      %v1350 = vadd.f32 0.0, %v1349
      %1351 = vmatmul.bf16.gmra.mxu0 %v1283
      %v1352 = vpop.f32.mrf.mxu0
      %v1353 = vadd.f32 0.0, %v1352
      %v1354 = vpop.f32.mrf.mxu0
      %v1355 = vadd.f32 0.0, %v1354
      %1356 = vmatmul.bf16.gmra.mxu0 %v1286
      %v1357 = vpop.f32.mrf.mxu0
      %v1358 = vadd.f32 0.0, %v1357
      %v1359 = vpop.f32.mrf.mxu0
      %v1360 = vadd.f32 0.0, %v1359
      %1361 = vmatmul.bf16.gmra.mxu0 %v1289
      %v1362 = vpop.f32.mrf.mxu0
      %v1363 = vadd.f32 0.0, %v1362
      %v1364 = vpop.f32.mrf.mxu0
      %v1365 = vadd.f32 0.0, %v1364
      %1366 = vmatmul.bf16.gmra.mxu0 %v1292
      %v1367 = vpop.f32.mrf.mxu0
      %v1368 = vadd.f32 0.0, %v1367
      %v1369 = vpop.f32.mrf.mxu0
      %v1370 = vadd.f32 0.0, %v1369
      %1371 = vmatmul.bf16.gmra.mxu0 %v1295
      %v1372 = vpop.f32.mrf.mxu0
      %v1373 = vadd.f32 0.0, %v1372
      %v1374 = vpop.f32.mrf.mxu0
      %v1375 = vadd.f32 0.0, %v1374
      %1376 = vmatmul.bf16.gmra.mxu0 %v1298
      %v1377 = vpop.f32.mrf.mxu0
      %v1378 = vadd.f32 0.0, %v1377
      %v1379 = vpop.f32.mrf.mxu0
      %v1380 = vadd.f32 0.0, %v1379
      %1381 = vmatmul.bf16.gmra.mxu0 %v1301
      %v1382 = vpop.f32.mrf.mxu0
      %v1383 = vadd.f32 0.0, %v1382
      %v1384 = vpop.f32.mrf.mxu0
      %v1385 = vadd.f32 0.0, %v1384
      %1386 = vmatmul.bf16.gmra.mxu0 %v1304
      %v1387 = vpop.f32.mrf.mxu0
      %v1388 = vadd.f32 0.0, %v1387
      %v1389 = vpop.f32.mrf.mxu0
      %v1390 = vadd.f32 0.0, %v1389
      %1391 = vmatmul.bf16.gmra.mxu0 %v1307
      %v1392 = vpop.f32.mrf.mxu0
      %v1393 = vadd.f32 0.0, %v1392
      %v1394 = vpop.f32.mrf.mxu0
      %v1395 = vadd.f32 0.0, %v1394
      %1396 = vmatmul.bf16.gmra.mxu0 %v1310
      %v1397 = vpop.f32.mrf.mxu0
      %v1398 = vadd.f32 0.0, %v1397
      %v1399 = vpop.f32.mrf.mxu0
      %v1400 = vadd.f32 0.0, %v1399
      %1401 = vmatmul.bf16.gmra.mxu0 %v1313
      %v1402 = vpop.f32.mrf.mxu0
      %v1403 = vadd.f32 0.0, %v1402
      %v1404 = vpop.f32.mrf.mxu0
      %v1405 = vadd.f32 0.0, %v1404
      %1406 = vdwg.mxu0
      %v1407 = vadd.f32 %v975, %v1328
      %v1408 = vadd.f32 %v977, %v1330
      %v1409 = vadd.f32 %v980, %v1333
      %v1410 = vadd.f32 %v982, %v1335
      %v1411 = vadd.f32 %v985, %v1338
      %v1412 = vadd.f32 %v987, %v1340
      %v1413 = vadd.f32 %v990, %v1343
      %v1414 = vadd.f32 %v992, %v1345
      %v1415 = vadd.f32 %v995, %v1348
      %v1416 = vadd.f32 %v997, %v1350
      %v1417 = vadd.f32 %v1000, %v1353
      %v1418 = vadd.f32 %v1002, %v1355
      %v1419 = vadd.f32 %v1005, %v1358
      %v1420 = vadd.f32 %v1007, %v1360
      %v1421 = vadd.f32 %v1010, %v1363
      %v1422 = vadd.f32 %v1012, %v1365
      %v1423 = vadd.f32 %v1015, %v1368
      %v1424 = vadd.f32 %v1017, %v1370
      %v1425 = vadd.f32 %v1020, %v1373
      %v1426 = vadd.f32 %v1022, %v1375
      %v1427 = vadd.f32 %v1025, %v1378
      %v1428 = vadd.f32 %v1027, %v1380
      %v1429 = vadd.f32 %v1030, %v1383
      %v1430 = vadd.f32 %v1032, %v1385
      %v1431 = vadd.f32 %v1035, %v1388
      %v1432 = vadd.f32 %v1037, %v1390
      %v1433 = vadd.f32 %v1040, %v1393
      %v1434 = vadd.f32 %v1042, %v1395
      %v1435 = vadd.f32 %v1045, %v1398
      %v1436 = vadd.f32 %v1047, %v1400
      %v1437 = vadd.f32 %v1050, %v1403
      %v1438 = vadd.f32 %v1052, %v1405
      %s1439 = sadd.s32 %s202, 1
      %s1440 = smul.u32 %s1439, 3
      %s1441 = smul.addr %s1440, 4
      %s1442 = scalar_lea.vmem %s182, %s1441
      %v1443 = vld [vmem:[%s1442] sm:$0xf]
      %v1444 = vld [vmem:[%s1442 + $0x4] sm:$0xf]
      %v1445 = vld [vmem:[%s1442 + $0xc] sm:$0xf]
      %v1446 = vld [vmem:[%s1442 + $0x10] sm:$0xf]
      %v1447 = vld [vmem:[%s1442 + $0x18] sm:$0xf]
      %v1448 = vld [vmem:[%s1442 + $0x1c] sm:$0xf]
      %v1449 = vld [vmem:[%s1442 + $0x24] sm:$0xf]
      %v1450 = vld [vmem:[%s1442 + $0x28] sm:$0xf]
      %v1451 = vld [vmem:[%s1442 + $0x30] sm:$0xf]
      %v1452 = vld [vmem:[%s1442 + $0x34] sm:$0xf]
      %v1453 = vld [vmem:[%s1442 + $0x3c] sm:$0xf]
      %v1454 = vld [vmem:[%s1442 + $0x40] sm:$0xf]
      %v1455 = vld [vmem:[%s1442 + $0x48] sm:$0xf]
      %v1456 = vld [vmem:[%s1442 + $0x4c] sm:$0xf]
      %v1457 = vld [vmem:[%s1442 + $0x54] sm:$0xf]
      %v1458 = vld [vmem:[%s1442 + $0x58] sm:$0xf]
      %v1459 = vld [vmem:[%s1442 + $0x60] sm:$0xf]
      %v1460 = vld [vmem:[%s1442 + $0x64] sm:$0xf]
      %v1461 = vld [vmem:[%s1442 + $0x6c] sm:$0xf]
      %v1462 = vld [vmem:[%s1442 + $0x70] sm:$0xf]
      %v1463 = vld [vmem:[%s1442 + $0x78] sm:$0xf]
      %v1464 = vld [vmem:[%s1442 + $0x7c] sm:$0xf]
      %v1465 = vld [vmem:[%s1442 + $0x84] sm:$0xf]
      %v1466 = vld [vmem:[%s1442 + $0x88] sm:$0xf]
      %v1467 = vld [vmem:[%s1442 + $0x90] sm:$0xf]
      %v1468 = vld [vmem:[%s1442 + $0x94] sm:$0xf]
      %v1469 = vld [vmem:[%s1442 + $0x9c] sm:$0xf]
      %v1470 = vld [vmem:[%s1442 + $0xa0] sm:$0xf]
      %v1471 = vld [vmem:[%s1442 + $0xa8] sm:$0xf]
      %v1472 = vld [vmem:[%s1442 + $0xac] sm:$0xf]
      %v1473 = vld [vmem:[%s1442 + $0xb4] sm:$0xf]
      %v1474 = vld [vmem:[%s1442 + $0xb8] sm:$0xf]
      %s1475 = scalar_lea.vmem %s186, 6
      %v1476 = vld [vmem:[%s1475] sm:$0x3]
      %v1509 = vunpack.c.l.b16 %v1443
      %v1510 = vunpack.c.l.b16 %v1444
      %v1511 = vunpack.c.l.b16 %v1445
      %v1512 = vunpack.c.l.b16 %v1446
      %v1513 = vunpack.c.l.b16 %v1447
      %v1514 = vunpack.c.l.b16 %v1448
      %v1515 = vunpack.c.l.b16 %v1449
      %v1516 = vunpack.c.l.b16 %v1450
      %v1517 = vunpack.c.l.b16 %v1451
      %v1518 = vunpack.c.l.b16 %v1452
      %v1519 = vunpack.c.l.b16 %v1453
      %v1520 = vunpack.c.l.b16 %v1454
      %v1521 = vunpack.c.l.b16 %v1455
      %v1522 = vunpack.c.l.b16 %v1456
      %v1523 = vunpack.c.l.b16 %v1457
      %v1524 = vunpack.c.l.b16 %v1458
      %v1525 = vunpack.c.l.b16 %v1459
      %v1526 = vunpack.c.l.b16 %v1460
      %v1527 = vunpack.c.l.b16 %v1461
      %v1528 = vunpack.c.l.b16 %v1462
      %v1529 = vunpack.c.l.b16 %v1463
      %v1530 = vunpack.c.l.b16 %v1464
      %v1531 = vunpack.c.l.b16 %v1465
      %v1532 = vunpack.c.l.b16 %v1466
      %v1533 = vunpack.c.l.b16 %v1467
      %v1534 = vunpack.c.l.b16 %v1468
      %v1535 = vunpack.c.l.b16 %v1469
      %v1536 = vunpack.c.l.b16 %v1470
      %v1537 = vunpack.c.l.b16 %v1471
      %v1538 = vunpack.c.l.b16 %v1472
      %v1539 = vunpack.c.l.b16 %v1473
      %v1540 = vunpack.c.l.b16 %v1474
      %v1541 = vpack.c.b16 %v1510, %v1509
      %v1542 = vpack.c.b16 %v1512, %v1511
      %v1543 = vpack.c.b16 %v1514, %v1513
      %v1544 = vpack.c.b16 %v1516, %v1515
      %v1545 = vpack.c.b16 %v1518, %v1517
      %v1546 = vpack.c.b16 %v1520, %v1519
      %v1547 = vpack.c.b16 %v1522, %v1521
      %v1548 = vpack.c.b16 %v1524, %v1523
      %v1549 = vpack.c.b16 %v1526, %v1525
      %v1550 = vpack.c.b16 %v1528, %v1527
      %v1551 = vpack.c.b16 %v1530, %v1529
      %v1552 = vpack.c.b16 %v1532, %v1531
      %v1553 = vpack.c.b16 %v1534, %v1533
      %v1554 = vpack.c.b16 %v1536, %v1535
      %v1555 = vpack.c.b16 %v1538, %v1537
      %v1556 = vpack.c.b16 %v1540, %v1539
      %v1558 = vsel %vm692, %v1541, 0
      %v1561 = vsel %vm692, %v1542, 0
      %v1564 = vsel %vm692, %v1543, 0
      %v1567 = vsel %vm692, %v1544, 0
      %v1570 = vsel %vm692, %v1545, 0
      %v1573 = vsel %vm692, %v1546, 0
      %v1576 = vsel %vm692, %v1547, 0
      %v1579 = vsel %vm692, %v1548, 0
      %v1582 = vsel %vm692, %v1549, 0
      %v1585 = vsel %vm692, %v1550, 0
      %v1588 = vsel %vm692, %v1551, 0
      %v1591 = vsel %vm692, %v1552, 0
      %v1594 = vsel %vm692, %v1553, 0
      %v1597 = vsel %vm692, %v1554, 0
      %v1600 = vsel %vm692, %v1555, 0
      %v1603 = vsel %vm692, %v1556, 0
      %v1606 = vsel %vm741, %v1476, 0
      %1608 = vmatpush.bf16.msra.mxu0 0
      %1609 = vmatpush.bf16.msra.mxu0 0
      %1610 = vmatpush.bf16.msra.mxu0 0
      %1611 = vmatpush.bf16.msra.mxu0 0
      %1612 = vmatpush.bf16.msra.mxu0 0
      %1613 = vmatpush.bf16.msra.mxu0 0
      %1614 = vmatpush.bf16.msra.mxu0 0
      %1615 = vmatpush.bf16.msra.mxu0 %v1606
      %1616 = vmatmul.bf16.gmra.mxu0 %v1558
      %v1617 = vpop.f32.mrf.mxu0
      %v1618 = vadd.f32 0.0, %v1617
      %v1619 = vpop.f32.mrf.mxu0
      %v1620 = vadd.f32 0.0, %v1619
      %1621 = vmatmul.bf16.gmra.mxu0 %v1561
      %v1622 = vpop.f32.mrf.mxu0
      %v1623 = vadd.f32 0.0, %v1622
      %v1624 = vpop.f32.mrf.mxu0
      %v1625 = vadd.f32 0.0, %v1624
      %1626 = vmatmul.bf16.gmra.mxu0 %v1564
      %v1627 = vpop.f32.mrf.mxu0
      %v1628 = vadd.f32 0.0, %v1627
      %v1629 = vpop.f32.mrf.mxu0
      %v1630 = vadd.f32 0.0, %v1629
      %1631 = vmatmul.bf16.gmra.mxu0 %v1567
      %v1632 = vpop.f32.mrf.mxu0
      %v1633 = vadd.f32 0.0, %v1632
      %v1634 = vpop.f32.mrf.mxu0
      %v1635 = vadd.f32 0.0, %v1634
      %1636 = vmatmul.bf16.gmra.mxu0 %v1570
      %v1637 = vpop.f32.mrf.mxu0
      %v1638 = vadd.f32 0.0, %v1637
      %v1639 = vpop.f32.mrf.mxu0
      %v1640 = vadd.f32 0.0, %v1639
      %1641 = vmatmul.bf16.gmra.mxu0 %v1573
      %v1642 = vpop.f32.mrf.mxu0
      %v1643 = vadd.f32 0.0, %v1642
      %v1644 = vpop.f32.mrf.mxu0
      %v1645 = vadd.f32 0.0, %v1644
      %1646 = vmatmul.bf16.gmra.mxu0 %v1576
      %v1647 = vpop.f32.mrf.mxu0
      %v1648 = vadd.f32 0.0, %v1647
      %v1649 = vpop.f32.mrf.mxu0
      %v1650 = vadd.f32 0.0, %v1649
      %1651 = vmatmul.bf16.gmra.mxu0 %v1579
      %v1652 = vpop.f32.mrf.mxu0
      %v1653 = vadd.f32 0.0, %v1652
      %v1654 = vpop.f32.mrf.mxu0
      %v1655 = vadd.f32 0.0, %v1654
      %1656 = vmatmul.bf16.gmra.mxu0 %v1582
      %v1657 = vpop.f32.mrf.mxu0
      %v1658 = vadd.f32 0.0, %v1657
      %v1659 = vpop.f32.mrf.mxu0
      %v1660 = vadd.f32 0.0, %v1659
      %1661 = vmatmul.bf16.gmra.mxu0 %v1585
      %v1662 = vpop.f32.mrf.mxu0
      %v1663 = vadd.f32 0.0, %v1662
      %v1664 = vpop.f32.mrf.mxu0
      %v1665 = vadd.f32 0.0, %v1664
      %1666 = vmatmul.bf16.gmra.mxu0 %v1588
      %v1667 = vpop.f32.mrf.mxu0
      %v1668 = vadd.f32 0.0, %v1667
      %v1669 = vpop.f32.mrf.mxu0
      %v1670 = vadd.f32 0.0, %v1669
      %1671 = vmatmul.bf16.gmra.mxu0 %v1591
      %v1672 = vpop.f32.mrf.mxu0
      %v1673 = vadd.f32 0.0, %v1672
      %v1674 = vpop.f32.mrf.mxu0
      %v1675 = vadd.f32 0.0, %v1674
      %1676 = vmatmul.bf16.gmra.mxu0 %v1594
      %v1677 = vpop.f32.mrf.mxu0
      %v1678 = vadd.f32 0.0, %v1677
      %v1679 = vpop.f32.mrf.mxu0
      %v1680 = vadd.f32 0.0, %v1679
      %1681 = vmatmul.bf16.gmra.mxu0 %v1597
      %v1682 = vpop.f32.mrf.mxu0
      %v1683 = vadd.f32 0.0, %v1682
      %v1684 = vpop.f32.mrf.mxu0
      %v1685 = vadd.f32 0.0, %v1684
      %1686 = vmatmul.bf16.gmra.mxu0 %v1600
      %v1687 = vpop.f32.mrf.mxu0
      %v1688 = vadd.f32 0.0, %v1687
      %v1689 = vpop.f32.mrf.mxu0
      %v1690 = vadd.f32 0.0, %v1689
      %1691 = vmatmul.bf16.gmra.mxu0 %v1603
      %v1692 = vpop.f32.mrf.mxu0
      %v1693 = vadd.f32 0.0, %v1692
      %v1694 = vpop.f32.mrf.mxu0
      %v1695 = vadd.f32 0.0, %v1694
      %1696 = vdwg.mxu0
      %v1697 = vadd.f32 %v1407, %v1618
      %v1698 = vadd.f32 %v1408, %v1620
      %v1699 = vadd.f32 %v1409, %v1623
      %v1700 = vadd.f32 %v1410, %v1625
      %v1701 = vadd.f32 %v1411, %v1628
      %v1702 = vadd.f32 %v1412, %v1630
      %v1703 = vadd.f32 %v1413, %v1633
      %v1704 = vadd.f32 %v1414, %v1635
      %v1705 = vadd.f32 %v1415, %v1638
      %v1706 = vadd.f32 %v1416, %v1640
      %v1707 = vadd.f32 %v1417, %v1643
      %v1708 = vadd.f32 %v1418, %v1645
      %v1709 = vadd.f32 %v1419, %v1648
      %v1710 = vadd.f32 %v1420, %v1650
      %v1711 = vadd.f32 %v1421, %v1653
      %v1712 = vadd.f32 %v1422, %v1655
      %v1713 = vadd.f32 %v1423, %v1658
      %v1714 = vadd.f32 %v1424, %v1660
      %v1715 = vadd.f32 %v1425, %v1663
      %v1716 = vadd.f32 %v1426, %v1665
      %v1717 = vadd.f32 %v1427, %v1668
      %v1718 = vadd.f32 %v1428, %v1670
      %v1719 = vadd.f32 %v1429, %v1673
      %v1720 = vadd.f32 %v1430, %v1675
      %v1721 = vadd.f32 %v1431, %v1678
      %v1722 = vadd.f32 %v1432, %v1680
      %v1723 = vadd.f32 %v1433, %v1683
      %v1724 = vadd.f32 %v1434, %v1685
      %v1725 = vadd.f32 %v1435, %v1688
      %v1726 = vadd.f32 %v1436, %v1690
      %v1727 = vadd.f32 %v1437, %v1693
      %v1728 = vadd.f32 %v1438, %v1695
      %v1729 = vld [vmem:[%s1442] sm:$0xf]
      %v1730 = vld [vmem:[%s1442 + $0x4] sm:$0xf]
      %v1731 = vld [vmem:[%s1442 + $0x8] sm:$0x1]
      %v1732 = vld [vmem:[%s1442 + $0xc] sm:$0xf]
      %v1733 = vld [vmem:[%s1442 + $0x10] sm:$0xf]
      %v1734 = vld [vmem:[%s1442 + $0x14] sm:$0x1]
      %v1735 = vld [vmem:[%s1442 + $0x18] sm:$0xf]
      %v1736 = vld [vmem:[%s1442 + $0x1c] sm:$0xf]
      %v1737 = vld [vmem:[%s1442 + $0x20] sm:$0x1]
      %v1738 = vld [vmem:[%s1442 + $0x24] sm:$0xf]
      %v1739 = vld [vmem:[%s1442 + $0x28] sm:$0xf]
      %v1740 = vld [vmem:[%s1442 + $0x2c] sm:$0x1]
      %v1741 = vld [vmem:[%s1442 + $0x30] sm:$0xf]
      %v1742 = vld [vmem:[%s1442 + $0x34] sm:$0xf]
      %v1743 = vld [vmem:[%s1442 + $0x38] sm:$0x1]
      %v1744 = vld [vmem:[%s1442 + $0x3c] sm:$0xf]
      %v1745 = vld [vmem:[%s1442 + $0x40] sm:$0xf]
      %v1746 = vld [vmem:[%s1442 + $0x44] sm:$0x1]
      %v1747 = vld [vmem:[%s1442 + $0x48] sm:$0xf]
      %v1748 = vld [vmem:[%s1442 + $0x4c] sm:$0xf]
      %v1749 = vld [vmem:[%s1442 + $0x50] sm:$0x1]
      %v1750 = vld [vmem:[%s1442 + $0x54] sm:$0xf]
      %v1751 = vld [vmem:[%s1442 + $0x58] sm:$0xf]
      %v1752 = vld [vmem:[%s1442 + $0x5c] sm:$0x1]
      %v1753 = vld [vmem:[%s1442 + $0x60] sm:$0xf]
      %v1754 = vld [vmem:[%s1442 + $0x64] sm:$0xf]
      %v1755 = vld [vmem:[%s1442 + $0x68] sm:$0x1]
      %v1756 = vld [vmem:[%s1442 + $0x6c] sm:$0xf]
      %v1757 = vld [vmem:[%s1442 + $0x70] sm:$0xf]
      %v1758 = vld [vmem:[%s1442 + $0x74] sm:$0x1]
      %v1759 = vld [vmem:[%s1442 + $0x78] sm:$0xf]
      %v1760 = vld [vmem:[%s1442 + $0x7c] sm:$0xf]
      %v1761 = vld [vmem:[%s1442 + $0x80] sm:$0x1]
      %v1762 = vld [vmem:[%s1442 + $0x84] sm:$0xf]
      %v1763 = vld [vmem:[%s1442 + $0x88] sm:$0xf]
      %v1764 = vld [vmem:[%s1442 + $0x8c] sm:$0x1]
      %v1765 = vld [vmem:[%s1442 + $0x90] sm:$0xf]
      %v1766 = vld [vmem:[%s1442 + $0x94] sm:$0xf]
      %v1767 = vld [vmem:[%s1442 + $0x98] sm:$0x1]
      %v1768 = vld [vmem:[%s1442 + $0x9c] sm:$0xf]
      %v1769 = vld [vmem:[%s1442 + $0xa0] sm:$0xf]
      %v1770 = vld [vmem:[%s1442 + $0xa4] sm:$0x1]
      %v1771 = vld [vmem:[%s1442 + $0xa8] sm:$0xf]
      %v1772 = vld [vmem:[%s1442 + $0xac] sm:$0xf]
      %v1773 = vld [vmem:[%s1442 + $0xb0] sm:$0x1]
      %v1774 = vld [vmem:[%s1442 + $0xb4] sm:$0xf]
      %v1775 = vld [vmem:[%s1442 + $0xb8] sm:$0xf]
      %v1776 = vld [vmem:[%s1442 + $0xbc] sm:$0x1]
      %v1778 = vshrl.u32 %v1729, 16
      %v1780 = vrot.slane %v1778, 4
      %v1781 = vshll.u32 %v1729, 16
      %v1783 = vrot.slane %v1781, 5
      %v1784 = vor.u32 %v1780, %v1783
      %v1785 = vrot.slane %v1784, 4
      %v1787 = vshll.u32 %v1730, 16
      %v1789 = vrot.slane %v1787, 5
      %v1790 = vsel %vm257, %v1785, %v1789
      %v1791 = vshrl.u32 %v1730, 16
      %v1793 = vrot.slane %v1791, 4
      %v1794 = vor.u32 %v1793, %v1789
      %v1795 = vrot.slane %v1794, 4
      %v1797 = vshll.u32 %v1731, 16
      %v1799 = vrot.slane %v1797, 5
      %v1800 = vsel %vm257, %v1795, %v1799
      %v1802 = vshrl.u32 %v1732, 16
      %v1804 = vrot.slane %v1802, 4
      %v1805 = vshll.u32 %v1732, 16
      %v1807 = vrot.slane %v1805, 5
      %v1808 = vor.u32 %v1804, %v1807
      %v1809 = vrot.slane %v1808, 4
      %v1811 = vshll.u32 %v1733, 16
      %v1813 = vrot.slane %v1811, 5
      %v1814 = vsel %vm257, %v1809, %v1813
      %v1815 = vshrl.u32 %v1733, 16
      %v1817 = vrot.slane %v1815, 4
      %v1818 = vor.u32 %v1817, %v1813
      %v1819 = vrot.slane %v1818, 4
      %v1821 = vshll.u32 %v1734, 16
      %v1823 = vrot.slane %v1821, 5
      %v1824 = vsel %vm257, %v1819, %v1823
      %v1826 = vshrl.u32 %v1735, 16
      %v1828 = vrot.slane %v1826, 4
      %v1829 = vshll.u32 %v1735, 16
      %v1831 = vrot.slane %v1829, 5
      %v1832 = vor.u32 %v1828, %v1831
      %v1833 = vrot.slane %v1832, 4
      %v1835 = vshll.u32 %v1736, 16
      %v1837 = vrot.slane %v1835, 5
      %v1838 = vsel %vm257, %v1833, %v1837
      %v1839 = vshrl.u32 %v1736, 16
      %v1841 = vrot.slane %v1839, 4
      %v1842 = vor.u32 %v1841, %v1837
      %v1843 = vrot.slane %v1842, 4
      %v1845 = vshll.u32 %v1737, 16
      %v1847 = vrot.slane %v1845, 5
      %v1848 = vsel %vm257, %v1843, %v1847
      %v1850 = vshrl.u32 %v1738, 16
      %v1852 = vrot.slane %v1850, 4
      %v1853 = vshll.u32 %v1738, 16
      %v1855 = vrot.slane %v1853, 5
      %v1856 = vor.u32 %v1852, %v1855
      %v1857 = vrot.slane %v1856, 4
      %v1859 = vshll.u32 %v1739, 16
      %v1861 = vrot.slane %v1859, 5
      %v1862 = vsel %vm257, %v1857, %v1861
      %v1863 = vshrl.u32 %v1739, 16
      %v1865 = vrot.slane %v1863, 4
      %v1866 = vor.u32 %v1865, %v1861
      %v1867 = vrot.slane %v1866, 4
      %v1869 = vshll.u32 %v1740, 16
      %v1871 = vrot.slane %v1869, 5
      %v1872 = vsel %vm257, %v1867, %v1871
      %v1874 = vshrl.u32 %v1741, 16
      %v1876 = vrot.slane %v1874, 4
      %v1877 = vshll.u32 %v1741, 16
      %v1879 = vrot.slane %v1877, 5
      %v1880 = vor.u32 %v1876, %v1879
      %v1881 = vrot.slane %v1880, 4
      %v1883 = vshll.u32 %v1742, 16
      %v1885 = vrot.slane %v1883, 5
      %v1886 = vsel %vm257, %v1881, %v1885
      %v1887 = vshrl.u32 %v1742, 16
      %v1889 = vrot.slane %v1887, 4
      %v1890 = vor.u32 %v1889, %v1885
      %v1891 = vrot.slane %v1890, 4
      %v1893 = vshll.u32 %v1743, 16
      %v1895 = vrot.slane %v1893, 5
      %v1896 = vsel %vm257, %v1891, %v1895
      %v1898 = vshrl.u32 %v1744, 16
      %v1900 = vrot.slane %v1898, 4
      %v1901 = vshll.u32 %v1744, 16
      %v1903 = vrot.slane %v1901, 5
      %v1904 = vor.u32 %v1900, %v1903
      %v1905 = vrot.slane %v1904, 4
      %v1907 = vshll.u32 %v1745, 16
      %v1909 = vrot.slane %v1907, 5
      %v1910 = vsel %vm257, %v1905, %v1909
      %v1911 = vshrl.u32 %v1745, 16
      %v1913 = vrot.slane %v1911, 4
      %v1914 = vor.u32 %v1913, %v1909
      %v1915 = vrot.slane %v1914, 4
      %v1917 = vshll.u32 %v1746, 16
      %v1919 = vrot.slane %v1917, 5
      %v1920 = vsel %vm257, %v1915, %v1919
      %v1922 = vshrl.u32 %v1747, 16
      %v1924 = vrot.slane %v1922, 4
      %v1925 = vshll.u32 %v1747, 16
      %v1927 = vrot.slane %v1925, 5
      %v1928 = vor.u32 %v1924, %v1927
      %v1929 = vrot.slane %v1928, 4
      %v1931 = vshll.u32 %v1748, 16
      %v1933 = vrot.slane %v1931, 5
      %v1934 = vsel %vm257, %v1929, %v1933
      %v1935 = vshrl.u32 %v1748, 16
      %v1937 = vrot.slane %v1935, 4
      %v1938 = vor.u32 %v1937, %v1933
      %v1939 = vrot.slane %v1938, 4
      %v1941 = vshll.u32 %v1749, 16
      %v1943 = vrot.slane %v1941, 5
      %v1944 = vsel %vm257, %v1939, %v1943
      %v1946 = vshrl.u32 %v1750, 16
      %v1948 = vrot.slane %v1946, 4
      %v1949 = vshll.u32 %v1750, 16
      %v1951 = vrot.slane %v1949, 5
      %v1952 = vor.u32 %v1948, %v1951
      %v1953 = vrot.slane %v1952, 4
      %v1955 = vshll.u32 %v1751, 16
      %v1957 = vrot.slane %v1955, 5
      %v1958 = vsel %vm257, %v1953, %v1957
      %v1959 = vshrl.u32 %v1751, 16
      %v1961 = vrot.slane %v1959, 4
      %v1962 = vor.u32 %v1961, %v1957
      %v1963 = vrot.slane %v1962, 4
      %v1965 = vshll.u32 %v1752, 16
      %v1967 = vrot.slane %v1965, 5
      %v1968 = vsel %vm257, %v1963, %v1967
      %v1970 = vshrl.u32 %v1753, 16
      %v1972 = vrot.slane %v1970, 4
      %v1973 = vshll.u32 %v1753, 16
      %v1975 = vrot.slane %v1973, 5
      %v1976 = vor.u32 %v1972, %v1975
      %v1977 = vrot.slane %v1976, 4
      %v1979 = vshll.u32 %v1754, 16
      %v1981 = vrot.slane %v1979, 5
      %v1982 = vsel %vm257, %v1977, %v1981
      %v1983 = vshrl.u32 %v1754, 16
      %v1985 = vrot.slane %v1983, 4
      %v1986 = vor.u32 %v1985, %v1981
      %v1987 = vrot.slane %v1986, 4
      %v1989 = vshll.u32 %v1755, 16
      %v1991 = vrot.slane %v1989, 5
      %v1992 = vsel %vm257, %v1987, %v1991
      %v1994 = vshrl.u32 %v1756, 16
      %v1996 = vrot.slane %v1994, 4
      %v1997 = vshll.u32 %v1756, 16
      %v1999 = vrot.slane %v1997, 5
      %v2000 = vor.u32 %v1996, %v1999
      %v2001 = vrot.slane %v2000, 4
      %v2003 = vshll.u32 %v1757, 16
      %v2005 = vrot.slane %v2003, 5
      %v2006 = vsel %vm257, %v2001, %v2005
      %v2007 = vshrl.u32 %v1757, 16
      %v2009 = vrot.slane %v2007, 4
      %v2010 = vor.u32 %v2009, %v2005
      %v2011 = vrot.slane %v2010, 4
      %v2013 = vshll.u32 %v1758, 16
      %v2015 = vrot.slane %v2013, 5
      %v2016 = vsel %vm257, %v2011, %v2015
      %v2018 = vshrl.u32 %v1759, 16
      %v2020 = vrot.slane %v2018, 4
      %v2021 = vshll.u32 %v1759, 16
      %v2023 = vrot.slane %v2021, 5
      %v2024 = vor.u32 %v2020, %v2023
      %v2025 = vrot.slane %v2024, 4
      %v2027 = vshll.u32 %v1760, 16
      %v2029 = vrot.slane %v2027, 5
      %v2030 = vsel %vm257, %v2025, %v2029
      %v2031 = vshrl.u32 %v1760, 16
      %v2033 = vrot.slane %v2031, 4
      %v2034 = vor.u32 %v2033, %v2029
      %v2035 = vrot.slane %v2034, 4
      %v2037 = vshll.u32 %v1761, 16
      %v2039 = vrot.slane %v2037, 5
      %v2040 = vsel %vm257, %v2035, %v2039
      %v2042 = vshrl.u32 %v1762, 16
      %v2044 = vrot.slane %v2042, 4
      %v2045 = vshll.u32 %v1762, 16
      %v2047 = vrot.slane %v2045, 5
      %v2048 = vor.u32 %v2044, %v2047
      %v2049 = vrot.slane %v2048, 4
      %v2051 = vshll.u32 %v1763, 16
      %v2053 = vrot.slane %v2051, 5
      %v2054 = vsel %vm257, %v2049, %v2053
      %v2055 = vshrl.u32 %v1763, 16
      %v2057 = vrot.slane %v2055, 4
      %v2058 = vor.u32 %v2057, %v2053
      %v2059 = vrot.slane %v2058, 4
      %v2061 = vshll.u32 %v1764, 16
      %v2063 = vrot.slane %v2061, 5
      %v2064 = vsel %vm257, %v2059, %v2063
      %v2066 = vshrl.u32 %v1765, 16
      %v2068 = vrot.slane %v2066, 4
      %v2069 = vshll.u32 %v1765, 16
      %v2071 = vrot.slane %v2069, 5
      %v2072 = vor.u32 %v2068, %v2071
      %v2073 = vrot.slane %v2072, 4
      %v2075 = vshll.u32 %v1766, 16
      %v2077 = vrot.slane %v2075, 5
      %v2078 = vsel %vm257, %v2073, %v2077
      %v2079 = vshrl.u32 %v1766, 16
      %v2081 = vrot.slane %v2079, 4
      %v2082 = vor.u32 %v2081, %v2077
      %v2083 = vrot.slane %v2082, 4
      %v2085 = vshll.u32 %v1767, 16
      %v2087 = vrot.slane %v2085, 5
      %v2088 = vsel %vm257, %v2083, %v2087
      %v2090 = vshrl.u32 %v1768, 16
      %v2092 = vrot.slane %v2090, 4
      %v2093 = vshll.u32 %v1768, 16
      %v2095 = vrot.slane %v2093, 5
      %v2096 = vor.u32 %v2092, %v2095
      %v2097 = vrot.slane %v2096, 4
      %v2099 = vshll.u32 %v1769, 16
      %v2101 = vrot.slane %v2099, 5
      %v2102 = vsel %vm257, %v2097, %v2101
      %v2103 = vshrl.u32 %v1769, 16
      %v2105 = vrot.slane %v2103, 4
      %v2106 = vor.u32 %v2105, %v2101
      %v2107 = vrot.slane %v2106, 4
      %v2109 = vshll.u32 %v1770, 16
      %v2111 = vrot.slane %v2109, 5
      %v2112 = vsel %vm257, %v2107, %v2111
      %v2114 = vshrl.u32 %v1771, 16
      %v2116 = vrot.slane %v2114, 4
      %v2117 = vshll.u32 %v1771, 16
      %v2119 = vrot.slane %v2117, 5
      %v2120 = vor.u32 %v2116, %v2119
      %v2121 = vrot.slane %v2120, 4
      %v2123 = vshll.u32 %v1772, 16
      %v2125 = vrot.slane %v2123, 5
      %v2126 = vsel %vm257, %v2121, %v2125
      %v2127 = vshrl.u32 %v1772, 16
      %v2129 = vrot.slane %v2127, 4
      %v2130 = vor.u32 %v2129, %v2125
      %v2131 = vrot.slane %v2130, 4
      %v2133 = vshll.u32 %v1773, 16
      %v2135 = vrot.slane %v2133, 5
      %v2136 = vsel %vm257, %v2131, %v2135
      %v2138 = vshrl.u32 %v1774, 16
      %v2140 = vrot.slane %v2138, 4
      %v2141 = vshll.u32 %v1774, 16
      %v2143 = vrot.slane %v2141, 5
      %v2144 = vor.u32 %v2140, %v2143
      %v2145 = vrot.slane %v2144, 4
      %v2147 = vshll.u32 %v1775, 16
      %v2149 = vrot.slane %v2147, 5
      %v2150 = vsel %vm257, %v2145, %v2149
      %v2151 = vshrl.u32 %v1775, 16
      %v2153 = vrot.slane %v2151, 4
      %v2154 = vor.u32 %v2153, %v2149
      %v2155 = vrot.slane %v2154, 4
      %v2157 = vshll.u32 %v1776, 16
      %v2159 = vrot.slane %v2157, 5
      %v2160 = vsel %vm257, %v2155, %v2159
      %s2161 = scalar_lea.vmem %s186, 8
      %v2162 = vld [vmem:[%s2161] sm:$0x3]
      %v2163 = vunpack.c.l.b16 %v1790
      %v2164 = vunpack.c.l.b16 %v1800
      %v2165 = vunpack.c.l.b16 %v1814
      %v2166 = vunpack.c.l.b16 %v1824
      %v2167 = vunpack.c.l.b16 %v1838
      %v2168 = vunpack.c.l.b16 %v1848
      %v2169 = vunpack.c.l.b16 %v1862
      %v2170 = vunpack.c.l.b16 %v1872
      %v2171 = vunpack.c.l.b16 %v1886
      %v2172 = vunpack.c.l.b16 %v1896
      %v2173 = vunpack.c.l.b16 %v1910
      %v2174 = vunpack.c.l.b16 %v1920
      %v2175 = vunpack.c.l.b16 %v1934
      %v2176 = vunpack.c.l.b16 %v1944
      %v2177 = vunpack.c.l.b16 %v1958
      %v2178 = vunpack.c.l.b16 %v1968
      %v2179 = vunpack.c.l.b16 %v1982
      %v2180 = vunpack.c.l.b16 %v1992
      %v2181 = vunpack.c.l.b16 %v2006
      %v2182 = vunpack.c.l.b16 %v2016
      %v2183 = vunpack.c.l.b16 %v2030
      %v2184 = vunpack.c.l.b16 %v2040
      %v2185 = vunpack.c.l.b16 %v2054
      %v2186 = vunpack.c.l.b16 %v2064
      %v2187 = vunpack.c.l.b16 %v2078
      %v2188 = vunpack.c.l.b16 %v2088
      %v2189 = vunpack.c.l.b16 %v2102
      %v2190 = vunpack.c.l.b16 %v2112
      %v2191 = vunpack.c.l.b16 %v2126
      %v2192 = vunpack.c.l.b16 %v2136
      %v2193 = vunpack.c.l.b16 %v2150
      %v2194 = vunpack.c.l.b16 %v2160
      %v2195 = vpack.c.b16 %v2164, %v2163
      %v2196 = vpack.c.b16 %v2166, %v2165
      %v2197 = vpack.c.b16 %v2168, %v2167
      %v2198 = vpack.c.b16 %v2170, %v2169
      %v2199 = vpack.c.b16 %v2172, %v2171
      %v2200 = vpack.c.b16 %v2174, %v2173
      %v2201 = vpack.c.b16 %v2176, %v2175
      %v2202 = vpack.c.b16 %v2178, %v2177
      %v2203 = vpack.c.b16 %v2180, %v2179
      %v2204 = vpack.c.b16 %v2182, %v2181
      %v2205 = vpack.c.b16 %v2184, %v2183
      %v2206 = vpack.c.b16 %v2186, %v2185
      %v2207 = vpack.c.b16 %v2188, %v2187
      %v2208 = vpack.c.b16 %v2190, %v2189
      %v2209 = vpack.c.b16 %v2192, %v2191
      %v2210 = vpack.c.b16 %v2194, %v2193
      %v2212 = vsel %vm692, %v2195, 0
      %v2215 = vsel %vm692, %v2196, 0
      %v2218 = vsel %vm692, %v2197, 0
      %v2221 = vsel %vm692, %v2198, 0
      %v2224 = vsel %vm692, %v2199, 0
      %v2227 = vsel %vm692, %v2200, 0
      %v2230 = vsel %vm692, %v2201, 0
      %v2233 = vsel %vm692, %v2202, 0
      %v2236 = vsel %vm692, %v2203, 0
      %v2239 = vsel %vm692, %v2204, 0
      %v2242 = vsel %vm692, %v2205, 0
      %v2245 = vsel %vm692, %v2206, 0
      %v2248 = vsel %vm692, %v2207, 0
      %v2251 = vsel %vm692, %v2208, 0
      %v2254 = vsel %vm692, %v2209, 0
      %v2257 = vsel %vm692, %v2210, 0
      %v2260 = vsel %vm741, %v2162, 0
      %2262 = vmatpush.bf16.msra.mxu0 0
      %2263 = vmatpush.bf16.msra.mxu0 0
      %2264 = vmatpush.bf16.msra.mxu0 0
      %2265 = vmatpush.bf16.msra.mxu0 0
      %2266 = vmatpush.bf16.msra.mxu0 0
      %2267 = vmatpush.bf16.msra.mxu0 0
      %2268 = vmatpush.bf16.msra.mxu0 0
      %2269 = vmatpush.bf16.msra.mxu0 %v2260
      %2270 = vmatmul.bf16.gmra.mxu0 %v2212
      %v2271 = vpop.f32.mrf.mxu0
      %v2272 = vadd.f32 0.0, %v2271
      %v2273 = vpop.f32.mrf.mxu0
      %v2274 = vadd.f32 0.0, %v2273
      %2275 = vmatmul.bf16.gmra.mxu0 %v2215
      %v2276 = vpop.f32.mrf.mxu0
      %v2277 = vadd.f32 0.0, %v2276
      %v2278 = vpop.f32.mrf.mxu0
      %v2279 = vadd.f32 0.0, %v2278
      %2280 = vmatmul.bf16.gmra.mxu0 %v2218
      %v2281 = vpop.f32.mrf.mxu0
      %v2282 = vadd.f32 0.0, %v2281
      %v2283 = vpop.f32.mrf.mxu0
      %v2284 = vadd.f32 0.0, %v2283
      %2285 = vmatmul.bf16.gmra.mxu0 %v2221
      %v2286 = vpop.f32.mrf.mxu0
      %v2287 = vadd.f32 0.0, %v2286
      %v2288 = vpop.f32.mrf.mxu0
      %v2289 = vadd.f32 0.0, %v2288
      %2290 = vmatmul.bf16.gmra.mxu0 %v2224
      %v2291 = vpop.f32.mrf.mxu0
      %v2292 = vadd.f32 0.0, %v2291
      %v2293 = vpop.f32.mrf.mxu0
      %v2294 = vadd.f32 0.0, %v2293
      %2295 = vmatmul.bf16.gmra.mxu0 %v2227
      %v2296 = vpop.f32.mrf.mxu0
      %v2297 = vadd.f32 0.0, %v2296
      %v2298 = vpop.f32.mrf.mxu0
      %v2299 = vadd.f32 0.0, %v2298
      %2300 = vmatmul.bf16.gmra.mxu0 %v2230
      %v2301 = vpop.f32.mrf.mxu0
      %v2302 = vadd.f32 0.0, %v2301
      %v2303 = vpop.f32.mrf.mxu0
      %v2304 = vadd.f32 0.0, %v2303
      %2305 = vmatmul.bf16.gmra.mxu0 %v2233
      %v2306 = vpop.f32.mrf.mxu0
      %v2307 = vadd.f32 0.0, %v2306
      %v2308 = vpop.f32.mrf.mxu0
      %v2309 = vadd.f32 0.0, %v2308
      %2310 = vmatmul.bf16.gmra.mxu0 %v2236
      %v2311 = vpop.f32.mrf.mxu0
      %v2312 = vadd.f32 0.0, %v2311
      %v2313 = vpop.f32.mrf.mxu0
      %v2314 = vadd.f32 0.0, %v2313
      %2315 = vmatmul.bf16.gmra.mxu0 %v2239
      %v2316 = vpop.f32.mrf.mxu0
      %v2317 = vadd.f32 0.0, %v2316
      %v2318 = vpop.f32.mrf.mxu0
      %v2319 = vadd.f32 0.0, %v2318
      %2320 = vmatmul.bf16.gmra.mxu0 %v2242
      %v2321 = vpop.f32.mrf.mxu0
      %v2322 = vadd.f32 0.0, %v2321
      %v2323 = vpop.f32.mrf.mxu0
      %v2324 = vadd.f32 0.0, %v2323
      %2325 = vmatmul.bf16.gmra.mxu0 %v2245
      %v2326 = vpop.f32.mrf.mxu0
      %v2327 = vadd.f32 0.0, %v2326
      %v2328 = vpop.f32.mrf.mxu0
      %v2329 = vadd.f32 0.0, %v2328
      %2330 = vmatmul.bf16.gmra.mxu0 %v2248
      %v2331 = vpop.f32.mrf.mxu0
      %v2332 = vadd.f32 0.0, %v2331
      %v2333 = vpop.f32.mrf.mxu0
      %v2334 = vadd.f32 0.0, %v2333
      %2335 = vmatmul.bf16.gmra.mxu0 %v2251
      %v2336 = vpop.f32.mrf.mxu0
      %v2337 = vadd.f32 0.0, %v2336
      %v2338 = vpop.f32.mrf.mxu0
      %v2339 = vadd.f32 0.0, %v2338
      %2340 = vmatmul.bf16.gmra.mxu0 %v2254
      %v2341 = vpop.f32.mrf.mxu0
      %v2342 = vadd.f32 0.0, %v2341
      %v2343 = vpop.f32.mrf.mxu0
      %v2344 = vadd.f32 0.0, %v2343
      %2345 = vmatmul.bf16.gmra.mxu0 %v2257
      %v2346 = vpop.f32.mrf.mxu0
      %v2347 = vadd.f32 0.0, %v2346
      %v2348 = vpop.f32.mrf.mxu0
      %v2349 = vadd.f32 0.0, %v2348
      %2350 = vdwg.mxu0
      %v2351 = vadd.f32 %v1697, %v2272
      %v2352 = vadd.f32 %v1698, %v2274
      %v2353 = vadd.f32 %v1699, %v2277
      %v2354 = vadd.f32 %v1700, %v2279
      %v2355 = vadd.f32 %v1701, %v2282
      %v2356 = vadd.f32 %v1702, %v2284
      %v2357 = vadd.f32 %v1703, %v2287
      %v2358 = vadd.f32 %v1704, %v2289
      %v2359 = vadd.f32 %v1705, %v2292
      %v2360 = vadd.f32 %v1706, %v2294
      %v2361 = vadd.f32 %v1707, %v2297
      %v2362 = vadd.f32 %v1708, %v2299
      %v2363 = vadd.f32 %v1709, %v2302
      %v2364 = vadd.f32 %v1710, %v2304
      %v2365 = vadd.f32 %v1711, %v2307
      %v2366 = vadd.f32 %v1712, %v2309
      %v2367 = vadd.f32 %v1713, %v2312
      %v2368 = vadd.f32 %v1714, %v2314
      %v2369 = vadd.f32 %v1715, %v2317
      %v2370 = vadd.f32 %v1716, %v2319
      %v2371 = vadd.f32 %v1717, %v2322
      %v2372 = vadd.f32 %v1718, %v2324
      %v2373 = vadd.f32 %v1719, %v2327
      %v2374 = vadd.f32 %v1720, %v2329
      %v2375 = vadd.f32 %v1721, %v2332
      %v2376 = vadd.f32 %v1722, %v2334
      %v2377 = vadd.f32 %v1723, %v2337
      %v2378 = vadd.f32 %v1724, %v2339
      %v2379 = vadd.f32 %v1725, %v2342
      %v2380 = vadd.f32 %v1726, %v2344
      %v2381 = vadd.f32 %v1727, %v2347
      %v2382 = vadd.f32 %v1728, %v2349
      %v2383 = vld [vmem:[%s1442] sm:$0xe]
      %v2384 = vld [vmem:[%s1442 + $0xc] sm:$0xe]
      %v2385 = vld [vmem:[%s1442 + $0x18] sm:$0xe]
      %v2386 = vld [vmem:[%s1442 + $0x24] sm:$0xe]
      %v2387 = vld [vmem:[%s1442 + $0x30] sm:$0xe]
      %v2388 = vld [vmem:[%s1442 + $0x3c] sm:$0xe]
      %v2389 = vld [vmem:[%s1442 + $0x48] sm:$0xe]
      %v2390 = vld [vmem:[%s1442 + $0x54] sm:$0xe]
      %v2391 = vld [vmem:[%s1442 + $0x60] sm:$0xe]
      %v2392 = vld [vmem:[%s1442 + $0x6c] sm:$0xe]
      %v2393 = vld [vmem:[%s1442 + $0x78] sm:$0xe]
      %v2394 = vld [vmem:[%s1442 + $0x84] sm:$0xe]
      %v2395 = vld [vmem:[%s1442 + $0x90] sm:$0xe]
      %v2396 = vld [vmem:[%s1442 + $0x9c] sm:$0xe]
      %v2397 = vld [vmem:[%s1442 + $0xa8] sm:$0xe]
      %v2398 = vld [vmem:[%s1442 + $0xb4] sm:$0xe]
      %v2447 = vrot.slane %v2383, 5
      %v2448 = vrot.slane %v2447, 4
      %v2449 = vrot.slane %v1730, 5
      %v2450 = vsel %vm1104, %v2448, %v2449
      %v2451 = vrot.slane %v2449, 4
      %v2452 = vrot.slane %v1731, 5
      %v2453 = vsel %vm1104, %v2451, %v2452
      %v2454 = vrot.slane %v2384, 5
      %v2455 = vrot.slane %v2454, 4
      %v2456 = vrot.slane %v1733, 5
      %v2457 = vsel %vm1104, %v2455, %v2456
      %v2458 = vrot.slane %v2456, 4
      %v2459 = vrot.slane %v1734, 5
      %v2460 = vsel %vm1104, %v2458, %v2459
      %v2461 = vrot.slane %v2385, 5
      %v2462 = vrot.slane %v2461, 4
      %v2463 = vrot.slane %v1736, 5
      %v2464 = vsel %vm1104, %v2462, %v2463
      %v2465 = vrot.slane %v2463, 4
      %v2466 = vrot.slane %v1737, 5
      %v2467 = vsel %vm1104, %v2465, %v2466
      %v2468 = vrot.slane %v2386, 5
      %v2469 = vrot.slane %v2468, 4
      %v2470 = vrot.slane %v1739, 5
      %v2471 = vsel %vm1104, %v2469, %v2470
      %v2472 = vrot.slane %v2470, 4
      %v2473 = vrot.slane %v1740, 5
      %v2474 = vsel %vm1104, %v2472, %v2473
      %v2475 = vrot.slane %v2387, 5
      %v2476 = vrot.slane %v2475, 4
      %v2477 = vrot.slane %v1742, 5
      %v2478 = vsel %vm1104, %v2476, %v2477
      %v2479 = vrot.slane %v2477, 4
      %v2480 = vrot.slane %v1743, 5
      %v2481 = vsel %vm1104, %v2479, %v2480
      %v2482 = vrot.slane %v2388, 5
      %v2483 = vrot.slane %v2482, 4
      %v2484 = vrot.slane %v1745, 5
      %v2485 = vsel %vm1104, %v2483, %v2484
      %v2486 = vrot.slane %v2484, 4
      %v2487 = vrot.slane %v1746, 5
      %v2488 = vsel %vm1104, %v2486, %v2487
      %v2489 = vrot.slane %v2389, 5
      %v2490 = vrot.slane %v2489, 4
      %v2491 = vrot.slane %v1748, 5
      %v2492 = vsel %vm1104, %v2490, %v2491
      %v2493 = vrot.slane %v2491, 4
      %v2494 = vrot.slane %v1749, 5
      %v2495 = vsel %vm1104, %v2493, %v2494
      %v2496 = vrot.slane %v2390, 5
      %v2497 = vrot.slane %v2496, 4
      %v2498 = vrot.slane %v1751, 5
      %v2499 = vsel %vm1104, %v2497, %v2498
      %v2500 = vrot.slane %v2498, 4
      %v2501 = vrot.slane %v1752, 5
      %v2502 = vsel %vm1104, %v2500, %v2501
      %v2503 = vrot.slane %v2391, 5
      %v2504 = vrot.slane %v2503, 4
      %v2505 = vrot.slane %v1754, 5
      %v2506 = vsel %vm1104, %v2504, %v2505
      %v2507 = vrot.slane %v2505, 4
      %v2508 = vrot.slane %v1755, 5
      %v2509 = vsel %vm1104, %v2507, %v2508
      %v2510 = vrot.slane %v2392, 5
      %v2511 = vrot.slane %v2510, 4
      %v2512 = vrot.slane %v1757, 5
      %v2513 = vsel %vm1104, %v2511, %v2512
      %v2514 = vrot.slane %v2512, 4
      %v2515 = vrot.slane %v1758, 5
      %v2516 = vsel %vm1104, %v2514, %v2515
      %v2517 = vrot.slane %v2393, 5
      %v2518 = vrot.slane %v2517, 4
      %v2519 = vrot.slane %v1760, 5
      %v2520 = vsel %vm1104, %v2518, %v2519
      %v2521 = vrot.slane %v2519, 4
      %v2522 = vrot.slane %v1761, 5
      %v2523 = vsel %vm1104, %v2521, %v2522
      %v2524 = vrot.slane %v2394, 5
      %v2525 = vrot.slane %v2524, 4
      %v2526 = vrot.slane %v1763, 5
      %v2527 = vsel %vm1104, %v2525, %v2526
      %v2528 = vrot.slane %v2526, 4
      %v2529 = vrot.slane %v1764, 5
      %v2530 = vsel %vm1104, %v2528, %v2529
      %v2531 = vrot.slane %v2395, 5
      %v2532 = vrot.slane %v2531, 4
      %v2533 = vrot.slane %v1766, 5
      %v2534 = vsel %vm1104, %v2532, %v2533
      %v2535 = vrot.slane %v2533, 4
      %v2536 = vrot.slane %v1767, 5
      %v2537 = vsel %vm1104, %v2535, %v2536
      %v2538 = vrot.slane %v2396, 5
      %v2539 = vrot.slane %v2538, 4
      %v2540 = vrot.slane %v1769, 5
      %v2541 = vsel %vm1104, %v2539, %v2540
      %v2542 = vrot.slane %v2540, 4
      %v2543 = vrot.slane %v1770, 5
      %v2544 = vsel %vm1104, %v2542, %v2543
      %v2545 = vrot.slane %v2397, 5
      %v2546 = vrot.slane %v2545, 4
      %v2547 = vrot.slane %v1772, 5
      %v2548 = vsel %vm1104, %v2546, %v2547
      %v2549 = vrot.slane %v2547, 4
      %v2550 = vrot.slane %v1773, 5
      %v2551 = vsel %vm1104, %v2549, %v2550
      %v2552 = vrot.slane %v2398, 5
      %v2553 = vrot.slane %v2552, 4
      %v2554 = vrot.slane %v1775, 5
      %v2555 = vsel %vm1104, %v2553, %v2554
      %v2556 = vrot.slane %v2554, 4
      %v2557 = vrot.slane %v1776, 5
      %v2558 = vsel %vm1104, %v2556, %v2557
      %s2559 = scalar_lea.vmem %s186, 10
      %v2560 = vld [vmem:[%s2559] sm:$0x3]
      %v2561 = vunpack.c.l.b16 %v2450
      %v2562 = vunpack.c.l.b16 %v2453
      %v2563 = vunpack.c.l.b16 %v2457
      %v2564 = vunpack.c.l.b16 %v2460
      %v2565 = vunpack.c.l.b16 %v2464
      %v2566 = vunpack.c.l.b16 %v2467
      %v2567 = vunpack.c.l.b16 %v2471
      %v2568 = vunpack.c.l.b16 %v2474
      %v2569 = vunpack.c.l.b16 %v2478
      %v2570 = vunpack.c.l.b16 %v2481
      %v2571 = vunpack.c.l.b16 %v2485
      %v2572 = vunpack.c.l.b16 %v2488
      %v2573 = vunpack.c.l.b16 %v2492
      %v2574 = vunpack.c.l.b16 %v2495
      %v2575 = vunpack.c.l.b16 %v2499
      %v2576 = vunpack.c.l.b16 %v2502
      %v2577 = vunpack.c.l.b16 %v2506
      %v2578 = vunpack.c.l.b16 %v2509
      %v2579 = vunpack.c.l.b16 %v2513
      %v2580 = vunpack.c.l.b16 %v2516
      %v2581 = vunpack.c.l.b16 %v2520
      %v2582 = vunpack.c.l.b16 %v2523
      %v2583 = vunpack.c.l.b16 %v2527
      %v2584 = vunpack.c.l.b16 %v2530
      %v2585 = vunpack.c.l.b16 %v2534
      %v2586 = vunpack.c.l.b16 %v2537
      %v2587 = vunpack.c.l.b16 %v2541
      %v2588 = vunpack.c.l.b16 %v2544
      %v2589 = vunpack.c.l.b16 %v2548
      %v2590 = vunpack.c.l.b16 %v2551
      %v2591 = vunpack.c.l.b16 %v2555
      %v2592 = vunpack.c.l.b16 %v2558
      %v2593 = vpack.c.b16 %v2562, %v2561
      %v2594 = vpack.c.b16 %v2564, %v2563
      %v2595 = vpack.c.b16 %v2566, %v2565
      %v2596 = vpack.c.b16 %v2568, %v2567
      %v2597 = vpack.c.b16 %v2570, %v2569
      %v2598 = vpack.c.b16 %v2572, %v2571
      %v2599 = vpack.c.b16 %v2574, %v2573
      %v2600 = vpack.c.b16 %v2576, %v2575
      %v2601 = vpack.c.b16 %v2578, %v2577
      %v2602 = vpack.c.b16 %v2580, %v2579
      %v2603 = vpack.c.b16 %v2582, %v2581
      %v2604 = vpack.c.b16 %v2584, %v2583
      %v2605 = vpack.c.b16 %v2586, %v2585
      %v2606 = vpack.c.b16 %v2588, %v2587
      %v2607 = vpack.c.b16 %v2590, %v2589
      %v2608 = vpack.c.b16 %v2592, %v2591
      %v2610 = vsel %vm692, %v2593, 0
      %v2613 = vsel %vm692, %v2594, 0
      %v2616 = vsel %vm692, %v2595, 0
      %v2619 = vsel %vm692, %v2596, 0
      %v2622 = vsel %vm692, %v2597, 0
      %v2625 = vsel %vm692, %v2598, 0
      %v2628 = vsel %vm692, %v2599, 0
      %v2631 = vsel %vm692, %v2600, 0
      %v2634 = vsel %vm692, %v2601, 0
      %v2637 = vsel %vm692, %v2602, 0
      %v2640 = vsel %vm692, %v2603, 0
      %v2643 = vsel %vm692, %v2604, 0
      %v2646 = vsel %vm692, %v2605, 0
      %v2649 = vsel %vm692, %v2606, 0
      %v2652 = vsel %vm692, %v2607, 0
      %v2655 = vsel %vm692, %v2608, 0
      %v2658 = vsel %vm741, %v2560, 0
      %2660 = vmatpush.bf16.msra.mxu0 0
      %2661 = vmatpush.bf16.msra.mxu0 0
      %2662 = vmatpush.bf16.msra.mxu0 0
      %2663 = vmatpush.bf16.msra.mxu0 0
      %2664 = vmatpush.bf16.msra.mxu0 0
      %2665 = vmatpush.bf16.msra.mxu0 0
      %2666 = vmatpush.bf16.msra.mxu0 0
      %2667 = vmatpush.bf16.msra.mxu0 %v2658
      %2668 = vmatmul.bf16.gmra.mxu0 %v2610
      %v2669 = vpop.f32.mrf.mxu0
      %v2670 = vadd.f32 0.0, %v2669
      %v2671 = vpop.f32.mrf.mxu0
      %v2672 = vadd.f32 0.0, %v2671
      %2673 = vmatmul.bf16.gmra.mxu0 %v2613
      %v2674 = vpop.f32.mrf.mxu0
      %v2675 = vadd.f32 0.0, %v2674
      %v2676 = vpop.f32.mrf.mxu0
      %v2677 = vadd.f32 0.0, %v2676
      %2678 = vmatmul.bf16.gmra.mxu0 %v2616
      %v2679 = vpop.f32.mrf.mxu0
      %v2680 = vadd.f32 0.0, %v2679
      %v2681 = vpop.f32.mrf.mxu0
      %v2682 = vadd.f32 0.0, %v2681
      %2683 = vmatmul.bf16.gmra.mxu0 %v2619
      %v2684 = vpop.f32.mrf.mxu0
      %v2685 = vadd.f32 0.0, %v2684
      %v2686 = vpop.f32.mrf.mxu0
      %v2687 = vadd.f32 0.0, %v2686
      %2688 = vmatmul.bf16.gmra.mxu0 %v2622
      %v2689 = vpop.f32.mrf.mxu0
      %v2690 = vadd.f32 0.0, %v2689
      %v2691 = vpop.f32.mrf.mxu0
      %v2692 = vadd.f32 0.0, %v2691
      %2693 = vmatmul.bf16.gmra.mxu0 %v2625
      %v2694 = vpop.f32.mrf.mxu0
      %v2695 = vadd.f32 0.0, %v2694
      %v2696 = vpop.f32.mrf.mxu0
      %v2697 = vadd.f32 0.0, %v2696
      %2698 = vmatmul.bf16.gmra.mxu0 %v2628
      %v2699 = vpop.f32.mrf.mxu0
      %v2700 = vadd.f32 0.0, %v2699
      %v2701 = vpop.f32.mrf.mxu0
      %v2702 = vadd.f32 0.0, %v2701
      %2703 = vmatmul.bf16.gmra.mxu0 %v2631
      %v2704 = vpop.f32.mrf.mxu0
      %v2705 = vadd.f32 0.0, %v2704
      %v2706 = vpop.f32.mrf.mxu0
      %v2707 = vadd.f32 0.0, %v2706
      %2708 = vmatmul.bf16.gmra.mxu0 %v2634
      %v2709 = vpop.f32.mrf.mxu0
      %v2710 = vadd.f32 0.0, %v2709
      %v2711 = vpop.f32.mrf.mxu0
      %v2712 = vadd.f32 0.0, %v2711
      %2713 = vmatmul.bf16.gmra.mxu0 %v2637
      %v2714 = vpop.f32.mrf.mxu0
      %v2715 = vadd.f32 0.0, %v2714
      %v2716 = vpop.f32.mrf.mxu0
      %v2717 = vadd.f32 0.0, %v2716
      %2718 = vmatmul.bf16.gmra.mxu0 %v2640
      %v2719 = vpop.f32.mrf.mxu0
      %v2720 = vadd.f32 0.0, %v2719
      %v2721 = vpop.f32.mrf.mxu0
      %v2722 = vadd.f32 0.0, %v2721
      %2723 = vmatmul.bf16.gmra.mxu0 %v2643
      %v2724 = vpop.f32.mrf.mxu0
      %v2725 = vadd.f32 0.0, %v2724
      %v2726 = vpop.f32.mrf.mxu0
      %v2727 = vadd.f32 0.0, %v2726
      %2728 = vmatmul.bf16.gmra.mxu0 %v2646
      %v2729 = vpop.f32.mrf.mxu0
      %v2730 = vadd.f32 0.0, %v2729
      %v2731 = vpop.f32.mrf.mxu0
      %v2732 = vadd.f32 0.0, %v2731
      %2733 = vmatmul.bf16.gmra.mxu0 %v2649
      %v2734 = vpop.f32.mrf.mxu0
      %v2735 = vadd.f32 0.0, %v2734
      %v2736 = vpop.f32.mrf.mxu0
      %v2737 = vadd.f32 0.0, %v2736
      %2738 = vmatmul.bf16.gmra.mxu0 %v2652
      %v2739 = vpop.f32.mrf.mxu0
      %v2740 = vadd.f32 0.0, %v2739
      %v2741 = vpop.f32.mrf.mxu0
      %v2742 = vadd.f32 0.0, %v2741
      %2743 = vmatmul.bf16.gmra.mxu0 %v2655
      %v2744 = vpop.f32.mrf.mxu0
      %v2745 = vadd.f32 0.0, %v2744
      %v2746 = vpop.f32.mrf.mxu0
      %v2747 = vadd.f32 0.0, %v2746
      %2748 = vdwg.mxu0
      %v2749 = vadd.f32 %v2351, %v2670
      %v2750 = vadd.f32 %v2352, %v2672
      %v2751 = vadd.f32 %v2353, %v2675
      %v2752 = vadd.f32 %v2354, %v2677
      %v2753 = vadd.f32 %v2355, %v2680
      %v2754 = vadd.f32 %v2356, %v2682
      %v2755 = vadd.f32 %v2357, %v2685
      %v2756 = vadd.f32 %v2358, %v2687
      %v2757 = vadd.f32 %v2359, %v2690
      %v2758 = vadd.f32 %v2360, %v2692
      %v2759 = vadd.f32 %v2361, %v2695
      %v2760 = vadd.f32 %v2362, %v2697
      %v2761 = vadd.f32 %v2363, %v2700
      %v2762 = vadd.f32 %v2364, %v2702
      %v2763 = vadd.f32 %v2365, %v2705
      %v2764 = vadd.f32 %v2366, %v2707
      %v2765 = vadd.f32 %v2367, %v2710
      %v2766 = vadd.f32 %v2368, %v2712
      %v2767 = vadd.f32 %v2369, %v2715
      %v2768 = vadd.f32 %v2370, %v2717
      %v2769 = vadd.f32 %v2371, %v2720
      %v2770 = vadd.f32 %v2372, %v2722
      %v2771 = vadd.f32 %v2373, %v2725
      %v2772 = vadd.f32 %v2374, %v2727
      %v2773 = vadd.f32 %v2375, %v2730
      %v2774 = vadd.f32 %v2376, %v2732
      %v2775 = vadd.f32 %v2377, %v2735
      %v2776 = vadd.f32 %v2378, %v2737
      %v2777 = vadd.f32 %v2379, %v2740
      %v2778 = vadd.f32 %v2380, %v2742
      %v2779 = vadd.f32 %v2381, %v2745
      %v2780 = vadd.f32 %v2382, %v2747
      %s2781 = sadd.s32 %s202, 2
      %s2782 = smul.u32 %s2781, 3
      %s2783 = smul.addr %s2782, 4
      %s2784 = scalar_lea.vmem %s182, %s2783
      %v2785 = vld [vmem:[%s2784] sm:$0xf]
      %v2786 = vld [vmem:[%s2784 + $0x4] sm:$0xf]
      %v2787 = vld [vmem:[%s2784 + $0xc] sm:$0xf]
      %v2788 = vld [vmem:[%s2784 + $0x10] sm:$0xf]
      %v2789 = vld [vmem:[%s2784 + $0x18] sm:$0xf]
      %v2790 = vld [vmem:[%s2784 + $0x1c] sm:$0xf]
      %v2791 = vld [vmem:[%s2784 + $0x24] sm:$0xf]
      %v2792 = vld [vmem:[%s2784 + $0x28] sm:$0xf]
      %v2793 = vld [vmem:[%s2784 + $0x30] sm:$0xf]
      %v2794 = vld [vmem:[%s2784 + $0x34] sm:$0xf]
      %v2795 = vld [vmem:[%s2784 + $0x3c] sm:$0xf]
      %v2796 = vld [vmem:[%s2784 + $0x40] sm:$0xf]
      %v2797 = vld [vmem:[%s2784 + $0x48] sm:$0xf]
      %v2798 = vld [vmem:[%s2784 + $0x4c] sm:$0xf]
      %v2799 = vld [vmem:[%s2784 + $0x54] sm:$0xf]
      %v2800 = vld [vmem:[%s2784 + $0x58] sm:$0xf]
      %v2801 = vld [vmem:[%s2784 + $0x60] sm:$0xf]
      %v2802 = vld [vmem:[%s2784 + $0x64] sm:$0xf]
      %v2803 = vld [vmem:[%s2784 + $0x6c] sm:$0xf]
      %v2804 = vld [vmem:[%s2784 + $0x70] sm:$0xf]
      %v2805 = vld [vmem:[%s2784 + $0x78] sm:$0xf]
      %v2806 = vld [vmem:[%s2784 + $0x7c] sm:$0xf]
      %v2807 = vld [vmem:[%s2784 + $0x84] sm:$0xf]
      %v2808 = vld [vmem:[%s2784 + $0x88] sm:$0xf]
      %v2809 = vld [vmem:[%s2784 + $0x90] sm:$0xf]
      %v2810 = vld [vmem:[%s2784 + $0x94] sm:$0xf]
      %v2811 = vld [vmem:[%s2784 + $0x9c] sm:$0xf]
      %v2812 = vld [vmem:[%s2784 + $0xa0] sm:$0xf]
      %v2813 = vld [vmem:[%s2784 + $0xa8] sm:$0xf]
      %v2814 = vld [vmem:[%s2784 + $0xac] sm:$0xf]
      %v2815 = vld [vmem:[%s2784 + $0xb4] sm:$0xf]
      %v2816 = vld [vmem:[%s2784 + $0xb8] sm:$0xf]
      %s2817 = scalar_lea.vmem %s186, 12
      %v2818 = vld [vmem:[%s2817] sm:$0x3]
      %v2851 = vunpack.c.l.b16 %v2785
      %v2852 = vunpack.c.l.b16 %v2786
      %v2853 = vunpack.c.l.b16 %v2787
      %v2854 = vunpack.c.l.b16 %v2788
      %v2855 = vunpack.c.l.b16 %v2789
      %v2856 = vunpack.c.l.b16 %v2790
      %v2857 = vunpack.c.l.b16 %v2791
      %v2858 = vunpack.c.l.b16 %v2792
      %v2859 = vunpack.c.l.b16 %v2793
      %v2860 = vunpack.c.l.b16 %v2794
      %v2861 = vunpack.c.l.b16 %v2795
      %v2862 = vunpack.c.l.b16 %v2796
      %v2863 = vunpack.c.l.b16 %v2797
      %v2864 = vunpack.c.l.b16 %v2798
      %v2865 = vunpack.c.l.b16 %v2799
      %v2866 = vunpack.c.l.b16 %v2800
      %v2867 = vunpack.c.l.b16 %v2801
      %v2868 = vunpack.c.l.b16 %v2802
      %v2869 = vunpack.c.l.b16 %v2803
      %v2870 = vunpack.c.l.b16 %v2804
      %v2871 = vunpack.c.l.b16 %v2805
      %v2872 = vunpack.c.l.b16 %v2806
      %v2873 = vunpack.c.l.b16 %v2807
      %v2874 = vunpack.c.l.b16 %v2808
      %v2875 = vunpack.c.l.b16 %v2809
      %v2876 = vunpack.c.l.b16 %v2810
      %v2877 = vunpack.c.l.b16 %v2811
      %v2878 = vunpack.c.l.b16 %v2812
      %v2879 = vunpack.c.l.b16 %v2813
      %v2880 = vunpack.c.l.b16 %v2814
      %v2881 = vunpack.c.l.b16 %v2815
      %v2882 = vunpack.c.l.b16 %v2816
      %v2883 = vpack.c.b16 %v2852, %v2851
      %v2884 = vpack.c.b16 %v2854, %v2853
      %v2885 = vpack.c.b16 %v2856, %v2855
      %v2886 = vpack.c.b16 %v2858, %v2857
      %v2887 = vpack.c.b16 %v2860, %v2859
      %v2888 = vpack.c.b16 %v2862, %v2861
      %v2889 = vpack.c.b16 %v2864, %v2863
      %v2890 = vpack.c.b16 %v2866, %v2865
      %v2891 = vpack.c.b16 %v2868, %v2867
      %v2892 = vpack.c.b16 %v2870, %v2869
      %v2893 = vpack.c.b16 %v2872, %v2871
      %v2894 = vpack.c.b16 %v2874, %v2873
      %v2895 = vpack.c.b16 %v2876, %v2875
      %v2896 = vpack.c.b16 %v2878, %v2877
      %v2897 = vpack.c.b16 %v2880, %v2879
      %v2898 = vpack.c.b16 %v2882, %v2881
      %v2900 = vsel %vm692, %v2883, 0
      %v2903 = vsel %vm692, %v2884, 0
      %v2906 = vsel %vm692, %v2885, 0
      %v2909 = vsel %vm692, %v2886, 0
      %v2912 = vsel %vm692, %v2887, 0
      %v2915 = vsel %vm692, %v2888, 0
      %v2918 = vsel %vm692, %v2889, 0
      %v2921 = vsel %vm692, %v2890, 0
      %v2924 = vsel %vm692, %v2891, 0
      %v2927 = vsel %vm692, %v2892, 0
      %v2930 = vsel %vm692, %v2893, 0
      %v2933 = vsel %vm692, %v2894, 0
      %v2936 = vsel %vm692, %v2895, 0
      %v2939 = vsel %vm692, %v2896, 0
      %v2942 = vsel %vm692, %v2897, 0
      %v2945 = vsel %vm692, %v2898, 0
      %v2948 = vsel %vm741, %v2818, 0
      %2950 = vmatpush.bf16.msra.mxu0 0
      %2951 = vmatpush.bf16.msra.mxu0 0
      %2952 = vmatpush.bf16.msra.mxu0 0
      %2953 = vmatpush.bf16.msra.mxu0 0
      %2954 = vmatpush.bf16.msra.mxu0 0
      %2955 = vmatpush.bf16.msra.mxu0 0
      %2956 = vmatpush.bf16.msra.mxu0 0
      %2957 = vmatpush.bf16.msra.mxu0 %v2948
      %2958 = vmatmul.bf16.gmra.mxu0 %v2900
      %v2959 = vpop.f32.mrf.mxu0
      %v2960 = vadd.f32 0.0, %v2959
      %v2961 = vpop.f32.mrf.mxu0
      %v2962 = vadd.f32 0.0, %v2961
      %2963 = vmatmul.bf16.gmra.mxu0 %v2903
      %v2964 = vpop.f32.mrf.mxu0
      %v2965 = vadd.f32 0.0, %v2964
      %v2966 = vpop.f32.mrf.mxu0
      %v2967 = vadd.f32 0.0, %v2966
      %2968 = vmatmul.bf16.gmra.mxu0 %v2906
      %v2969 = vpop.f32.mrf.mxu0
      %v2970 = vadd.f32 0.0, %v2969
      %v2971 = vpop.f32.mrf.mxu0
      %v2972 = vadd.f32 0.0, %v2971
      %2973 = vmatmul.bf16.gmra.mxu0 %v2909
      %v2974 = vpop.f32.mrf.mxu0
      %v2975 = vadd.f32 0.0, %v2974
      %v2976 = vpop.f32.mrf.mxu0
      %v2977 = vadd.f32 0.0, %v2976
      %2978 = vmatmul.bf16.gmra.mxu0 %v2912
      %v2979 = vpop.f32.mrf.mxu0
      %v2980 = vadd.f32 0.0, %v2979
      %v2981 = vpop.f32.mrf.mxu0
      %v2982 = vadd.f32 0.0, %v2981
      %2983 = vmatmul.bf16.gmra.mxu0 %v2915
      %v2984 = vpop.f32.mrf.mxu0
      %v2985 = vadd.f32 0.0, %v2984
      %v2986 = vpop.f32.mrf.mxu0
      %v2987 = vadd.f32 0.0, %v2986
      %2988 = vmatmul.bf16.gmra.mxu0 %v2918
      %v2989 = vpop.f32.mrf.mxu0
      %v2990 = vadd.f32 0.0, %v2989
      %v2991 = vpop.f32.mrf.mxu0
      %v2992 = vadd.f32 0.0, %v2991
      %2993 = vmatmul.bf16.gmra.mxu0 %v2921
      %v2994 = vpop.f32.mrf.mxu0
      %v2995 = vadd.f32 0.0, %v2994
      %v2996 = vpop.f32.mrf.mxu0
      %v2997 = vadd.f32 0.0, %v2996
      %2998 = vmatmul.bf16.gmra.mxu0 %v2924
      %v2999 = vpop.f32.mrf.mxu0
      %v3000 = vadd.f32 0.0, %v2999
      %v3001 = vpop.f32.mrf.mxu0
      %v3002 = vadd.f32 0.0, %v3001
      %3003 = vmatmul.bf16.gmra.mxu0 %v2927
      %v3004 = vpop.f32.mrf.mxu0
      %v3005 = vadd.f32 0.0, %v3004
      %v3006 = vpop.f32.mrf.mxu0
      %v3007 = vadd.f32 0.0, %v3006
      %3008 = vmatmul.bf16.gmra.mxu0 %v2930
      %v3009 = vpop.f32.mrf.mxu0
      %v3010 = vadd.f32 0.0, %v3009
      %v3011 = vpop.f32.mrf.mxu0
      %v3012 = vadd.f32 0.0, %v3011
      %3013 = vmatmul.bf16.gmra.mxu0 %v2933
      %v3014 = vpop.f32.mrf.mxu0
      %v3015 = vadd.f32 0.0, %v3014
      %v3016 = vpop.f32.mrf.mxu0
      %v3017 = vadd.f32 0.0, %v3016
      %3018 = vmatmul.bf16.gmra.mxu0 %v2936
      %v3019 = vpop.f32.mrf.mxu0
      %v3020 = vadd.f32 0.0, %v3019
      %v3021 = vpop.f32.mrf.mxu0
      %v3022 = vadd.f32 0.0, %v3021
      %3023 = vmatmul.bf16.gmra.mxu0 %v2939
      %v3024 = vpop.f32.mrf.mxu0
      %v3025 = vadd.f32 0.0, %v3024
      %v3026 = vpop.f32.mrf.mxu0
      %v3027 = vadd.f32 0.0, %v3026
      %3028 = vmatmul.bf16.gmra.mxu0 %v2942
      %v3029 = vpop.f32.mrf.mxu0
      %v3030 = vadd.f32 0.0, %v3029
      %v3031 = vpop.f32.mrf.mxu0
      %v3032 = vadd.f32 0.0, %v3031
      %3033 = vmatmul.bf16.gmra.mxu0 %v2945
      %v3034 = vpop.f32.mrf.mxu0
      %v3035 = vadd.f32 0.0, %v3034
      %v3036 = vpop.f32.mrf.mxu0
      %v3037 = vadd.f32 0.0, %v3036
      %3038 = vdwg.mxu0
      %v3039 = vadd.f32 %v2749, %v2960
      %v3040 = vadd.f32 %v2750, %v2962
      %v3041 = vadd.f32 %v2751, %v2965
      %v3042 = vadd.f32 %v2752, %v2967
      %v3043 = vadd.f32 %v2753, %v2970
      %v3044 = vadd.f32 %v2754, %v2972
      %v3045 = vadd.f32 %v2755, %v2975
      %v3046 = vadd.f32 %v2756, %v2977
      %v3047 = vadd.f32 %v2757, %v2980
      %v3048 = vadd.f32 %v2758, %v2982
      %v3049 = vadd.f32 %v2759, %v2985
      %v3050 = vadd.f32 %v2760, %v2987
      %v3051 = vadd.f32 %v2761, %v2990
      %v3052 = vadd.f32 %v2762, %v2992
      %v3053 = vadd.f32 %v2763, %v2995
      %v3054 = vadd.f32 %v2764, %v2997
      %v3055 = vadd.f32 %v2765, %v3000
      %v3056 = vadd.f32 %v2766, %v3002
      %v3057 = vadd.f32 %v2767, %v3005
      %v3058 = vadd.f32 %v2768, %v3007
      %v3059 = vadd.f32 %v2769, %v3010
      %v3060 = vadd.f32 %v2770, %v3012
      %v3061 = vadd.f32 %v2771, %v3015
      %v3062 = vadd.f32 %v2772, %v3017
      %v3063 = vadd.f32 %v2773, %v3020
      %v3064 = vadd.f32 %v2774, %v3022
      %v3065 = vadd.f32 %v2775, %v3025
      %v3066 = vadd.f32 %v2776, %v3027
      %v3067 = vadd.f32 %v2777, %v3030
      %v3068 = vadd.f32 %v2778, %v3032
      %v3069 = vadd.f32 %v2779, %v3035
      %v3070 = vadd.f32 %v2780, %v3037
      %v3071 = vld [vmem:[%s2784] sm:$0xf]
      %v3072 = vld [vmem:[%s2784 + $0x4] sm:$0xf]
      %v3073 = vld [vmem:[%s2784 + $0x8] sm:$0x1]
      %v3074 = vld [vmem:[%s2784 + $0xc] sm:$0xf]
      %v3075 = vld [vmem:[%s2784 + $0x10] sm:$0xf]
      %v3076 = vld [vmem:[%s2784 + $0x14] sm:$0x1]
      %v3077 = vld [vmem:[%s2784 + $0x18] sm:$0xf]
      %v3078 = vld [vmem:[%s2784 + $0x1c] sm:$0xf]
      %v3079 = vld [vmem:[%s2784 + $0x20] sm:$0x1]
      %v3080 = vld [vmem:[%s2784 + $0x24] sm:$0xf]
      %v3081 = vld [vmem:[%s2784 + $0x28] sm:$0xf]
      %v3082 = vld [vmem:[%s2784 + $0x2c] sm:$0x1]
      %v3083 = vld [vmem:[%s2784 + $0x30] sm:$0xf]
      %v3084 = vld [vmem:[%s2784 + $0x34] sm:$0xf]
      %v3085 = vld [vmem:[%s2784 + $0x38] sm:$0x1]
      %v3086 = vld [vmem:[%s2784 + $0x3c] sm:$0xf]
      %v3087 = vld [vmem:[%s2784 + $0x40] sm:$0xf]
      %v3088 = vld [vmem:[%s2784 + $0x44] sm:$0x1]
      %v3089 = vld [vmem:[%s2784 + $0x48] sm:$0xf]
      %v3090 = vld [vmem:[%s2784 + $0x4c] sm:$0xf]
      %v3091 = vld [vmem:[%s2784 + $0x50] sm:$0x1]
      %v3092 = vld [vmem:[%s2784 + $0x54] sm:$0xf]
      %v3093 = vld [vmem:[%s2784 + $0x58] sm:$0xf]
      %v3094 = vld [vmem:[%s2784 + $0x5c] sm:$0x1]
      %v3095 = vld [vmem:[%s2784 + $0x60] sm:$0xf]
      %v3096 = vld [vmem:[%s2784 + $0x64] sm:$0xf]
      %v3097 = vld [vmem:[%s2784 + $0x68] sm:$0x1]
      %v3098 = vld [vmem:[%s2784 + $0x6c] sm:$0xf]
      %v3099 = vld [vmem:[%s2784 + $0x70] sm:$0xf]
      %v3100 = vld [vmem:[%s2784 + $0x74] sm:$0x1]
      %v3101 = vld [vmem:[%s2784 + $0x78] sm:$0xf]
      %v3102 = vld [vmem:[%s2784 + $0x7c] sm:$0xf]
      %v3103 = vld [vmem:[%s2784 + $0x80] sm:$0x1]
      %v3104 = vld [vmem:[%s2784 + $0x84] sm:$0xf]
      %v3105 = vld [vmem:[%s2784 + $0x88] sm:$0xf]
      %v3106 = vld [vmem:[%s2784 + $0x8c] sm:$0x1]
      %v3107 = vld [vmem:[%s2784 + $0x90] sm:$0xf]
      %v3108 = vld [vmem:[%s2784 + $0x94] sm:$0xf]
      %v3109 = vld [vmem:[%s2784 + $0x98] sm:$0x1]
      %v3110 = vld [vmem:[%s2784 + $0x9c] sm:$0xf]
      %v3111 = vld [vmem:[%s2784 + $0xa0] sm:$0xf]
      %v3112 = vld [vmem:[%s2784 + $0xa4] sm:$0x1]
      %v3113 = vld [vmem:[%s2784 + $0xa8] sm:$0xf]
      %v3114 = vld [vmem:[%s2784 + $0xac] sm:$0xf]
      %v3115 = vld [vmem:[%s2784 + $0xb0] sm:$0x1]
      %v3116 = vld [vmem:[%s2784 + $0xb4] sm:$0xf]
      %v3117 = vld [vmem:[%s2784 + $0xb8] sm:$0xf]
      %v3118 = vld [vmem:[%s2784 + $0xbc] sm:$0x1]
      %v3120 = vshrl.u32 %v3071, 16
      %v3122 = vrot.slane %v3120, 4
      %v3123 = vshll.u32 %v3071, 16
      %v3125 = vrot.slane %v3123, 5
      %v3126 = vor.u32 %v3122, %v3125
      %v3127 = vrot.slane %v3126, 4
      %v3129 = vshll.u32 %v3072, 16
      %v3131 = vrot.slane %v3129, 5
      %v3132 = vsel %vm257, %v3127, %v3131
      %v3133 = vshrl.u32 %v3072, 16
      %v3135 = vrot.slane %v3133, 4
      %v3136 = vor.u32 %v3135, %v3131
      %v3137 = vrot.slane %v3136, 4
      %v3139 = vshll.u32 %v3073, 16
      %v3141 = vrot.slane %v3139, 5
      %v3142 = vsel %vm257, %v3137, %v3141
      %v3144 = vshrl.u32 %v3074, 16
      %v3146 = vrot.slane %v3144, 4
      %v3147 = vshll.u32 %v3074, 16
      %v3149 = vrot.slane %v3147, 5
      %v3150 = vor.u32 %v3146, %v3149
      %v3151 = vrot.slane %v3150, 4
      %v3153 = vshll.u32 %v3075, 16
      %v3155 = vrot.slane %v3153, 5
      %v3156 = vsel %vm257, %v3151, %v3155
      %v3157 = vshrl.u32 %v3075, 16
      %v3159 = vrot.slane %v3157, 4
      %v3160 = vor.u32 %v3159, %v3155
      %v3161 = vrot.slane %v3160, 4
      %v3163 = vshll.u32 %v3076, 16
      %v3165 = vrot.slane %v3163, 5
      %v3166 = vsel %vm257, %v3161, %v3165
      %v3168 = vshrl.u32 %v3077, 16
      %v3170 = vrot.slane %v3168, 4
      %v3171 = vshll.u32 %v3077, 16
      %v3173 = vrot.slane %v3171, 5
      %v3174 = vor.u32 %v3170, %v3173
      %v3175 = vrot.slane %v3174, 4
      %v3177 = vshll.u32 %v3078, 16
      %v3179 = vrot.slane %v3177, 5
      %v3180 = vsel %vm257, %v3175, %v3179
      %v3181 = vshrl.u32 %v3078, 16
      %v3183 = vrot.slane %v3181, 4
      %v3184 = vor.u32 %v3183, %v3179
      %v3185 = vrot.slane %v3184, 4
      %v3187 = vshll.u32 %v3079, 16
      %v3189 = vrot.slane %v3187, 5
      %v3190 = vsel %vm257, %v3185, %v3189
      %v3192 = vshrl.u32 %v3080, 16
      %v3194 = vrot.slane %v3192, 4
      %v3195 = vshll.u32 %v3080, 16
      %v3197 = vrot.slane %v3195, 5
      %v3198 = vor.u32 %v3194, %v3197
      %v3199 = vrot.slane %v3198, 4
      %v3201 = vshll.u32 %v3081, 16
      %v3203 = vrot.slane %v3201, 5
      %v3204 = vsel %vm257, %v3199, %v3203
      %v3205 = vshrl.u32 %v3081, 16
      %v3207 = vrot.slane %v3205, 4
      %v3208 = vor.u32 %v3207, %v3203
      %v3209 = vrot.slane %v3208, 4
      %v3211 = vshll.u32 %v3082, 16
      %v3213 = vrot.slane %v3211, 5
      %v3214 = vsel %vm257, %v3209, %v3213
      %v3216 = vshrl.u32 %v3083, 16
      %v3218 = vrot.slane %v3216, 4
      %v3219 = vshll.u32 %v3083, 16
      %v3221 = vrot.slane %v3219, 5
      %v3222 = vor.u32 %v3218, %v3221
      %v3223 = vrot.slane %v3222, 4
      %v3225 = vshll.u32 %v3084, 16
      %v3227 = vrot.slane %v3225, 5
      %v3228 = vsel %vm257, %v3223, %v3227
      %v3229 = vshrl.u32 %v3084, 16
      %v3231 = vrot.slane %v3229, 4
      %v3232 = vor.u32 %v3231, %v3227
      %v3233 = vrot.slane %v3232, 4
      %v3235 = vshll.u32 %v3085, 16
      %v3237 = vrot.slane %v3235, 5
      %v3238 = vsel %vm257, %v3233, %v3237
      %v3240 = vshrl.u32 %v3086, 16
      %v3242 = vrot.slane %v3240, 4
      %v3243 = vshll.u32 %v3086, 16
      %v3245 = vrot.slane %v3243, 5
      %v3246 = vor.u32 %v3242, %v3245
      %v3247 = vrot.slane %v3246, 4
      %v3249 = vshll.u32 %v3087, 16
      %v3251 = vrot.slane %v3249, 5
      %v3252 = vsel %vm257, %v3247, %v3251
      %v3253 = vshrl.u32 %v3087, 16
      %v3255 = vrot.slane %v3253, 4
      %v3256 = vor.u32 %v3255, %v3251
      %v3257 = vrot.slane %v3256, 4
      %v3259 = vshll.u32 %v3088, 16
      %v3261 = vrot.slane %v3259, 5
      %v3262 = vsel %vm257, %v3257, %v3261
      %v3264 = vshrl.u32 %v3089, 16
      %v3266 = vrot.slane %v3264, 4
      %v3267 = vshll.u32 %v3089, 16
      %v3269 = vrot.slane %v3267, 5
      %v3270 = vor.u32 %v3266, %v3269
      %v3271 = vrot.slane %v3270, 4
      %v3273 = vshll.u32 %v3090, 16
      %v3275 = vrot.slane %v3273, 5
      %v3276 = vsel %vm257, %v3271, %v3275
      %v3277 = vshrl.u32 %v3090, 16
      %v3279 = vrot.slane %v3277, 4
      %v3280 = vor.u32 %v3279, %v3275
      %v3281 = vrot.slane %v3280, 4
      %v3283 = vshll.u32 %v3091, 16
      %v3285 = vrot.slane %v3283, 5
      %v3286 = vsel %vm257, %v3281, %v3285
      %v3288 = vshrl.u32 %v3092, 16
      %v3290 = vrot.slane %v3288, 4
      %v3291 = vshll.u32 %v3092, 16
      %v3293 = vrot.slane %v3291, 5
      %v3294 = vor.u32 %v3290, %v3293
      %v3295 = vrot.slane %v3294, 4
      %v3297 = vshll.u32 %v3093, 16
      %v3299 = vrot.slane %v3297, 5
      %v3300 = vsel %vm257, %v3295, %v3299
      %v3301 = vshrl.u32 %v3093, 16
      %v3303 = vrot.slane %v3301, 4
      %v3304 = vor.u32 %v3303, %v3299
      %v3305 = vrot.slane %v3304, 4
      %v3307 = vshll.u32 %v3094, 16
      %v3309 = vrot.slane %v3307, 5
      %v3310 = vsel %vm257, %v3305, %v3309
      %v3312 = vshrl.u32 %v3095, 16
      %v3314 = vrot.slane %v3312, 4
      %v3315 = vshll.u32 %v3095, 16
      %v3317 = vrot.slane %v3315, 5
      %v3318 = vor.u32 %v3314, %v3317
      %v3319 = vrot.slane %v3318, 4
      %v3321 = vshll.u32 %v3096, 16
      %v3323 = vrot.slane %v3321, 5
      %v3324 = vsel %vm257, %v3319, %v3323
      %v3325 = vshrl.u32 %v3096, 16
      %v3327 = vrot.slane %v3325, 4
      %v3328 = vor.u32 %v3327, %v3323
      %v3329 = vrot.slane %v3328, 4
      %v3331 = vshll.u32 %v3097, 16
      %v3333 = vrot.slane %v3331, 5
      %v3334 = vsel %vm257, %v3329, %v3333
      %v3336 = vshrl.u32 %v3098, 16
      %v3338 = vrot.slane %v3336, 4
      %v3339 = vshll.u32 %v3098, 16
      %v3341 = vrot.slane %v3339, 5
      %v3342 = vor.u32 %v3338, %v3341
      %v3343 = vrot.slane %v3342, 4
      %v3345 = vshll.u32 %v3099, 16
      %v3347 = vrot.slane %v3345, 5
      %v3348 = vsel %vm257, %v3343, %v3347
      %v3349 = vshrl.u32 %v3099, 16
      %v3351 = vrot.slane %v3349, 4
      %v3352 = vor.u32 %v3351, %v3347
      %v3353 = vrot.slane %v3352, 4
      %v3355 = vshll.u32 %v3100, 16
      %v3357 = vrot.slane %v3355, 5
      %v3358 = vsel %vm257, %v3353, %v3357
      %v3360 = vshrl.u32 %v3101, 16
      %v3362 = vrot.slane %v3360, 4
      %v3363 = vshll.u32 %v3101, 16
      %v3365 = vrot.slane %v3363, 5
      %v3366 = vor.u32 %v3362, %v3365
      %v3367 = vrot.slane %v3366, 4
      %v3369 = vshll.u32 %v3102, 16
      %v3371 = vrot.slane %v3369, 5
      %v3372 = vsel %vm257, %v3367, %v3371
      %v3373 = vshrl.u32 %v3102, 16
      %v3375 = vrot.slane %v3373, 4
      %v3376 = vor.u32 %v3375, %v3371
      %v3377 = vrot.slane %v3376, 4
      %v3379 = vshll.u32 %v3103, 16
      %v3381 = vrot.slane %v3379, 5
      %v3382 = vsel %vm257, %v3377, %v3381
      %v3384 = vshrl.u32 %v3104, 16
      %v3386 = vrot.slane %v3384, 4
      %v3387 = vshll.u32 %v3104, 16
      %v3389 = vrot.slane %v3387, 5
      %v3390 = vor.u32 %v3386, %v3389
      %v3391 = vrot.slane %v3390, 4
      %v3393 = vshll.u32 %v3105, 16
      %v3395 = vrot.slane %v3393, 5
      %v3396 = vsel %vm257, %v3391, %v3395
      %v3397 = vshrl.u32 %v3105, 16
      %v3399 = vrot.slane %v3397, 4
      %v3400 = vor.u32 %v3399, %v3395
      %v3401 = vrot.slane %v3400, 4
      %v3403 = vshll.u32 %v3106, 16
      %v3405 = vrot.slane %v3403, 5
      %v3406 = vsel %vm257, %v3401, %v3405
      %v3408 = vshrl.u32 %v3107, 16
      %v3410 = vrot.slane %v3408, 4
      %v3411 = vshll.u32 %v3107, 16
      %v3413 = vrot.slane %v3411, 5
      %v3414 = vor.u32 %v3410, %v3413
      %v3415 = vrot.slane %v3414, 4
      %v3417 = vshll.u32 %v3108, 16
      %v3419 = vrot.slane %v3417, 5
      %v3420 = vsel %vm257, %v3415, %v3419
      %v3421 = vshrl.u32 %v3108, 16
      %v3423 = vrot.slane %v3421, 4
      %v3424 = vor.u32 %v3423, %v3419
      %v3425 = vrot.slane %v3424, 4
      %v3427 = vshll.u32 %v3109, 16
      %v3429 = vrot.slane %v3427, 5
      %v3430 = vsel %vm257, %v3425, %v3429
      %v3432 = vshrl.u32 %v3110, 16
      %v3434 = vrot.slane %v3432, 4
      %v3435 = vshll.u32 %v3110, 16
      %v3437 = vrot.slane %v3435, 5
      %v3438 = vor.u32 %v3434, %v3437
      %v3439 = vrot.slane %v3438, 4
      %v3441 = vshll.u32 %v3111, 16
      %v3443 = vrot.slane %v3441, 5
      %v3444 = vsel %vm257, %v3439, %v3443
      %v3445 = vshrl.u32 %v3111, 16
      %v3447 = vrot.slane %v3445, 4
      %v3448 = vor.u32 %v3447, %v3443
      %v3449 = vrot.slane %v3448, 4
      %v3451 = vshll.u32 %v3112, 16
      %v3453 = vrot.slane %v3451, 5
      %v3454 = vsel %vm257, %v3449, %v3453
      %v3456 = vshrl.u32 %v3113, 16
      %v3458 = vrot.slane %v3456, 4
      %v3459 = vshll.u32 %v3113, 16
      %v3461 = vrot.slane %v3459, 5
      %v3462 = vor.u32 %v3458, %v3461
      %v3463 = vrot.slane %v3462, 4
      %v3465 = vshll.u32 %v3114, 16
      %v3467 = vrot.slane %v3465, 5
      %v3468 = vsel %vm257, %v3463, %v3467
      %v3469 = vshrl.u32 %v3114, 16
      %v3471 = vrot.slane %v3469, 4
      %v3472 = vor.u32 %v3471, %v3467
      %v3473 = vrot.slane %v3472, 4
      %v3475 = vshll.u32 %v3115, 16
      %v3477 = vrot.slane %v3475, 5
      %v3478 = vsel %vm257, %v3473, %v3477
      %v3480 = vshrl.u32 %v3116, 16
      %v3482 = vrot.slane %v3480, 4
      %v3483 = vshll.u32 %v3116, 16
      %v3485 = vrot.slane %v3483, 5
      %v3486 = vor.u32 %v3482, %v3485
      %v3487 = vrot.slane %v3486, 4
      %v3489 = vshll.u32 %v3117, 16
      %v3491 = vrot.slane %v3489, 5
      %v3492 = vsel %vm257, %v3487, %v3491
      %v3493 = vshrl.u32 %v3117, 16
      %v3495 = vrot.slane %v3493, 4
      %v3496 = vor.u32 %v3495, %v3491
      %v3497 = vrot.slane %v3496, 4
      %v3499 = vshll.u32 %v3118, 16
      %v3501 = vrot.slane %v3499, 5
      %v3502 = vsel %vm257, %v3497, %v3501
      %s3503 = scalar_lea.vmem %s186, 14
      %v3504 = vld [vmem:[%s3503] sm:$0x3]
      %v3505 = vunpack.c.l.b16 %v3132
      %v3506 = vunpack.c.l.b16 %v3142
      %v3507 = vunpack.c.l.b16 %v3156
      %v3508 = vunpack.c.l.b16 %v3166
      %v3509 = vunpack.c.l.b16 %v3180
      %v3510 = vunpack.c.l.b16 %v3190
      %v3511 = vunpack.c.l.b16 %v3204
      %v3512 = vunpack.c.l.b16 %v3214
      %v3513 = vunpack.c.l.b16 %v3228
      %v3514 = vunpack.c.l.b16 %v3238
      %v3515 = vunpack.c.l.b16 %v3252
      %v3516 = vunpack.c.l.b16 %v3262
      %v3517 = vunpack.c.l.b16 %v3276
      %v3518 = vunpack.c.l.b16 %v3286
      %v3519 = vunpack.c.l.b16 %v3300
      %v3520 = vunpack.c.l.b16 %v3310
      %v3521 = vunpack.c.l.b16 %v3324
      %v3522 = vunpack.c.l.b16 %v3334
      %v3523 = vunpack.c.l.b16 %v3348
      %v3524 = vunpack.c.l.b16 %v3358
      %v3525 = vunpack.c.l.b16 %v3372
      %v3526 = vunpack.c.l.b16 %v3382
      %v3527 = vunpack.c.l.b16 %v3396
      %v3528 = vunpack.c.l.b16 %v3406
      %v3529 = vunpack.c.l.b16 %v3420
      %v3530 = vunpack.c.l.b16 %v3430
      %v3531 = vunpack.c.l.b16 %v3444
      %v3532 = vunpack.c.l.b16 %v3454
      %v3533 = vunpack.c.l.b16 %v3468
      %v3534 = vunpack.c.l.b16 %v3478
      %v3535 = vunpack.c.l.b16 %v3492
      %v3536 = vunpack.c.l.b16 %v3502
      %v3537 = vpack.c.b16 %v3506, %v3505
      %v3538 = vpack.c.b16 %v3508, %v3507
      %v3539 = vpack.c.b16 %v3510, %v3509
      %v3540 = vpack.c.b16 %v3512, %v3511
      %v3541 = vpack.c.b16 %v3514, %v3513
      %v3542 = vpack.c.b16 %v3516, %v3515
      %v3543 = vpack.c.b16 %v3518, %v3517
      %v3544 = vpack.c.b16 %v3520, %v3519
      %v3545 = vpack.c.b16 %v3522, %v3521
      %v3546 = vpack.c.b16 %v3524, %v3523
      %v3547 = vpack.c.b16 %v3526, %v3525
      %v3548 = vpack.c.b16 %v3528, %v3527
      %v3549 = vpack.c.b16 %v3530, %v3529
      %v3550 = vpack.c.b16 %v3532, %v3531
      %v3551 = vpack.c.b16 %v3534, %v3533
      %v3552 = vpack.c.b16 %v3536, %v3535
      %v3554 = vsel %vm692, %v3537, 0
      %v3557 = vsel %vm692, %v3538, 0
      %v3560 = vsel %vm692, %v3539, 0
      %v3563 = vsel %vm692, %v3540, 0
      %v3566 = vsel %vm692, %v3541, 0
      %v3569 = vsel %vm692, %v3542, 0
      %v3572 = vsel %vm692, %v3543, 0
      %v3575 = vsel %vm692, %v3544, 0
      %v3578 = vsel %vm692, %v3545, 0
      %v3581 = vsel %vm692, %v3546, 0
      %v3584 = vsel %vm692, %v3547, 0
      %v3587 = vsel %vm692, %v3548, 0
      %v3590 = vsel %vm692, %v3549, 0
      %v3593 = vsel %vm692, %v3550, 0
      %v3596 = vsel %vm692, %v3551, 0
      %v3599 = vsel %vm692, %v3552, 0
      %v3602 = vsel %vm741, %v3504, 0
      %3604 = vmatpush.bf16.msra.mxu0 0
      %3605 = vmatpush.bf16.msra.mxu0 0
      %3606 = vmatpush.bf16.msra.mxu0 0
      %3607 = vmatpush.bf16.msra.mxu0 0
      %3608 = vmatpush.bf16.msra.mxu0 0
      %3609 = vmatpush.bf16.msra.mxu0 0
      %3610 = vmatpush.bf16.msra.mxu0 0
      %3611 = vmatpush.bf16.msra.mxu0 %v3602
      %3612 = vmatmul.bf16.gmra.mxu0 %v3554
      %v3613 = vpop.f32.mrf.mxu0
      %v3614 = vadd.f32 0.0, %v3613
      %v3615 = vpop.f32.mrf.mxu0
      %v3616 = vadd.f32 0.0, %v3615
      %3617 = vmatmul.bf16.gmra.mxu0 %v3557
      %v3618 = vpop.f32.mrf.mxu0
      %v3619 = vadd.f32 0.0, %v3618
      %v3620 = vpop.f32.mrf.mxu0
      %v3621 = vadd.f32 0.0, %v3620
      %3622 = vmatmul.bf16.gmra.mxu0 %v3560
      %v3623 = vpop.f32.mrf.mxu0
      %v3624 = vadd.f32 0.0, %v3623
      %v3625 = vpop.f32.mrf.mxu0
      %v3626 = vadd.f32 0.0, %v3625
      %3627 = vmatmul.bf16.gmra.mxu0 %v3563
      %v3628 = vpop.f32.mrf.mxu0
      %v3629 = vadd.f32 0.0, %v3628
      %v3630 = vpop.f32.mrf.mxu0
      %v3631 = vadd.f32 0.0, %v3630
      %3632 = vmatmul.bf16.gmra.mxu0 %v3566
      %v3633 = vpop.f32.mrf.mxu0
      %v3634 = vadd.f32 0.0, %v3633
      %v3635 = vpop.f32.mrf.mxu0
      %v3636 = vadd.f32 0.0, %v3635
      %3637 = vmatmul.bf16.gmra.mxu0 %v3569
      %v3638 = vpop.f32.mrf.mxu0
      %v3639 = vadd.f32 0.0, %v3638
      %v3640 = vpop.f32.mrf.mxu0
      %v3641 = vadd.f32 0.0, %v3640
      %3642 = vmatmul.bf16.gmra.mxu0 %v3572
      %v3643 = vpop.f32.mrf.mxu0
      %v3644 = vadd.f32 0.0, %v3643
      %v3645 = vpop.f32.mrf.mxu0
      %v3646 = vadd.f32 0.0, %v3645
      %3647 = vmatmul.bf16.gmra.mxu0 %v3575
      %v3648 = vpop.f32.mrf.mxu0
      %v3649 = vadd.f32 0.0, %v3648
      %v3650 = vpop.f32.mrf.mxu0
      %v3651 = vadd.f32 0.0, %v3650
      %3652 = vmatmul.bf16.gmra.mxu0 %v3578
      %v3653 = vpop.f32.mrf.mxu0
      %v3654 = vadd.f32 0.0, %v3653
      %v3655 = vpop.f32.mrf.mxu0
      %v3656 = vadd.f32 0.0, %v3655
      %3657 = vmatmul.bf16.gmra.mxu0 %v3581
      %v3658 = vpop.f32.mrf.mxu0
      %v3659 = vadd.f32 0.0, %v3658
      %v3660 = vpop.f32.mrf.mxu0
      %v3661 = vadd.f32 0.0, %v3660
      %3662 = vmatmul.bf16.gmra.mxu0 %v3584
      %v3663 = vpop.f32.mrf.mxu0
      %v3664 = vadd.f32 0.0, %v3663
      %v3665 = vpop.f32.mrf.mxu0
      %v3666 = vadd.f32 0.0, %v3665
      %3667 = vmatmul.bf16.gmra.mxu0 %v3587
      %v3668 = vpop.f32.mrf.mxu0
      %v3669 = vadd.f32 0.0, %v3668
      %v3670 = vpop.f32.mrf.mxu0
      %v3671 = vadd.f32 0.0, %v3670
      %3672 = vmatmul.bf16.gmra.mxu0 %v3590
      %v3673 = vpop.f32.mrf.mxu0
      %v3674 = vadd.f32 0.0, %v3673
      %v3675 = vpop.f32.mrf.mxu0
      %v3676 = vadd.f32 0.0, %v3675
      %3677 = vmatmul.bf16.gmra.mxu0 %v3593
      %v3678 = vpop.f32.mrf.mxu0
      %v3679 = vadd.f32 0.0, %v3678
      %v3680 = vpop.f32.mrf.mxu0
      %v3681 = vadd.f32 0.0, %v3680
      %3682 = vmatmul.bf16.gmra.mxu0 %v3596
      %v3683 = vpop.f32.mrf.mxu0
      %v3684 = vadd.f32 0.0, %v3683
      %v3685 = vpop.f32.mrf.mxu0
      %v3686 = vadd.f32 0.0, %v3685
      %3687 = vmatmul.bf16.gmra.mxu0 %v3599
      %v3688 = vpop.f32.mrf.mxu0
      %v3689 = vadd.f32 0.0, %v3688
      %v3690 = vpop.f32.mrf.mxu0
      %v3691 = vadd.f32 0.0, %v3690
      %3692 = vdwg.mxu0
      %v3693 = vadd.f32 %v3039, %v3614
      %v3694 = vadd.f32 %v3040, %v3616
      %v3695 = vadd.f32 %v3041, %v3619
      %v3696 = vadd.f32 %v3042, %v3621
      %v3697 = vadd.f32 %v3043, %v3624
      %v3698 = vadd.f32 %v3044, %v3626
      %v3699 = vadd.f32 %v3045, %v3629
      %v3700 = vadd.f32 %v3046, %v3631
      %v3701 = vadd.f32 %v3047, %v3634
      %v3702 = vadd.f32 %v3048, %v3636
      %v3703 = vadd.f32 %v3049, %v3639
      %v3704 = vadd.f32 %v3050, %v3641
      %v3705 = vadd.f32 %v3051, %v3644
      %v3706 = vadd.f32 %v3052, %v3646
      %v3707 = vadd.f32 %v3053, %v3649
      %v3708 = vadd.f32 %v3054, %v3651
      %v3709 = vadd.f32 %v3055, %v3654
      %v3710 = vadd.f32 %v3056, %v3656
      %v3711 = vadd.f32 %v3057, %v3659
      %v3712 = vadd.f32 %v3058, %v3661
      %v3713 = vadd.f32 %v3059, %v3664
      %v3714 = vadd.f32 %v3060, %v3666
      %v3715 = vadd.f32 %v3061, %v3669
      %v3716 = vadd.f32 %v3062, %v3671
      %v3717 = vadd.f32 %v3063, %v3674
      %v3718 = vadd.f32 %v3064, %v3676
      %v3719 = vadd.f32 %v3065, %v3679
      %v3720 = vadd.f32 %v3066, %v3681
      %v3721 = vadd.f32 %v3067, %v3684
      %v3722 = vadd.f32 %v3068, %v3686
      %v3723 = vadd.f32 %v3069, %v3689
      %v3724 = vadd.f32 %v3070, %v3691
      %v3725 = vld [vmem:[%s2784] sm:$0xe]
      %v3726 = vld [vmem:[%s2784 + $0xc] sm:$0xe]
      %v3727 = vld [vmem:[%s2784 + $0x18] sm:$0xe]
      %v3728 = vld [vmem:[%s2784 + $0x24] sm:$0xe]
      %v3729 = vld [vmem:[%s2784 + $0x30] sm:$0xe]
      %v3730 = vld [vmem:[%s2784 + $0x3c] sm:$0xe]
      %v3731 = vld [vmem:[%s2784 + $0x48] sm:$0xe]
      %v3732 = vld [vmem:[%s2784 + $0x54] sm:$0xe]
      %v3733 = vld [vmem:[%s2784 + $0x60] sm:$0xe]
      %v3734 = vld [vmem:[%s2784 + $0x6c] sm:$0xe]
      %v3735 = vld [vmem:[%s2784 + $0x78] sm:$0xe]
      %v3736 = vld [vmem:[%s2784 + $0x84] sm:$0xe]
      %v3737 = vld [vmem:[%s2784 + $0x90] sm:$0xe]
      %v3738 = vld [vmem:[%s2784 + $0x9c] sm:$0xe]
      %v3739 = vld [vmem:[%s2784 + $0xa8] sm:$0xe]
      %v3740 = vld [vmem:[%s2784 + $0xb4] sm:$0xe]
      %v3789 = vrot.slane %v3725, 5
      %v3790 = vrot.slane %v3789, 4
      %v3791 = vrot.slane %v3072, 5
      %v3792 = vsel %vm1104, %v3790, %v3791
      %v3793 = vrot.slane %v3791, 4
      %v3794 = vrot.slane %v3073, 5
      %v3795 = vsel %vm1104, %v3793, %v3794
      %v3796 = vrot.slane %v3726, 5
      %v3797 = vrot.slane %v3796, 4
      %v3798 = vrot.slane %v3075, 5
      %v3799 = vsel %vm1104, %v3797, %v3798
      %v3800 = vrot.slane %v3798, 4
      %v3801 = vrot.slane %v3076, 5
      %v3802 = vsel %vm1104, %v3800, %v3801
      %v3803 = vrot.slane %v3727, 5
      %v3804 = vrot.slane %v3803, 4
      %v3805 = vrot.slane %v3078, 5
      %v3806 = vsel %vm1104, %v3804, %v3805
      %v3807 = vrot.slane %v3805, 4
      %v3808 = vrot.slane %v3079, 5
      %v3809 = vsel %vm1104, %v3807, %v3808
      %v3810 = vrot.slane %v3728, 5
      %v3811 = vrot.slane %v3810, 4
      %v3812 = vrot.slane %v3081, 5
      %v3813 = vsel %vm1104, %v3811, %v3812
      %v3814 = vrot.slane %v3812, 4
      %v3815 = vrot.slane %v3082, 5
      %v3816 = vsel %vm1104, %v3814, %v3815
      %v3817 = vrot.slane %v3729, 5
      %v3818 = vrot.slane %v3817, 4
      %v3819 = vrot.slane %v3084, 5
      %v3820 = vsel %vm1104, %v3818, %v3819
      %v3821 = vrot.slane %v3819, 4
      %v3822 = vrot.slane %v3085, 5
      %v3823 = vsel %vm1104, %v3821, %v3822
      %v3824 = vrot.slane %v3730, 5
      %v3825 = vrot.slane %v3824, 4
      %v3826 = vrot.slane %v3087, 5
      %v3827 = vsel %vm1104, %v3825, %v3826
      %v3828 = vrot.slane %v3826, 4
      %v3829 = vrot.slane %v3088, 5
      %v3830 = vsel %vm1104, %v3828, %v3829
      %v3831 = vrot.slane %v3731, 5
      %v3832 = vrot.slane %v3831, 4
      %v3833 = vrot.slane %v3090, 5
      %v3834 = vsel %vm1104, %v3832, %v3833
      %v3835 = vrot.slane %v3833, 4
      %v3836 = vrot.slane %v3091, 5
      %v3837 = vsel %vm1104, %v3835, %v3836
      %v3838 = vrot.slane %v3732, 5
      %v3839 = vrot.slane %v3838, 4
      %v3840 = vrot.slane %v3093, 5
      %v3841 = vsel %vm1104, %v3839, %v3840
      %v3842 = vrot.slane %v3840, 4
      %v3843 = vrot.slane %v3094, 5
      %v3844 = vsel %vm1104, %v3842, %v3843
      %v3845 = vrot.slane %v3733, 5
      %v3846 = vrot.slane %v3845, 4
      %v3847 = vrot.slane %v3096, 5
      %v3848 = vsel %vm1104, %v3846, %v3847
      %v3849 = vrot.slane %v3847, 4
      %v3850 = vrot.slane %v3097, 5
      %v3851 = vsel %vm1104, %v3849, %v3850
      %v3852 = vrot.slane %v3734, 5
      %v3853 = vrot.slane %v3852, 4
      %v3854 = vrot.slane %v3099, 5
      %v3855 = vsel %vm1104, %v3853, %v3854
      %v3856 = vrot.slane %v3854, 4
      %v3857 = vrot.slane %v3100, 5
      %v3858 = vsel %vm1104, %v3856, %v3857
      %v3859 = vrot.slane %v3735, 5
      %v3860 = vrot.slane %v3859, 4
      %v3861 = vrot.slane %v3102, 5
      %v3862 = vsel %vm1104, %v3860, %v3861
      %v3863 = vrot.slane %v3861, 4
      %v3864 = vrot.slane %v3103, 5
      %v3865 = vsel %vm1104, %v3863, %v3864
      %v3866 = vrot.slane %v3736, 5
      %v3867 = vrot.slane %v3866, 4
      %v3868 = vrot.slane %v3105, 5
      %v3869 = vsel %vm1104, %v3867, %v3868
      %v3870 = vrot.slane %v3868, 4
      %v3871 = vrot.slane %v3106, 5
      %v3872 = vsel %vm1104, %v3870, %v3871
      %v3873 = vrot.slane %v3737, 5
      %v3874 = vrot.slane %v3873, 4
      %v3875 = vrot.slane %v3108, 5
      %v3876 = vsel %vm1104, %v3874, %v3875
      %v3877 = vrot.slane %v3875, 4
      %v3878 = vrot.slane %v3109, 5
      %v3879 = vsel %vm1104, %v3877, %v3878
      %v3880 = vrot.slane %v3738, 5
      %v3881 = vrot.slane %v3880, 4
      %v3882 = vrot.slane %v3111, 5
      %v3883 = vsel %vm1104, %v3881, %v3882
      %v3884 = vrot.slane %v3882, 4
      %v3885 = vrot.slane %v3112, 5
      %v3886 = vsel %vm1104, %v3884, %v3885
      %v3887 = vrot.slane %v3739, 5
      %v3888 = vrot.slane %v3887, 4
      %v3889 = vrot.slane %v3114, 5
      %v3890 = vsel %vm1104, %v3888, %v3889
      %v3891 = vrot.slane %v3889, 4
      %v3892 = vrot.slane %v3115, 5
      %v3893 = vsel %vm1104, %v3891, %v3892
      %v3894 = vrot.slane %v3740, 5
      %v3895 = vrot.slane %v3894, 4
      %v3896 = vrot.slane %v3117, 5
      %v3897 = vsel %vm1104, %v3895, %v3896
      %v3898 = vrot.slane %v3896, 4
      %v3899 = vrot.slane %v3118, 5
      %v3900 = vsel %vm1104, %v3898, %v3899
      %s3901 = scalar_lea.vmem %s186, 16
      %v3902 = vld [vmem:[%s3901] sm:$0x3]
      %v3903 = vunpack.c.l.b16 %v3792
      %v3904 = vunpack.c.l.b16 %v3795
      %v3905 = vunpack.c.l.b16 %v3799
      %v3906 = vunpack.c.l.b16 %v3802
      %v3907 = vunpack.c.l.b16 %v3806
      %v3908 = vunpack.c.l.b16 %v3809
      %v3909 = vunpack.c.l.b16 %v3813
      %v3910 = vunpack.c.l.b16 %v3816
      %v3911 = vunpack.c.l.b16 %v3820
      %v3912 = vunpack.c.l.b16 %v3823
      %v3913 = vunpack.c.l.b16 %v3827
      %v3914 = vunpack.c.l.b16 %v3830
      %v3915 = vunpack.c.l.b16 %v3834
      %v3916 = vunpack.c.l.b16 %v3837
      %v3917 = vunpack.c.l.b16 %v3841
      %v3918 = vunpack.c.l.b16 %v3844
      %v3919 = vunpack.c.l.b16 %v3848
      %v3920 = vunpack.c.l.b16 %v3851
      %v3921 = vunpack.c.l.b16 %v3855
      %v3922 = vunpack.c.l.b16 %v3858
      %v3923 = vunpack.c.l.b16 %v3862
      %v3924 = vunpack.c.l.b16 %v3865
      %v3925 = vunpack.c.l.b16 %v3869
      %v3926 = vunpack.c.l.b16 %v3872
      %v3927 = vunpack.c.l.b16 %v3876
      %v3928 = vunpack.c.l.b16 %v3879
      %v3929 = vunpack.c.l.b16 %v3883
      %v3930 = vunpack.c.l.b16 %v3886
      %v3931 = vunpack.c.l.b16 %v3890
      %v3932 = vunpack.c.l.b16 %v3893
      %v3933 = vunpack.c.l.b16 %v3897
      %v3934 = vunpack.c.l.b16 %v3900
      %v3935 = vpack.c.b16 %v3904, %v3903
      %v3936 = vpack.c.b16 %v3906, %v3905
      %v3937 = vpack.c.b16 %v3908, %v3907
      %v3938 = vpack.c.b16 %v3910, %v3909
      %v3939 = vpack.c.b16 %v3912, %v3911
      %v3940 = vpack.c.b16 %v3914, %v3913
      %v3941 = vpack.c.b16 %v3916, %v3915
      %v3942 = vpack.c.b16 %v3918, %v3917
      %v3943 = vpack.c.b16 %v3920, %v3919
      %v3944 = vpack.c.b16 %v3922, %v3921
      %v3945 = vpack.c.b16 %v3924, %v3923
      %v3946 = vpack.c.b16 %v3926, %v3925
      %v3947 = vpack.c.b16 %v3928, %v3927
      %v3948 = vpack.c.b16 %v3930, %v3929
      %v3949 = vpack.c.b16 %v3932, %v3931
      %v3950 = vpack.c.b16 %v3934, %v3933
      %v3952 = vsel %vm692, %v3935, 0
      %v3955 = vsel %vm692, %v3936, 0
      %v3958 = vsel %vm692, %v3937, 0
      %v3961 = vsel %vm692, %v3938, 0
      %v3964 = vsel %vm692, %v3939, 0
      %v3967 = vsel %vm692, %v3940, 0
      %v3970 = vsel %vm692, %v3941, 0
      %v3973 = vsel %vm692, %v3942, 0
      %v3976 = vsel %vm692, %v3943, 0
      %v3979 = vsel %vm692, %v3944, 0
      %v3982 = vsel %vm692, %v3945, 0
      %v3985 = vsel %vm692, %v3946, 0
      %v3988 = vsel %vm692, %v3947, 0
      %v3991 = vsel %vm692, %v3948, 0
      %v3994 = vsel %vm692, %v3949, 0
      %v3997 = vsel %vm692, %v3950, 0
      %v4000 = vsel %vm741, %v3902, 0
      %4002 = vmatpush.bf16.msra.mxu0 0
      %4003 = vmatpush.bf16.msra.mxu0 0
      %4004 = vmatpush.bf16.msra.mxu0 0
      %4005 = vmatpush.bf16.msra.mxu0 0
      %4006 = vmatpush.bf16.msra.mxu0 0
      %4007 = vmatpush.bf16.msra.mxu0 0
      %4008 = vmatpush.bf16.msra.mxu0 0
      %4009 = vmatpush.bf16.msra.mxu0 %v4000
      %4010 = vmatmul.bf16.gmra.mxu0 %v3952
      %v4011 = vpop.f32.mrf.mxu0
      %v4012 = vadd.f32 0.0, %v4011
      %v4013 = vpop.f32.mrf.mxu0
      %v4014 = vadd.f32 0.0, %v4013
      %4015 = vmatmul.bf16.gmra.mxu0 %v3955
      %v4016 = vpop.f32.mrf.mxu0
      %v4017 = vadd.f32 0.0, %v4016
      %v4018 = vpop.f32.mrf.mxu0
      %v4019 = vadd.f32 0.0, %v4018
      %4020 = vmatmul.bf16.gmra.mxu0 %v3958
      %v4021 = vpop.f32.mrf.mxu0
      %v4022 = vadd.f32 0.0, %v4021
      %v4023 = vpop.f32.mrf.mxu0
      %v4024 = vadd.f32 0.0, %v4023
      %4025 = vmatmul.bf16.gmra.mxu0 %v3961
      %v4026 = vpop.f32.mrf.mxu0
      %v4027 = vadd.f32 0.0, %v4026
      %v4028 = vpop.f32.mrf.mxu0
      %v4029 = vadd.f32 0.0, %v4028
      %4030 = vmatmul.bf16.gmra.mxu0 %v3964
      %v4031 = vpop.f32.mrf.mxu0
      %v4032 = vadd.f32 0.0, %v4031
      %v4033 = vpop.f32.mrf.mxu0
      %v4034 = vadd.f32 0.0, %v4033
      %4035 = vmatmul.bf16.gmra.mxu0 %v3967
      %v4036 = vpop.f32.mrf.mxu0
      %v4037 = vadd.f32 0.0, %v4036
      %v4038 = vpop.f32.mrf.mxu0
      %v4039 = vadd.f32 0.0, %v4038
      %4040 = vmatmul.bf16.gmra.mxu0 %v3970
      %v4041 = vpop.f32.mrf.mxu0
      %v4042 = vadd.f32 0.0, %v4041
      %v4043 = vpop.f32.mrf.mxu0
      %v4044 = vadd.f32 0.0, %v4043
      %4045 = vmatmul.bf16.gmra.mxu0 %v3973
      %v4046 = vpop.f32.mrf.mxu0
      %v4047 = vadd.f32 0.0, %v4046
      %v4048 = vpop.f32.mrf.mxu0
      %v4049 = vadd.f32 0.0, %v4048
      %4050 = vmatmul.bf16.gmra.mxu0 %v3976
      %v4051 = vpop.f32.mrf.mxu0
      %v4052 = vadd.f32 0.0, %v4051
      %v4053 = vpop.f32.mrf.mxu0
      %v4054 = vadd.f32 0.0, %v4053
      %4055 = vmatmul.bf16.gmra.mxu0 %v3979
      %v4056 = vpop.f32.mrf.mxu0
      %v4057 = vadd.f32 0.0, %v4056
      %v4058 = vpop.f32.mrf.mxu0
      %v4059 = vadd.f32 0.0, %v4058
      %4060 = vmatmul.bf16.gmra.mxu0 %v3982
      %v4061 = vpop.f32.mrf.mxu0
      %v4062 = vadd.f32 0.0, %v4061
      %v4063 = vpop.f32.mrf.mxu0
      %v4064 = vadd.f32 0.0, %v4063
      %4065 = vmatmul.bf16.gmra.mxu0 %v3985
      %v4066 = vpop.f32.mrf.mxu0
      %v4067 = vadd.f32 0.0, %v4066
      %v4068 = vpop.f32.mrf.mxu0
      %v4069 = vadd.f32 0.0, %v4068
      %4070 = vmatmul.bf16.gmra.mxu0 %v3988
      %v4071 = vpop.f32.mrf.mxu0
      %v4072 = vadd.f32 0.0, %v4071
      %v4073 = vpop.f32.mrf.mxu0
      %v4074 = vadd.f32 0.0, %v4073
      %4075 = vmatmul.bf16.gmra.mxu0 %v3991
      %v4076 = vpop.f32.mrf.mxu0
      %v4077 = vadd.f32 0.0, %v4076
      %v4078 = vpop.f32.mrf.mxu0
      %v4079 = vadd.f32 0.0, %v4078
      %4080 = vmatmul.bf16.gmra.mxu0 %v3994
      %v4081 = vpop.f32.mrf.mxu0
      %v4082 = vadd.f32 0.0, %v4081
      %v4083 = vpop.f32.mrf.mxu0
      %v4084 = vadd.f32 0.0, %v4083
      %4085 = vmatmul.bf16.gmra.mxu0 %v3997
      %v4086 = vpop.f32.mrf.mxu0
      %v4087 = vadd.f32 0.0, %v4086
      %v4088 = vpop.f32.mrf.mxu0
      %v4089 = vadd.f32 0.0, %v4088
      %4090 = vdwg.mxu0
      %v4091 = vadd.f32 %v3693, %v4012
      %v4092 = vadd.f32 %v3694, %v4014
      %v4093 = vadd.f32 %v3695, %v4017
      %v4094 = vadd.f32 %v3696, %v4019
      %v4095 = vadd.f32 %v3697, %v4022
      %v4096 = vadd.f32 %v3698, %v4024
      %v4097 = vadd.f32 %v3699, %v4027
      %v4098 = vadd.f32 %v3700, %v4029
      %v4099 = vadd.f32 %v3701, %v4032
      %v4100 = vadd.f32 %v3702, %v4034
      %v4101 = vadd.f32 %v3703, %v4037
      %v4102 = vadd.f32 %v3704, %v4039
      %v4103 = vadd.f32 %v3705, %v4042
      %v4104 = vadd.f32 %v3706, %v4044
      %v4105 = vadd.f32 %v3707, %v4047
      %v4106 = vadd.f32 %v3708, %v4049
      %v4107 = vadd.f32 %v3709, %v4052
      %v4108 = vadd.f32 %v3710, %v4054
      %v4109 = vadd.f32 %v3711, %v4057
      %v4110 = vadd.f32 %v3712, %v4059
      %v4111 = vadd.f32 %v3713, %v4062
      %v4112 = vadd.f32 %v3714, %v4064
      %v4113 = vadd.f32 %v3715, %v4067
      %v4114 = vadd.f32 %v3716, %v4069
      %v4115 = vadd.f32 %v3717, %v4072
      %v4116 = vadd.f32 %v3718, %v4074
      %v4117 = vadd.f32 %v3719, %v4077
      %v4118 = vadd.f32 %v3720, %v4079
      %v4119 = vadd.f32 %v3721, %v4082
      %v4120 = vadd.f32 %v3722, %v4084
      %v4121 = vadd.f32 %v3723, %v4087
      %v4122 = vadd.f32 %v3724, %v4089
      %vm4123 = vcmask 64512
      %4124 = vst.msk [vmem:[%s199] sm:$0xff] %vm4123, %v4091
      %4125 = vst.msk [vmem:[%s199 + $0x8] sm:$0xff] %vm4123, %v4092
      %4126 = vst.msk [vmem:[%s199 + $0x10] sm:$0xff] %vm4123, %v4093
      %4127 = vst.msk [vmem:[%s199 + $0x18] sm:$0xff] %vm4123, %v4094
      %4128 = vst.msk [vmem:[%s199 + $0x20] sm:$0xff] %vm4123, %v4095
      %4129 = vst.msk [vmem:[%s199 + $0x28] sm:$0xff] %vm4123, %v4096
      %4130 = vst.msk [vmem:[%s199 + $0x30] sm:$0xff] %vm4123, %v4097
      %4131 = vst.msk [vmem:[%s199 + $0x38] sm:$0xff] %vm4123, %v4098
      %4132 = vst.msk [vmem:[%s199 + $0x40] sm:$0xff] %vm4123, %v4099
      %4133 = vst.msk [vmem:[%s199 + $0x48] sm:$0xff] %vm4123, %v4100
      %4134 = vst.msk [vmem:[%s199 + $0x50] sm:$0xff] %vm4123, %v4101
      %4135 = vst.msk [vmem:[%s199 + $0x58] sm:$0xff] %vm4123, %v4102
      %4136 = vst.msk [vmem:[%s199 + $0x60] sm:$0xff] %vm4123, %v4103
      %4137 = vst.msk [vmem:[%s199 + $0x68] sm:$0xff] %vm4123, %v4104
      %4138 = vst.msk [vmem:[%s199 + $0x70] sm:$0xff] %vm4123, %v4105
      %4139 = vst.msk [vmem:[%s199 + $0x78] sm:$0xff] %vm4123, %v4106
      %4140 = vst.msk [vmem:[%s199 + $0x80] sm:$0xff] %vm4123, %v4107
      %4141 = vst.msk [vmem:[%s199 + $0x88] sm:$0xff] %vm4123, %v4108
      %4142 = vst.msk [vmem:[%s199 + $0x90] sm:$0xff] %vm4123, %v4109
      %4143 = vst.msk [vmem:[%s199 + $0x98] sm:$0xff] %vm4123, %v4110
      %4144 = vst.msk [vmem:[%s199 + $0xa0] sm:$0xff] %vm4123, %v4111
      %4145 = vst.msk [vmem:[%s199 + $0xa8] sm:$0xff] %vm4123, %v4112
      %4146 = vst.msk [vmem:[%s199 + $0xb0] sm:$0xff] %vm4123, %v4113
      %4147 = vst.msk [vmem:[%s199 + $0xb8] sm:$0xff] %vm4123, %v4114
      %4148 = vst.msk [vmem:[%s199 + $0xc0] sm:$0xff] %vm4123, %v4115
      %4149 = vst.msk [vmem:[%s199 + $0xc8] sm:$0xff] %vm4123, %v4116
      %4150 = vst.msk [vmem:[%s199 + $0xd0] sm:$0xff] %vm4123, %v4117
      %4151 = vst.msk [vmem:[%s199 + $0xd8] sm:$0xff] %vm4123, %v4118
      %4152 = vst.msk [vmem:[%s199 + $0xe0] sm:$0xff] %vm4123, %v4119
      %4153 = vst.msk [vmem:[%s199 + $0xe8] sm:$0xff] %vm4123, %v4120
      %4154 = vst.msk [vmem:[%s199 + $0xf0] sm:$0xff] %vm4123, %v4121
      %4155 = vst.msk [vmem:[%s199 + $0xf8] sm:$0xff] %vm4123, %v4122
      %s4156 = smul.u32 16, %s20
      %p4157 = scmp.lt.s32.totalorder %s18, 1
      %s4158 = scalar_select %p4157, %s18, 1
      %p4159 = scmp.lt.s32.totalorder %s4156, 15
      %s4160 = scalar_select %p4159, %s4156, 15
      %p4161 = scmp.lt.s32.totalorder %s19, 0
      %s4162 = scalar_select %p4161, %s19, 0
      %s4163 = smul.addr %s4160, 2
      %s4164 = sadd.s32 %s4162, %s4163
      %s4165 = smul.addr %s4158, 32
      %s4166 = sadd.s32 %s4164, %s4165
      %s4167 = smul.addr %s4166, 8
      %s4168 = scalar_lea.vmem %s2, %s4167
      // Predicated region
      $region29: #{tpu_custom_call.1} parent=27 // pred_check
        %p4169 = pneg %p106
      $region30: #{tpu_custom_call.1} parent=27 // pred_check_branch
        %4171 = sbr.rel (%p4169) target = $region32
      $region31: #{tpu_custom_call.1} parent=27 // pred_region
        %s4172 = smul.u32 16, %s20
      $region32: #{tpu_custom_call.1} parent=27 // pred_fallthru
        _
    $region28: #{tpu_custom_call.1} parent=5 // pred_fallthru
      _
    %p4173 = scmp.le.s32.totalorder 2, %s8
    // Predicated region
    $region33: #{tpu_custom_call.1} parent=5 // pred_check
      %p4174 = pneg %p4173
    $region34: #{tpu_custom_call.1} parent=5 // pred_check_branch
      %4176 = sbr.rel (%p4174) target = $region36
    $region35: #{tpu_custom_call.1} parent=5 // pred_region
      %s4177 = ssub.s32 %s8, 2
      // Predicated region
      $region37: #{tpu_custom_call.1} parent=35 // pred_check
        %p4178 = pneg %p112
      $region38: #{tpu_custom_call.1} parent=35 // pred_check_branch
        %4180 = sbr.rel (%p4178) target = $region40
      $region39: #{tpu_custom_call.1} parent=35 // pred_region
        %s4181 = smul.u32 16, %s23
        %p4182 = scmp.lt.s32.totalorder %s21, 1
        %s4183 = scalar_select %p4182, %s21, 1
        %p4184 = scmp.lt.s32.totalorder %s4181, 15
        %s4185 = scalar_select %p4184, %s4181, 15
        %p4186 = scmp.lt.s32.totalorder %s22, 0
        %s4187 = scalar_select %p4186, %s22, 0
        %s4188 = smul.addr %s4185, 2
        %s4189 = sadd.s32 %s4187, %s4188
        %s4190 = smul.addr %s4183, 32
        %s4191 = sadd.s32 %s4189, %s4190
        %s4192 = smul.addr %s4191, 8
        %s4193 = scalar_lea.vmem %s2, %s4192
      $region40: #{tpu_custom_call.1} parent=35 // pred_fallthru
        _
    $region36: #{tpu_custom_call.1} parent=5 // pred_fallthru
      _
  $region6: #{tpu_custom_call.1} parent=0 // loop_footer
    %s12 = sadd.s32 1, %s8
  $region7: #{tpu_custom_call.1} parent=0 // loop_footer_branch
    %7 = sbr.rel target = $region3
  $region8: #{tpu_custom_call.1} parent=0 // loop_exit
    _

</llo_original>
